<compile_context>
chip_gen: v7x
topology: tpu7x:2x2x1
jax: 0.10.0
libtpu: 0.0.40
codegen_flags: <defaults>
</compile_context>

<pallas_src>
import jax
import jax.numpy as jnp
from jax.experimental import pallas as pl
from jax.experimental.pallas import tpu as pltpu

EPS = 1e-5


def add_conv_bn_kernel(x1_ref, x2_ref, w_ref, gb_ref, o_ref):
    # x1_ref, x2_ref: (M, Cin) f32   (grid-resident, constant index_map)
    # w_ref:          (Cin, TN) bf16
    # gb_ref:         (2, TN)  f32   (row 0 = gamma, row 1 = beta)
    # o_ref:          (M, TN)  f32
    x = (x1_ref[...] + x2_ref[...]).astype(jnp.bfloat16)              # add (VPU) + cast

    # 1x1 conv as a lane-dense matmul on the MXU, f32 accumulation.
    y = jnp.dot(x, w_ref[...], preferred_element_type=jnp.float32)    # (M, TN)

    # BatchNorm2d (training mode): biased batch stats over M = N*H*W per channel.
    # Two-pass (mean, then centered variance) for numerical safety.
    inv_m = jnp.float32(1.0 / y.shape[0])
    mean = jnp.sum(y, axis=0, keepdims=True) * inv_m                  # (1, TN)
    d = y - mean
    var = jnp.sum(d * d, axis=0, keepdims=True) * inv_m               # (1, TN)
    inv = jax.lax.rsqrt(var + EPS)

    gb = gb_ref[...]
    gamma = gb[0:1, :]                                                # (1, TN)
    beta = gb[1:2, :]                                                 # (1, TN)
    o_ref[...] = d * (gamma * inv) + beta


def add_conv_bn(x664, x650, weight_io, gamma, beta, *, tn=1152):
    """x664, x650: (N, Cin, H, W) f32.
    weight_io: (Cin, Cout) bf16 (1x1 conv weight, stored kernel-native).
    gamma, beta: (Cout,) f32.  Returns (N, Cout, H, W) f32."""
    N, Cin, H, W = x664.shape
    M = N * H * W
    Cout = weight_io.shape[1]
    assert weight_io.shape == (Cin, Cout)
    assert Cout % tn == 0 and tn % 128 == 0

    # Channels-last (M, Cin) views of the activations (tiny: 113 KB each).
    a = jnp.transpose(x664, (0, 2, 3, 1)).reshape(M, Cin)
    b = jnp.transpose(x650, (0, 2, 3, 1)).reshape(M, Cin)

    # Pack gamma/beta lane-major: one contiguous (2, Cout) f32 array.
    gb = jnp.stack([gamma, beta], axis=0)

    cost = pl.CostEstimate(
        flops=2 * M * Cin * Cout,
        transcendentals=Cout,                         # rsqrt per channel
        bytes_accessed=(Cin * Cout * 2                # bf16 weight stream
                        + 2 * M * Cin * 4             # two f32 activation blocks
                        + M * Cout * 4                # f32 output
                        + 2 * Cout * 4),              # gamma/beta
    )

    out = pl.pallas_call(
        add_conv_bn_kernel,
        out_shape=jax.ShapeDtypeStruct((M, Cout), jnp.float32),
        grid_spec=pltpu.PrefetchScalarGridSpec(
            num_scalar_prefetch=0,
            grid=(Cout // tn,),
            in_specs=[
                pl.BlockSpec((M, Cin), lambda j: (0, 0)),    # resident activations
                pl.BlockSpec((M, Cin), lambda j: (0, 0)),    # resident activations
                pl.BlockSpec((Cin, tn), lambda j: (0, j)),   # bf16 weight column tile
                pl.BlockSpec((2, tn), lambda j: (0, j)),     # packed gamma/beta tile
            ],
            out_specs=pl.BlockSpec((M, tn), lambda j: (0, j)),
        ),
        compiler_params=pltpu.CompilerParams(
            dimension_semantics=("parallel",)),
        cost_estimate=cost,
    )(a, b, weight_io, gb)

    # (M, Cout) channels-last -> NCHW (one small 451 KB transpose).
    return jnp.transpose(out.reshape(N, H, W, Cout), (0, 3, 1, 2))


if __name__ == "__main__":
    key = jax.random.PRNGKey(0)
    k1, k2, k3, k4, k5 = jax.random.split(key, 5)

    N, Cin, H, W = 1, 576, 7, 7
    Cout = 2304

    x664 = jax.random.normal(k1, (N, Cin, H, W), dtype=jnp.float32)
    x650 = jax.random.normal(k2, (N, Cin, H, W), dtype=jnp.float32)

    # Conv2d(576, 2304, 1, bias=False) weight (Cout, Cin, 1, 1) -> stored as the
    # kernel-native (Cin, Cout) bf16 layout (one-time parameter prep).
    w_f32 = jax.random.normal(k3, (Cout, Cin), dtype=jnp.float32) * 0.02
    weight_io_bf16 = jnp.transpose(w_f32, (1, 0)).astype(jnp.bfloat16)   # (Cin, Cout)
    gamma = jax.random.uniform(k4, (Cout,), jnp.float32, 0.5, 1.5)
    beta = jax.random.normal(k5, (Cout,), dtype=jnp.float32) * 0.1

    out = add_conv_bn(x664, x650, weight_io_bf16, gamma, beta)
    out = jax.block_until_ready(out)
    assert out.shape == (N, Cout, H, W), out.shape

    # Pure-JAX f32 reference, using the same (bf16-stored) weight parameter.
    # TODO(synk): BatchNorm running_mean/running_var momentum update (module state
    # side effect) is not materialized; forward output uses batch stats as in training.
    w_ref = jnp.transpose(weight_io_bf16.astype(jnp.float32), (1, 0))   # (Cout, Cin)
    xs = x664 + x650
    conv = jnp.einsum("nchw,oc->nohw", xs, w_ref)
    mean = jnp.mean(conv, axis=(0, 2, 3), keepdims=True)
    var = jnp.mean((conv - mean) ** 2, axis=(0, 2, 3), keepdims=True)
    ref = (conv - mean) * jax.lax.rsqrt(var + EPS) * gamma[None, :, None, None] \
          + beta[None, :, None, None]

    max_err = float(jnp.max(jnp.abs(out - ref)))
    assert jnp.allclose(out, ref, atol=2e-2, rtol=2e-2), max_err

    print("KERNEL_OK")
</pallas_src>

<mosaic_0001>
module attributes {stable_mosaic.version = 11 : i64} {
  func.func @add_conv_bn_kernel(%arg0: i32, %arg1: memref<49x576xf32, #tpu.memory_space<vmem>>, %arg2: memref<49x576xf32, #tpu.memory_space<vmem>>, %arg3: memref<576x1152xbf16, #tpu.memory_space<vmem>>, %arg4: memref<2x1152xf32, #tpu.memory_space<vmem>>, %arg5: memref<49x1152xf32, #tpu.memory_space<vmem>>) attributes {dimension_semantics = [#tpu.dimension_semantics<parallel>], iteration_bounds = array<i64: 2>, scalar_prefetch = 0 : i64, scratch_operands = 0 : i64, tpu.core_type = #tpu.core_type<tc>, window_params = [{pipeline_mode = #tpu.pipeline_mode<synchronous>, transform_indices = @transform_0, window_bounds = array<i64: 49, 576>}, {pipeline_mode = #tpu.pipeline_mode<synchronous>, transform_indices = @transform_1, window_bounds = array<i64: 49, 576>}, {transform_indices = @transform_2, window_bounds = array<i64: 576, 1152>}, {transform_indices = @transform_3, window_bounds = array<i64: 2, 1152>}, {transform_indices = @transform_4, window_bounds = array<i64: 49, 1152>}]} {
    %c0 = arith.constant 0 : index
    %c0_0 = arith.constant 0 : index
    %0 = vector.load %arg1[%c0, %c0_0] : memref<49x576xf32, #tpu.memory_space<vmem>>, vector<49x576xf32>
    %c0_1 = arith.constant 0 : index
    %c0_2 = arith.constant 0 : index
    %1 = vector.load %arg2[%c0_1, %c0_2] : memref<49x576xf32, #tpu.memory_space<vmem>>, vector<49x576xf32>
    %2 = arith.addf %0, %1 : vector<49x576xf32>
    %3 = arith.truncf %2 : vector<49x576xf32> to vector<49x576xbf16>
    %c0_3 = arith.constant 0 : index
    %c0_4 = arith.constant 0 : index
    %4 = vector.load %arg3[%c0_3, %c0_4] : memref<576x1152xbf16, #tpu.memory_space<vmem>>, vector<576x1152xbf16>
    %cst = arith.constant dense<0.000000e+00> : vector<49x1152xf32>
    %5 = tpu.matmul %3, %4, %cst {dimension_numbers = #tpu.dot_dimension_numbers<[1], [0], [0], [1], [0, 0, 1, 1], [], []>} : vector<49x576xbf16>, vector<576x1152xbf16>, vector<49x1152xf32> -> vector<49x1152xf32>
    %cst_5 = arith.constant dense<0.000000e+00> : vector<1152xf32>
    %6 = vector.multi_reduction <add>, %5, %cst_5 [0] : vector<49x1152xf32> to vector<1152xf32>
    %7 = vector.shape_cast %6 : vector<1152xf32> to vector<1x1152xf32>
    %cst_6 = arith.constant 0.0204081628 : f32
    %8 = vector.broadcast %cst_6 : f32 to vector<1x1152xf32>
    %9 = arith.mulf %7, %8 : vector<1x1152xf32>
    %10 = vector.broadcast %9 : vector<1x1152xf32> to vector<49x1152xf32>
    %11 = arith.subf %5, %10 : vector<49x1152xf32>
    %12 = arith.mulf %11, %11 : vector<49x1152xf32>
    %cst_7 = arith.constant dense<0.000000e+00> : vector<1152xf32>
    %13 = vector.multi_reduction <add>, %12, %cst_7 [0] : vector<49x1152xf32> to vector<1152xf32>
    %14 = vector.shape_cast %13 : vector<1152xf32> to vector<1x1152xf32>
    %cst_8 = arith.constant 0.0204081628 : f32
    %15 = vector.broadcast %cst_8 : f32 to vector<1x1152xf32>
    %16 = arith.mulf %14, %15 : vector<1x1152xf32>
    %cst_9 = arith.constant 9.99999974E-6 : f32
    %17 = vector.broadcast %cst_9 : f32 to vector<1x1152xf32>
    %18 = arith.addf %16, %17 : vector<1x1152xf32>
    %19 = math.rsqrt %18 : vector<1x1152xf32>
    %c0_10 = arith.constant 0 : index
    %c0_11 = arith.constant 0 : index
    %20 = vector.load %arg4[%c0_10, %c0_11] : memref<2x1152xf32, #tpu.memory_space<vmem>>, vector<2x1152xf32>
    %21 = vector.extract_strided_slice %20 {offsets = [0, 0], sizes = [1, 1152], strides = [1, 1]} : vector<2x1152xf32> to vector<1x1152xf32>
    %22 = vector.extract_strided_slice %20 {offsets = [1, 0], sizes = [1, 1152], strides = [1, 1]} : vector<2x1152xf32> to vector<1x1152xf32>
    %23 = arith.mulf %21, %19 : vector<1x1152xf32>
    %24 = vector.broadcast %23 : vector<1x1152xf32> to vector<49x1152xf32>
    %25 = arith.mulf %11, %24 : vector<49x1152xf32>
    %26 = vector.broadcast %22 : vector<1x1152xf32> to vector<49x1152xf32>
    %27 = arith.addf %25, %26 : vector<49x1152xf32>
    %c0_12 = arith.constant 0 : index
    %c0_13 = arith.constant 0 : index
    %28 = vector.load %arg5[%c0_12, %c0_13] : memref<49x1152xf32, #tpu.memory_space<vmem>>, vector<49x1152xf32>
    tpu.vector_store %arg5[%c0_12, %c0_13], %27 {strides = array<i32>} : memref<49x1152xf32, #tpu.memory_space<vmem>>, vector<49x1152xf32>,
    return
  }
  func.func @transform_0(%arg0: i32) -> (i32, i32) {
    %c0_i32 = arith.constant 0 : i32
    %c0_i32_0 = arith.constant 0 : i32
    %c0_i32_1 = arith.constant 0 : i32
    return %c0_i32, %c0_i32_0 : i32, i32
  }
  func.func @transform_1(%arg0: i32) -> (i32, i32) {
    %c0_i32 = arith.constant 0 : i32
    %c0_i32_0 = arith.constant 0 : i32
    %c0_i32_1 = arith.constant 0 : i32
    return %c0_i32, %c0_i32_0 : i32, i32
  }
  func.func @transform_2(%arg0: i32) -> (i32, i32) {
    %c0_i32 = arith.constant 0 : i32
    %c0_i32_0 = arith.constant 0 : i32
    return %c0_i32, %arg0 : i32, i32
  }
  func.func @transform_3(%arg0: i32) -> (i32, i32) {
    %c0_i32 = arith.constant 0 : i32
    %c0_i32_0 = arith.constant 0 : i32
    return %c0_i32, %arg0 : i32, i32
  }
  func.func @transform_4(%arg0: i32) -> (i32, i32) {
    %c0_i32 = arith.constant 0 : i32
    %c0_i32_0 = arith.constant 0 : i32
    return %c0_i32, %arg0 : i32, i32
  }
}

</mosaic_0001>

<llo_original>
// kernel: tpu_custom_call.1
$region0: #{tpu_custom_call.1}
  #allocation0 [shape = 'u32[]', space=smem, size = 0x4, offset = 0x4, fixed_abs, tag = 'smem constant byte address 0x4 - core index']
  #allocation1 [shape = 'u32[144,128]{1,0:T(1,128)}', space=vmem, size = 0x12000, scoped, tag = 'internal scratch']
  %s0 = inlined_call_operand.hbm [shape: f32[49,576], index: 0, kind: input, shape index: {}]
  %s1 = inlined_call_operand.hbm [shape: f32[49,576], index: 1, kind: input, shape index: {}]
  %s2 = inlined_call_operand.hbm [shape: bf16[576,2304], index: 2, kind: input, shape index: {}]
  %s3 = inlined_call_operand.hbm [shape: f32[2,2304], index: 3, kind: input, shape index: {}]
  %s4 = inlined_call_operand.hbm [shape: f32[49,2304], index: 4, kind: output, shape index: {}]
  %s5 = sld [smem:[#allocation0]]
  $region65: #{tpu_custom_call.1} parent=0
    _
  %s7 = ssub.s32 1, %s5
  %s8 = scalar_select 0, %s7, %s5
  $region1: #{tpu_custom_call.1} parent=0
    #allocation2 [shape = 'u8[143360]{0}', space=vmem, size = 0x23000, scoped, tag = 'input window, operand 0, single buffered']
    #allocation3 [shape = 's32[2]{0}', space=sflag, size = 0x8, scoped, tag = 'scoped memory for tpu_custom_call.1']
    #allocation4 [shape = 's32[2]{0}', space=sflag, size = 0x8, scoped, tag = 'scoped memory for tpu_custom_call.1']
    #allocation5 [shape = 'u8[143360]{0}', space=vmem, size = 0x23000, scoped, tag = 'input window, operand 1, single buffered']
    #allocation6 [shape = 's32[1]{0}', space=sflag, size = 0x4, scoped, tag = 'scoped memory for tpu_custom_call.1']
    #allocation7 [shape = 'u8[2654208]{0}', space=vmem, size = 0x288000, scoped, tag = 'input window, operand 2']
    #allocation8 [shape = 'u8[18432]{0}', space=vmem, size = 0x4800, scoped, tag = 'input window, operand 3']
    #allocation9 [shape = 'u8[516096]{0}', space=vmem, size = 0x7e000, scoped, tag = 'output window, operand 0']
    %9 = vsyncpa [#allocation3], 0
    %10 = vsyncpa [#allocation6], 0
    %11 = vsyncpa [#allocation4], 0
    %s12 = scalar_lea.sflag [#allocation4], 1
    %13 = vsyncpa %s12, 0
    loop: start=0, step=1, limit=4
    $region2: #{tpu_custom_call.1} parent=1 // loop_pre_header
      _
    $region3: #{tpu_custom_call.1} parent=1 // loop_header
      %s15 = sphi 0, %s19
      %p16 = scmp.ge.s32.totalorder %s15, 4
      %s23 = sphi 0, %s23
      %s25 = sphi 0, %s23
      %s26 = sphi 0, %s25
      %s40 = sphi 0, %s26
      %s44 = sphi 0, %s44
      %s46 = sphi 0, %s44
      %s47 = sphi 0, %s46
      %s61 = sphi 0, %s47
      %s67 = sphi 0, %s69
      %s70 = sphi 0, %s67
      %s71 = sphi 0, %s70
      %s87 = sphi 0, %s71
      %s93 = sphi 0, %s95
      %s96 = sphi 0, %s93
      %s97 = sphi 0, %s96
      %s113 = sphi 0, %s97
      %s119 = sphi 0, %s121
      %s122 = sphi 0, %s119
      %s123 = sphi 0, %s122
      %s139 = sphi 0, %s123
    $region4: #{tpu_custom_call.1} parent=1 // loop_header_branch
      %18 = sbr.rel (%p16) target = $region8
    $region5: #{tpu_custom_call.1} parent=1 // loop_body
      %s20 = ssub.s32 %s15, 1
      %s21 = ssub.s32 %s15, 2
      %s22 = sadd.s32 %s15, 1
      %s24 = sadd.s32 %s23, 1
      %p27 = scmp.eq.s32.totalorder %s15, 1
      %p28 = scmp.ne.s32.totalorder %s23, %s25
      %p29 = scmp.eq.s32.totalorder %s15, 0
      %p30 = por %p28, %p29
      %p31 = scmp.ne.s32.totalorder %s23, %s25
      %p32 = scmp.eq.s32.totalorder %s20, 1
      %p33 = por %p31, %p32
      %p34 = scmp.ne.s32.totalorder %s25, %s26
      %p35 = scmp.eq.s32.totalorder %s20, 0
      %p36 = por %p34, %p35
      %p37 = scmp.ne.s32.totalorder %s25, %s26
      %p38 = scmp.eq.s32.totalorder %s21, 1
      %p39 = por %p37, %p38
      %p41 = scmp.ne.s32.totalorder %s26, %s40
      %p42 = scmp.eq.s32.totalorder %s21, 0
      %p43 = por %p41, %p42
      %s45 = sadd.s32 %s44, 1
      %p48 = scmp.eq.s32.totalorder %s15, 1
      %p49 = scmp.ne.s32.totalorder %s44, %s46
      %p50 = scmp.eq.s32.totalorder %s15, 0
      %p51 = por %p49, %p50
      %p52 = scmp.ne.s32.totalorder %s44, %s46
      %p53 = scmp.eq.s32.totalorder %s20, 1
      %p54 = por %p52, %p53
      %p55 = scmp.ne.s32.totalorder %s46, %s47
      %p56 = scmp.eq.s32.totalorder %s20, 0
      %p57 = por %p55, %p56
      %p58 = scmp.ne.s32.totalorder %s46, %s47
      %p59 = scmp.eq.s32.totalorder %s21, 1
      %p60 = por %p58, %p59
      %p62 = scmp.ne.s32.totalorder %s47, %s61
      %p63 = scmp.eq.s32.totalorder %s21, 0
      %p64 = por %p62, %p63
      %s65 = ssub.s32 %s15, %s22
      %p66 = scmp.eq.s32.totalorder %s65, 0
      %s68 = sadd.s32 %s67, 1
      %s69 = scalar_select %p66, %s67, %s68
      %p72 = pneg %p66
      %p73 = scmp.eq.s32.totalorder %s15, 1
      %p74 = por %p72, %p73
      %p75 = scmp.ne.s32.totalorder %s67, %s70
      %p76 = scmp.eq.s32.totalorder %s15, 0
      %p77 = por %p75, %p76
      %p78 = scmp.ne.s32.totalorder %s67, %s70
      %p79 = scmp.eq.s32.totalorder %s20, 1
      %p80 = por %p78, %p79
      %p81 = scmp.ne.s32.totalorder %s70, %s71
      %p82 = scmp.eq.s32.totalorder %s20, 0
      %p83 = por %p81, %p82
      %p84 = scmp.ne.s32.totalorder %s70, %s71
      %p85 = scmp.eq.s32.totalorder %s21, 1
      %p86 = por %p84, %p85
      %p88 = scmp.ne.s32.totalorder %s71, %s87
      %p89 = scmp.eq.s32.totalorder %s21, 0
      %p90 = por %p88, %p89
      %s91 = ssub.s32 %s15, %s22
      %p92 = scmp.eq.s32.totalorder %s91, 0
      %s94 = sadd.s32 %s93, 1
      %s95 = scalar_select %p92, %s93, %s94
      %p98 = pneg %p92
      %p99 = scmp.eq.s32.totalorder %s15, 1
      %p100 = por %p98, %p99
      %p101 = scmp.ne.s32.totalorder %s93, %s96
      %p102 = scmp.eq.s32.totalorder %s15, 0
      %p103 = por %p101, %p102
      %p104 = scmp.ne.s32.totalorder %s93, %s96
      %p105 = scmp.eq.s32.totalorder %s20, 1
      %p106 = por %p104, %p105
      %p107 = scmp.ne.s32.totalorder %s96, %s97
      %p108 = scmp.eq.s32.totalorder %s20, 0
      %p109 = por %p107, %p108
      %p110 = scmp.ne.s32.totalorder %s96, %s97
      %p111 = scmp.eq.s32.totalorder %s21, 1
      %p112 = por %p110, %p111
      %p114 = scmp.ne.s32.totalorder %s97, %s113
      %p115 = scmp.eq.s32.totalorder %s21, 0
      %p116 = por %p114, %p115
      %s117 = ssub.s32 %s15, %s22
      %p118 = scmp.eq.s32.totalorder %s117, 0
      %s120 = sadd.s32 %s119, 1
      %s121 = scalar_select %p118, %s119, %s120
      %p124 = pneg %p118
      %p125 = scmp.eq.s32.totalorder %s15, 1
      %p126 = por %p124, %p125
      %p127 = scmp.ne.s32.totalorder %s119, %s122
      %p128 = scmp.eq.s32.totalorder %s15, 0
      %p129 = por %p127, %p128
      %p130 = scmp.ne.s32.totalorder %s119, %s122
      %p131 = scmp.eq.s32.totalorder %s20, 1
      %p132 = por %p130, %p131
      %p133 = scmp.ne.s32.totalorder %s122, %s123
      %p134 = scmp.eq.s32.totalorder %s20, 0
      %p135 = por %p133, %p134
      %p136 = scmp.ne.s32.totalorder %s122, %s123
      %p137 = scmp.eq.s32.totalorder %s21, 1
      %p138 = por %p136, %p137
      %p140 = scmp.ne.s32.totalorder %s123, %s139
      %p141 = scmp.eq.s32.totalorder %s21, 0
      %p142 = por %p140, %p141
      %p143 = scmp.le.s32.totalorder 1, %s15
      %p144 = scmp.lt.s32.totalorder %s15, 3
      %p145 = pnand %p143, %p144
      %p146 = pneg %p145
      // Predicated region
      $region9: #{tpu_custom_call.1} parent=5 // pred_check
        _
      $region10: #{tpu_custom_call.1} parent=5 // pred_check_branch
        %148 = sbr.rel (%p145) target = $region12
      $region11: #{tpu_custom_call.1} parent=5 // pred_region
        %s149 = ssub.s32 %s15, 1
        // Predicated region
        $region13: #{tpu_custom_call.1} parent=11 // pred_check
          %p150 = pneg %p36
        $region14: #{tpu_custom_call.1} parent=11 // pred_check_branch
          %152 = sbr.rel (%p150) target = $region16
        $region15: #{tpu_custom_call.1} parent=11 // pred_region
          %s154 = ssub.s32 4480, 4480
          %155 = vsyncadd [#allocation3], %s154
          %s156 = sshll.u32 [#allocation2], 4
          %s157 = int_to_ptr.vmem [resolvable:$true] %s156
          %162 = dma.hbm_to_vmem [thread:$0]  %s0, 4480, %s157, [#allocation3], 640, 640, 40
        $region16: #{tpu_custom_call.1} parent=11 // pred_fallthru
          _
        // Predicated region
        $region17: #{tpu_custom_call.1} parent=11 // pred_check
          %p163 = pneg %p57
        $region18: #{tpu_custom_call.1} parent=11 // pred_check_branch
          %165 = sbr.rel (%p163) target = $region20
        $region19: #{tpu_custom_call.1} parent=11 // pred_region
          %s167 = ssub.s32 4480, 4480
          %168 = vsyncadd [#allocation6], %s167
          %s169 = sshll.u32 [#allocation5], 4
          %s170 = int_to_ptr.vmem [resolvable:$true] %s169
          %175 = dma.hbm_to_vmem [thread:$0]  %s1, 4480, %s170, [#allocation6], 640, 640, 40
        $region20: #{tpu_custom_call.1} parent=11 // pred_fallthru
          _
      $region12: #{tpu_custom_call.1} parent=5 // pred_fallthru
        _
      %p176 = scmp.lt.s32.totalorder %s15, 2
      // Predicated region
      $region21: #{tpu_custom_call.1} parent=5 // pred_check
        %p177 = pneg %p176
      $region22: #{tpu_custom_call.1} parent=5 // pred_check_branch
        %179 = sbr.rel (%p177) target = $region24
      $region23: #{tpu_custom_call.1} parent=5 // pred_region
        // Predicated region
        $region25: #{tpu_custom_call.1} parent=23 // pred_check
          %p180 = pneg %p77
        $region26: #{tpu_custom_call.1} parent=23 // pred_check_branch
          %182 = sbr.rel (%p180) target = $region28
        $region27: #{tpu_custom_call.1} parent=23 // pred_region
          %s183 = sand.u32 %s15, 1
          %s184 = scalar_lea.sflag [#allocation3], %s183
          %s185 = sand.u32 %s67, 1
          %s186 = smul.addr %s185, 2592
          %s187 = scalar_lea.vmem [#allocation7], %s186
          %s188 = smul.u32 9, %s15
          %s190 = ssub.s32 41472, 41472
          %191 = vsyncadd %s184, %s190
          %s192 = smul.addr %s188, 64
          %s193 = scalar_lea.hbm %s2, %s192
          %s194 = sshll.u32 %s187, 4
          %s195 = int_to_ptr.vmem [resolvable:$true] %s194
          %200 = dma.hbm_to_vmem [thread:$0]  %s193, 41472, %s195, %s184, 1152, 576, 36
        $region28: #{tpu_custom_call.1} parent=23 // pred_fallthru
          _
        // Predicated region
        $region29: #{tpu_custom_call.1} parent=23 // pred_check
          %p201 = pneg %p103
        $region30: #{tpu_custom_call.1} parent=23 // pred_check_branch
          %203 = sbr.rel (%p201) target = $region32
        $region31: #{tpu_custom_call.1} parent=23 // pred_region
          %s204 = sand.u32 %s15, 1
          %s205 = scalar_lea.sflag [#allocation3], %s204
          %s206 = sand.u32 %s93, 1
          %s207 = smul.addr %s206, 18
          %s208 = scalar_lea.vmem [#allocation8], %s207
          %s209 = smul.u32 9, %s15
          %s211 = ssub.s32 288, 288
          %212 = vsyncadd %s205, %s211
          %s213 = smul.addr %s209, 32
          %s214 = scalar_lea.hbm %s3, %s213
          %s216 = sshll.u32 %s208, 4
          %s217 = int_to_ptr.vmem [resolvable:$true] %s216
          %219 = dma.hbm_to_vmem [thread:$0]  %s214, 288, %s217, %s205
        $region32: #{tpu_custom_call.1} parent=23 // pred_fallthru
          _
      $region24: #{tpu_custom_call.1} parent=5 // pred_fallthru
        _
      %p220 = scmp.le.s32.totalorder 1, %s15
      %p221 = scmp.lt.s32.totalorder %s15, 3
      %p222 = pnand %p220, %p221
      %p223 = pneg %p222
      // Predicated region
      $region33: #{tpu_custom_call.1} parent=5 // pred_check
        _
      $region34: #{tpu_custom_call.1} parent=5 // pred_check_branch
        %225 = sbr.rel (%p222) target = $region36
      $region35: #{tpu_custom_call.1} parent=5 // pred_region
        %s226 = ssub.s32 %s15, 1
        // Predicated region
        $region37: #{tpu_custom_call.1} parent=35 // pred_check
          %p227 = pneg %p36
        $region38: #{tpu_custom_call.1} parent=35 // pred_check_branch
          %229 = sbr.rel (%p227) target = $region40
        $region39: #{tpu_custom_call.1} parent=35 // pred_region
          %230 = dma.done [#allocation3], 4480
        $region40: #{tpu_custom_call.1} parent=35 // pred_fallthru
          _
        // Predicated region
        $region41: #{tpu_custom_call.1} parent=35 // pred_check
          %p231 = pneg %p57
        $region42: #{tpu_custom_call.1} parent=35 // pred_check_branch
          %233 = sbr.rel (%p231) target = $region44
        $region43: #{tpu_custom_call.1} parent=35 // pred_region
          %234 = dma.done [#allocation6], 4480
        $region44: #{tpu_custom_call.1} parent=35 // pred_fallthru
          _
        %s235 = sand.u32 %s20, 1
        %s236 = scalar_lea.sflag [#allocation3], %s235
        %s237 = sand.u32 %s70, 1
        %s238 = smul.addr %s237, 2592
        %s239 = scalar_lea.vmem [#allocation7], %s238
        // Predicated region
        $region45: #{tpu_custom_call.1} parent=35 // pred_check
          %p240 = pneg %p83
        $region46: #{tpu_custom_call.1} parent=35 // pred_check_branch
          %242 = sbr.rel (%p240) target = $region48
        $region47: #{tpu_custom_call.1} parent=35 // pred_region
          %243 = dma.done %s236, 41472
        $region48: #{tpu_custom_call.1} parent=35 // pred_fallthru
          _
        %s244 = sand.u32 %s20, 1
        %s245 = scalar_lea.sflag [#allocation3], %s244
        %s246 = sand.u32 %s96, 1
        %s247 = smul.addr %s246, 18
        %s248 = scalar_lea.vmem [#allocation8], %s247
        // Predicated region
        $region49: #{tpu_custom_call.1} parent=35 // pred_check
          %p249 = pneg %p109
        $region50: #{tpu_custom_call.1} parent=35 // pred_check_branch
          %251 = sbr.rel (%p249) target = $region52
        $region51: #{tpu_custom_call.1} parent=35 // pred_region
          %252 = dma.done %s245, 288
        $region52: #{tpu_custom_call.1} parent=35 // pred_fallthru
          _
        %p253 = pneg %p36
        %p254 = pneg %p33
        %p255 = pneg %p57
        %p256 = pneg %p54
        %s257 = sand.u32 %s20, 1
        %s258 = scalar_lea.sflag [#allocation3], %s257
        %s259 = sand.u32 %s70, 1
        %s260 = smul.addr %s259, 2592
        %s261 = scalar_lea.vmem [#allocation7], %s260
        %p262 = pneg %p83
        %p263 = pneg %p80
        %s264 = sand.u32 %s20, 1
        %s265 = scalar_lea.sflag [#allocation3], %s264
        %s266 = sand.u32 %s96, 1
        %s267 = smul.addr %s266, 18
        %s268 = scalar_lea.vmem [#allocation8], %s267
        %p269 = pneg %p109
        %p270 = pneg %p106
        %p271 = pneg %p135
        %p272 = pneg %p132
        %s273 = sand.u32 %s122, 1
        %s274 = scalar_lea.sflag [#allocation4], %s273
        %s275 = sand.u32 %s122, 1
        %s276 = smul.addr %s275, 504
        %s277 = scalar_lea.vmem [#allocation9], %s276
        %s278 = smul.u32 9, %s20
        %s279 = smul.u32 9, %s20
        %s280 = smul.u32 9, %s20
        %v282 = vld [vmem:[#allocation2] sm:$0xff]
        %v283 = vld [vmem:[#allocation2 + $0x8] sm:$0xff]
        %v284 = vld [vmem:[#allocation2 + $0x10] sm:$0xff]
        %v285 = vld [vmem:[#allocation2 + $0x18] sm:$0xff]
        %v286 = vld [vmem:[#allocation2 + $0x20] sm:$0xff]
        %v287 = vld [vmem:[#allocation2 + $0x28] sm:$0xff]
        %v288 = vld [vmem:[#allocation2 + $0x30] sm:$0xff]
        %v289 = vld [vmem:[#allocation2 + $0x38] sm:$0xff]
        %v290 = vld [vmem:[#allocation2 + $0x40] sm:$0xff]
        %v291 = vld [vmem:[#allocation2 + $0x48] sm:$0xff]
        %v292 = vld [vmem:[#allocation2 + $0x50] sm:$0xff]
        %v293 = vld [vmem:[#allocation2 + $0x58] sm:$0xff]
        %v294 = vld [vmem:[#allocation2 + $0x60] sm:$0xff]
        %v295 = vld [vmem:[#allocation2 + $0x68] sm:$0xff]
        %v296 = vld [vmem:[#allocation2 + $0x70] sm:$0xff]
        %v297 = vld [vmem:[#allocation2 + $0x78] sm:$0xff]
        %v298 = vld [vmem:[#allocation2 + $0x80] sm:$0xff]
        %v299 = vld [vmem:[#allocation2 + $0x88] sm:$0xff]
        %v300 = vld [vmem:[#allocation2 + $0x90] sm:$0xff]
        %v301 = vld [vmem:[#allocation2 + $0x98] sm:$0xff]
        %v302 = vld [vmem:[#allocation2 + $0xa0] sm:$0xff]
        %v303 = vld [vmem:[#allocation2 + $0xa8] sm:$0xff]
        %v304 = vld [vmem:[#allocation2 + $0xb0] sm:$0xff]
        %v305 = vld [vmem:[#allocation2 + $0xb8] sm:$0xff]
        %v306 = vld [vmem:[#allocation2 + $0xc0] sm:$0xff]
        %v307 = vld [vmem:[#allocation2 + $0xc8] sm:$0xff]
        %v308 = vld [vmem:[#allocation2 + $0xd0] sm:$0xff]
        %v309 = vld [vmem:[#allocation2 + $0xd8] sm:$0xff]
        %v310 = vld [vmem:[#allocation2 + $0xe0] sm:$0xff]
        %v311 = vld [vmem:[#allocation2 + $0xe8] sm:$0xff]
        %v312 = vld [vmem:[#allocation2 + $0xf0] sm:$0x1]
        %v313 = vld [vmem:[#allocation2 + $0xf8] sm:$0x1]
        %v314 = vld [vmem:[#allocation2 + $0x100] sm:$0x1]
        %v315 = vld [vmem:[#allocation2 + $0x108] sm:$0x1]
        %v316 = vld [vmem:[#allocation2 + $0x110] sm:$0x1]
        %v317 = vld [vmem:[#allocation5] sm:$0xff]
        %v318 = vld [vmem:[#allocation5 + $0x8] sm:$0xff]
        %v319 = vld [vmem:[#allocation5 + $0x10] sm:$0xff]
        %v320 = vld [vmem:[#allocation5 + $0x18] sm:$0xff]
        %v321 = vld [vmem:[#allocation5 + $0x20] sm:$0xff]
        %v322 = vld [vmem:[#allocation5 + $0x28] sm:$0xff]
        %v323 = vld [vmem:[#allocation5 + $0x30] sm:$0xff]
        %v324 = vld [vmem:[#allocation5 + $0x38] sm:$0xff]
        %v325 = vld [vmem:[#allocation5 + $0x40] sm:$0xff]
        %v326 = vld [vmem:[#allocation5 + $0x48] sm:$0xff]
        %v327 = vld [vmem:[#allocation5 + $0x50] sm:$0xff]
        %v328 = vld [vmem:[#allocation5 + $0x58] sm:$0xff]
        %v329 = vld [vmem:[#allocation5 + $0x60] sm:$0xff]
        %v330 = vld [vmem:[#allocation5 + $0x68] sm:$0xff]
        %v331 = vld [vmem:[#allocation5 + $0x70] sm:$0xff]
        %v332 = vld [vmem:[#allocation5 + $0x78] sm:$0xff]
        %v333 = vld [vmem:[#allocation5 + $0x80] sm:$0xff]
        %v334 = vld [vmem:[#allocation5 + $0x88] sm:$0xff]
        %v335 = vld [vmem:[#allocation5 + $0x90] sm:$0xff]
        %v336 = vld [vmem:[#allocation5 + $0x98] sm:$0xff]
        %v337 = vld [vmem:[#allocation5 + $0xa0] sm:$0xff]
        %v338 = vld [vmem:[#allocation5 + $0xa8] sm:$0xff]
        %v339 = vld [vmem:[#allocation5 + $0xb0] sm:$0xff]
        %v340 = vld [vmem:[#allocation5 + $0xb8] sm:$0xff]
        %v341 = vld [vmem:[#allocation5 + $0xc0] sm:$0xff]
        %v342 = vld [vmem:[#allocation5 + $0xc8] sm:$0xff]
        %v343 = vld [vmem:[#allocation5 + $0xd0] sm:$0xff]
        %v344 = vld [vmem:[#allocation5 + $0xd8] sm:$0xff]
        %v345 = vld [vmem:[#allocation5 + $0xe0] sm:$0xff]
        %v346 = vld [vmem:[#allocation5 + $0xe8] sm:$0xff]
        %v347 = vld [vmem:[#allocation5 + $0xf0] sm:$0x1]
        %v348 = vld [vmem:[#allocation5 + $0xf8] sm:$0x1]
        %v349 = vld [vmem:[#allocation5 + $0x100] sm:$0x1]
        %v350 = vld [vmem:[#allocation5 + $0x108] sm:$0x1]
        %v351 = vld [vmem:[#allocation5 + $0x110] sm:$0x1]
        %v352 = vadd.f32 %v282, %v317
        %v353 = vadd.f32 %v283, %v318
        %v354 = vadd.f32 %v284, %v319
        %v355 = vadd.f32 %v285, %v320
        %v356 = vadd.f32 %v286, %v321
        %v357 = vadd.f32 %v287, %v322
        %v358 = vadd.f32 %v288, %v323
        %v359 = vadd.f32 %v289, %v324
        %v360 = vadd.f32 %v290, %v325
        %v361 = vadd.f32 %v291, %v326
        %v362 = vadd.f32 %v292, %v327
        %v363 = vadd.f32 %v293, %v328
        %v364 = vadd.f32 %v294, %v329
        %v365 = vadd.f32 %v295, %v330
        %v366 = vadd.f32 %v296, %v331
        %v367 = vadd.f32 %v297, %v332
        %v368 = vadd.f32 %v298, %v333
        %v369 = vadd.f32 %v299, %v334
        %v370 = vadd.f32 %v300, %v335
        %v371 = vadd.f32 %v301, %v336
        %v372 = vadd.f32 %v302, %v337
        %v373 = vadd.f32 %v303, %v338
        %v374 = vadd.f32 %v304, %v339
        %v375 = vadd.f32 %v305, %v340
        %v376 = vadd.f32 %v306, %v341
        %v377 = vadd.f32 %v307, %v342
        %v378 = vadd.f32 %v308, %v343
        %v379 = vadd.f32 %v309, %v344
        %v380 = vadd.f32 %v310, %v345
        %v381 = vadd.f32 %v311, %v346
        %v382 = vadd.f32 %v312, %v347
        %v383 = vadd.f32 %v313, %v348
        %v384 = vadd.f32 %v314, %v349
        %v385 = vadd.f32 %v315, %v350
        %v386 = vadd.f32 %v316, %v351
        %v387 = vpack.c.bf16 %v357, %v352
        %v388 = vpack.c.bf16 %v358, %v353
        %v389 = vpack.c.bf16 %v359, %v354
        %v390 = vpack.c.bf16 %v360, %v355
        %v391 = vpack.c.bf16 %v361, %v356
        %v392 = vpack.c.bf16 %v367, %v362
        %v393 = vpack.c.bf16 %v368, %v363
        %v394 = vpack.c.bf16 %v369, %v364
        %v395 = vpack.c.bf16 %v370, %v365
        %v396 = vpack.c.bf16 %v371, %v366
        %v397 = vpack.c.bf16 %v377, %v372
        %v398 = vpack.c.bf16 %v378, %v373
        %v399 = vpack.c.bf16 %v379, %v374
        %v400 = vpack.c.bf16 %v380, %v375
        %v401 = vpack.c.bf16 %v381, %v376
        %v402 = vpack.c.bf16 %v382, %v382
        %v403 = vpack.c.bf16 %v383, %v383
        %v404 = vpack.c.bf16 %v384, %v384
        %v405 = vpack.c.bf16 %v385, %v385
        %v406 = vpack.c.bf16 %v386, %v386
        %v407 = vld [vmem:[%s239] sm:$0xff]
        %v408 = vld [vmem:[%s239 + $0x8] sm:$0xff]
        %v409 = vld [vmem:[%s239 + $0x10] sm:$0xff]
        %v410 = vld [vmem:[%s239 + $0x18] sm:$0xff]
        %v411 = vld [vmem:[%s239 + $0x20] sm:$0xf]
        %v412 = vld [vmem:[%s239 + $0x24] sm:$0xff]
        %v413 = vld [vmem:[%s239 + $0x2c] sm:$0xff]
        %v414 = vld [vmem:[%s239 + $0x34] sm:$0xff]
        %v415 = vld [vmem:[%s239 + $0x3c] sm:$0xff]
        %v416 = vld [vmem:[%s239 + $0x44] sm:$0xf]
        %v417 = vld [vmem:[%s239 + $0x48] sm:$0xff]
        %v418 = vld [vmem:[%s239 + $0x50] sm:$0xff]
        %v419 = vld [vmem:[%s239 + $0x58] sm:$0xff]
        %v420 = vld [vmem:[%s239 + $0x60] sm:$0xff]
        %v421 = vld [vmem:[%s239 + $0x68] sm:$0xf]
        %v422 = vld [vmem:[%s239 + $0x6c] sm:$0xff]
        %v423 = vld [vmem:[%s239 + $0x74] sm:$0xff]
        %v424 = vld [vmem:[%s239 + $0x7c] sm:$0xff]
        %v425 = vld [vmem:[%s239 + $0x84] sm:$0xff]
        %v426 = vld [vmem:[%s239 + $0x8c] sm:$0xf]
        %v427 = vld [vmem:[%s239 + $0x90] sm:$0xff]
        %v428 = vld [vmem:[%s239 + $0x98] sm:$0xff]
        %v429 = vld [vmem:[%s239 + $0xa0] sm:$0xff]
        %v430 = vld [vmem:[%s239 + $0xa8] sm:$0xff]
        %v431 = vld [vmem:[%s239 + $0xb0] sm:$0xf]
        %v432 = vld [vmem:[%s239 + $0xb4] sm:$0xff]
        %v433 = vld [vmem:[%s239 + $0xbc] sm:$0xff]
        %v434 = vld [vmem:[%s239 + $0xc4] sm:$0xff]
        %v435 = vld [vmem:[%s239 + $0xcc] sm:$0xff]
        %v436 = vld [vmem:[%s239 + $0xd4] sm:$0xf]
        %v437 = vld [vmem:[%s239 + $0xd8] sm:$0xff]
        %v438 = vld [vmem:[%s239 + $0xe0] sm:$0xff]
        %v439 = vld [vmem:[%s239 + $0xe8] sm:$0xff]
        %v440 = vld [vmem:[%s239 + $0xf0] sm:$0xff]
        %v441 = vld [vmem:[%s239 + $0xf8] sm:$0xf]
        %v442 = vld [vmem:[%s239 + $0xfc] sm:$0xff]
        %v443 = vld [vmem:[%s239 + $0x104] sm:$0xff]
        %v444 = vld [vmem:[%s239 + $0x10c] sm:$0xff]
        %v445 = vld [vmem:[%s239 + $0x114] sm:$0xff]
        %v446 = vld [vmem:[%s239 + $0x11c] sm:$0xf]
        %v447 = vld [vmem:[%s239 + $0x120] sm:$0xff]
        %v448 = vld [vmem:[%s239 + $0x128] sm:$0xff]
        %v449 = vld [vmem:[%s239 + $0x130] sm:$0xff]
        %v450 = vld [vmem:[%s239 + $0x138] sm:$0xff]
        %v451 = vld [vmem:[%s239 + $0x140] sm:$0xf]
        %v452 = vld [vmem:[%s239 + $0x144] sm:$0xff]
        %v453 = vld [vmem:[%s239 + $0x14c] sm:$0xff]
        %v454 = vld [vmem:[%s239 + $0x154] sm:$0xff]
        %v455 = vld [vmem:[%s239 + $0x15c] sm:$0xff]
        %v456 = vld [vmem:[%s239 + $0x164] sm:$0xf]
        %v457 = vld [vmem:[%s239 + $0x168] sm:$0xff]
        %v458 = vld [vmem:[%s239 + $0x170] sm:$0xff]
        %v459 = vld [vmem:[%s239 + $0x178] sm:$0xff]
        %v460 = vld [vmem:[%s239 + $0x180] sm:$0xff]
        %v461 = vld [vmem:[%s239 + $0x188] sm:$0xf]
        %v462 = vld [vmem:[%s239 + $0x18c] sm:$0xff]
        %v463 = vld [vmem:[%s239 + $0x194] sm:$0xff]
        %v464 = vld [vmem:[%s239 + $0x19c] sm:$0xff]
        %v465 = vld [vmem:[%s239 + $0x1a4] sm:$0xff]
        %v466 = vld [vmem:[%s239 + $0x1ac] sm:$0xf]
        %v467 = vld [vmem:[%s239 + $0x1b0] sm:$0xff]
        %v468 = vld [vmem:[%s239 + $0x1b8] sm:$0xff]
        %v469 = vld [vmem:[%s239 + $0x1c0] sm:$0xff]
        %v470 = vld [vmem:[%s239 + $0x1c8] sm:$0xff]
        %v471 = vld [vmem:[%s239 + $0x1d0] sm:$0xf]
        %v472 = vld [vmem:[%s239 + $0x1d4] sm:$0xff]
        %v473 = vld [vmem:[%s239 + $0x1dc] sm:$0xff]
        %v474 = vld [vmem:[%s239 + $0x1e4] sm:$0xff]
        %v475 = vld [vmem:[%s239 + $0x1ec] sm:$0xff]
        %v476 = vld [vmem:[%s239 + $0x1f4] sm:$0xf]
        %v477 = vld [vmem:[%s239 + $0x1f8] sm:$0xff]
        %v478 = vld [vmem:[%s239 + $0x200] sm:$0xff]
        %v479 = vld [vmem:[%s239 + $0x208] sm:$0xff]
        %v480 = vld [vmem:[%s239 + $0x210] sm:$0xff]
        %v481 = vld [vmem:[%s239 + $0x218] sm:$0xf]
        %v482 = vld [vmem:[%s239 + $0x21c] sm:$0xff]
        %v483 = vld [vmem:[%s239 + $0x224] sm:$0xff]
        %v484 = vld [vmem:[%s239 + $0x22c] sm:$0xff]
        %v485 = vld [vmem:[%s239 + $0x234] sm:$0xff]
        %v486 = vld [vmem:[%s239 + $0x23c] sm:$0xf]
        %v487 = vld [vmem:[%s239 + $0x240] sm:$0xff]
        %v488 = vld [vmem:[%s239 + $0x248] sm:$0xff]
        %v489 = vld [vmem:[%s239 + $0x250] sm:$0xff]
        %v490 = vld [vmem:[%s239 + $0x258] sm:$0xff]
        %v491 = vld [vmem:[%s239 + $0x260] sm:$0xf]
        %v492 = vld [vmem:[%s239 + $0x264] sm:$0xff]
        %v493 = vld [vmem:[%s239 + $0x26c] sm:$0xff]
        %v494 = vld [vmem:[%s239 + $0x274] sm:$0xff]
        %v495 = vld [vmem:[%s239 + $0x27c] sm:$0xff]
        %v496 = vld [vmem:[%s239 + $0x284] sm:$0xf]
        %v497 = vld [vmem:[%s239 + $0x288] sm:$0xff]
        %v498 = vld [vmem:[%s239 + $0x290] sm:$0xff]
        %v499 = vld [vmem:[%s239 + $0x298] sm:$0xff]
        %v500 = vld [vmem:[%s239 + $0x2a0] sm:$0xff]
        %v501 = vld [vmem:[%s239 + $0x2a8] sm:$0xf]
        %v502 = vld [vmem:[%s239 + $0x2ac] sm:$0xff]
        %v503 = vld [vmem:[%s239 + $0x2b4] sm:$0xff]
        %v504 = vld [vmem:[%s239 + $0x2bc] sm:$0xff]
        %v505 = vld [vmem:[%s239 + $0x2c4] sm:$0xff]
        %v506 = vld [vmem:[%s239 + $0x2cc] sm:$0xf]
        %v507 = vld [vmem:[%s239 + $0x2d0] sm:$0xff]
        %v508 = vld [vmem:[%s239 + $0x2d8] sm:$0xff]
        %v509 = vld [vmem:[%s239 + $0x2e0] sm:$0xff]
        %v510 = vld [vmem:[%s239 + $0x2e8] sm:$0xff]
        %v511 = vld [vmem:[%s239 + $0x2f0] sm:$0xf]
        %v512 = vld [vmem:[%s239 + $0x2f4] sm:$0xff]
        %v513 = vld [vmem:[%s239 + $0x2fc] sm:$0xff]
        %v514 = vld [vmem:[%s239 + $0x304] sm:$0xff]
        %v515 = vld [vmem:[%s239 + $0x30c] sm:$0xff]
        %v516 = vld [vmem:[%s239 + $0x314] sm:$0xf]
        %v517 = vld [vmem:[%s239 + $0x318] sm:$0xff]
        %v518 = vld [vmem:[%s239 + $0x320] sm:$0xff]
        %v519 = vld [vmem:[%s239 + $0x328] sm:$0xff]
        %v520 = vld [vmem:[%s239 + $0x330] sm:$0xff]
        %v521 = vld [vmem:[%s239 + $0x338] sm:$0xf]
        %v522 = vld [vmem:[%s239 + $0x33c] sm:$0xff]
        %v523 = vld [vmem:[%s239 + $0x344] sm:$0xff]
        %v524 = vld [vmem:[%s239 + $0x34c] sm:$0xff]
        %v525 = vld [vmem:[%s239 + $0x354] sm:$0xff]
        %v526 = vld [vmem:[%s239 + $0x35c] sm:$0xf]
        %v527 = vld [vmem:[%s239 + $0x360] sm:$0xff]
        %v528 = vld [vmem:[%s239 + $0x368] sm:$0xff]
        %v529 = vld [vmem:[%s239 + $0x370] sm:$0xff]
        %v530 = vld [vmem:[%s239 + $0x378] sm:$0xff]
        %v531 = vld [vmem:[%s239 + $0x380] sm:$0xf]
        %v532 = vld [vmem:[%s239 + $0x384] sm:$0xff]
        %v533 = vld [vmem:[%s239 + $0x38c] sm:$0xff]
        %v534 = vld [vmem:[%s239 + $0x394] sm:$0xff]
        %v535 = vld [vmem:[%s239 + $0x39c] sm:$0xff]
        %v536 = vld [vmem:[%s239 + $0x3a4] sm:$0xf]
        %v537 = vld [vmem:[%s239 + $0x3a8] sm:$0xff]
        %v538 = vld [vmem:[%s239 + $0x3b0] sm:$0xff]
        %v539 = vld [vmem:[%s239 + $0x3b8] sm:$0xff]
        %v540 = vld [vmem:[%s239 + $0x3c0] sm:$0xff]
        %v541 = vld [vmem:[%s239 + $0x3c8] sm:$0xf]
        %v542 = vld [vmem:[%s239 + $0x3cc] sm:$0xff]
        %v543 = vld [vmem:[%s239 + $0x3d4] sm:$0xff]
        %v544 = vld [vmem:[%s239 + $0x3dc] sm:$0xff]
        %v545 = vld [vmem:[%s239 + $0x3e4] sm:$0xff]
        %v546 = vld [vmem:[%s239 + $0x3ec] sm:$0xf]
        %v547 = vld [vmem:[%s239 + $0x3f0] sm:$0xff]
        %v548 = vld [vmem:[%s239 + $0x3f8] sm:$0xff]
        %v549 = vld [vmem:[%s239 + $0x400] sm:$0xff]
        %v550 = vld [vmem:[%s239 + $0x408] sm:$0xff]
        %v551 = vld [vmem:[%s239 + $0x410] sm:$0xf]
        %v552 = vld [vmem:[%s239 + $0x414] sm:$0xff]
        %v553 = vld [vmem:[%s239 + $0x41c] sm:$0xff]
        %v554 = vld [vmem:[%s239 + $0x424] sm:$0xff]
        %v555 = vld [vmem:[%s239 + $0x42c] sm:$0xff]
        %v556 = vld [vmem:[%s239 + $0x434] sm:$0xf]
        %v557 = vld [vmem:[%s239 + $0x438] sm:$0xff]
        %v558 = vld [vmem:[%s239 + $0x440] sm:$0xff]
        %v559 = vld [vmem:[%s239 + $0x448] sm:$0xff]
        %v560 = vld [vmem:[%s239 + $0x450] sm:$0xff]
        %v561 = vld [vmem:[%s239 + $0x458] sm:$0xf]
        %v562 = vld [vmem:[%s239 + $0x45c] sm:$0xff]
        %v563 = vld [vmem:[%s239 + $0x464] sm:$0xff]
        %v564 = vld [vmem:[%s239 + $0x46c] sm:$0xff]
        %v565 = vld [vmem:[%s239 + $0x474] sm:$0xff]
        %v566 = vld [vmem:[%s239 + $0x47c] sm:$0xf]
        %v567 = vld [vmem:[%s239 + $0x480] sm:$0xff]
        %v568 = vld [vmem:[%s239 + $0x488] sm:$0xff]
        %v569 = vld [vmem:[%s239 + $0x490] sm:$0xff]
        %v570 = vld [vmem:[%s239 + $0x498] sm:$0xff]
        %v571 = vld [vmem:[%s239 + $0x4a0] sm:$0xf]
        %v572 = vld [vmem:[%s239 + $0x4a4] sm:$0xff]
        %v573 = vld [vmem:[%s239 + $0x4ac] sm:$0xff]
        %v574 = vld [vmem:[%s239 + $0x4b4] sm:$0xff]
        %v575 = vld [vmem:[%s239 + $0x4bc] sm:$0xff]
        %v576 = vld [vmem:[%s239 + $0x4c4] sm:$0xf]
        %v577 = vld [vmem:[%s239 + $0x4c8] sm:$0xff]
        %v578 = vld [vmem:[%s239 + $0x4d0] sm:$0xff]
        %v579 = vld [vmem:[%s239 + $0x4d8] sm:$0xff]
        %v580 = vld [vmem:[%s239 + $0x4e0] sm:$0xff]
        %v581 = vld [vmem:[%s239 + $0x4e8] sm:$0xf]
        %v582 = vld [vmem:[%s239 + $0x4ec] sm:$0xff]
        %v583 = vld [vmem:[%s239 + $0x4f4] sm:$0xff]
        %v584 = vld [vmem:[%s239 + $0x4fc] sm:$0xff]
        %v585 = vld [vmem:[%s239 + $0x504] sm:$0xff]
        %v586 = vld [vmem:[%s239 + $0x50c] sm:$0xf]
        %v587 = vld [vmem:[%s239 + $0x510] sm:$0xff]
        %v588 = vld [vmem:[%s239 + $0x518] sm:$0xff]
        %v589 = vld [vmem:[%s239 + $0x520] sm:$0xff]
        %v590 = vld [vmem:[%s239 + $0x528] sm:$0xff]
        %v591 = vld [vmem:[%s239 + $0x530] sm:$0xf]
        %v592 = vld [vmem:[%s239 + $0x534] sm:$0xff]
        %v593 = vld [vmem:[%s239 + $0x53c] sm:$0xff]
        %v594 = vld [vmem:[%s239 + $0x544] sm:$0xff]
        %v595 = vld [vmem:[%s239 + $0x54c] sm:$0xff]
        %v596 = vld [vmem:[%s239 + $0x554] sm:$0xf]
        %v597 = vld [vmem:[%s239 + $0x558] sm:$0xff]
        %v598 = vld [vmem:[%s239 + $0x560] sm:$0xff]
        %v599 = vld [vmem:[%s239 + $0x568] sm:$0xff]
        %v600 = vld [vmem:[%s239 + $0x570] sm:$0xff]
        %v601 = vld [vmem:[%s239 + $0x578] sm:$0xf]
        %v602 = vld [vmem:[%s239 + $0x57c] sm:$0xff]
        %v603 = vld [vmem:[%s239 + $0x584] sm:$0xff]
        %v604 = vld [vmem:[%s239 + $0x58c] sm:$0xff]
        %v605 = vld [vmem:[%s239 + $0x594] sm:$0xff]
        %v606 = vld [vmem:[%s239 + $0x59c] sm:$0xf]
        %v607 = vld [vmem:[%s239 + $0x5a0] sm:$0xff]
        %v608 = vld [vmem:[%s239 + $0x5a8] sm:$0xff]
        %v609 = vld [vmem:[%s239 + $0x5b0] sm:$0xff]
        %v610 = vld [vmem:[%s239 + $0x5b8] sm:$0xff]
        %v611 = vld [vmem:[%s239 + $0x5c0] sm:$0xf]
        %v612 = vld [vmem:[%s239 + $0x5c4] sm:$0xff]
        %v613 = vld [vmem:[%s239 + $0x5cc] sm:$0xff]
        %v614 = vld [vmem:[%s239 + $0x5d4] sm:$0xff]
        %v615 = vld [vmem:[%s239 + $0x5dc] sm:$0xff]
        %v616 = vld [vmem:[%s239 + $0x5e4] sm:$0xf]
        %v617 = vld [vmem:[%s239 + $0x5e8] sm:$0xff]
        %v618 = vld [vmem:[%s239 + $0x5f0] sm:$0xff]
        %v619 = vld [vmem:[%s239 + $0x5f8] sm:$0xff]
        %v620 = vld [vmem:[%s239 + $0x600] sm:$0xff]
        %v621 = vld [vmem:[%s239 + $0x608] sm:$0xf]
        %v622 = vld [vmem:[%s239 + $0x60c] sm:$0xff]
        %v623 = vld [vmem:[%s239 + $0x614] sm:$0xff]
        %v624 = vld [vmem:[%s239 + $0x61c] sm:$0xff]
        %v625 = vld [vmem:[%s239 + $0x624] sm:$0xff]
        %v626 = vld [vmem:[%s239 + $0x62c] sm:$0xf]
        %v627 = vld [vmem:[%s239 + $0x630] sm:$0xff]
        %v628 = vld [vmem:[%s239 + $0x638] sm:$0xff]
        %v629 = vld [vmem:[%s239 + $0x640] sm:$0xff]
        %v630 = vld [vmem:[%s239 + $0x648] sm:$0xff]
        %v631 = vld [vmem:[%s239 + $0x650] sm:$0xf]
        %v632 = vld [vmem:[%s239 + $0x654] sm:$0xff]
        %v633 = vld [vmem:[%s239 + $0x65c] sm:$0xff]
        %v634 = vld [vmem:[%s239 + $0x664] sm:$0xff]
        %v635 = vld [vmem:[%s239 + $0x66c] sm:$0xff]
        %v636 = vld [vmem:[%s239 + $0x674] sm:$0xf]
        %v637 = vld [vmem:[%s239 + $0x678] sm:$0xff]
        %v638 = vld [vmem:[%s239 + $0x680] sm:$0xff]
        %v639 = vld [vmem:[%s239 + $0x688] sm:$0xff]
        %v640 = vld [vmem:[%s239 + $0x690] sm:$0xff]
        %v641 = vld [vmem:[%s239 + $0x698] sm:$0xf]
        %v642 = vld [vmem:[%s239 + $0x69c] sm:$0xff]
        %v643 = vld [vmem:[%s239 + $0x6a4] sm:$0xff]
        %v644 = vld [vmem:[%s239 + $0x6ac] sm:$0xff]
        %v645 = vld [vmem:[%s239 + $0x6b4] sm:$0xff]
        %v646 = vld [vmem:[%s239 + $0x6bc] sm:$0xf]
        %v647 = vld [vmem:[%s239 + $0x6c0] sm:$0xff]
        %v648 = vld [vmem:[%s239 + $0x6c8] sm:$0xff]
        %v649 = vld [vmem:[%s239 + $0x6d0] sm:$0xff]
        %v650 = vld [vmem:[%s239 + $0x6d8] sm:$0xff]
        %v651 = vld [vmem:[%s239 + $0x6e0] sm:$0xf]
        %v652 = vld [vmem:[%s239 + $0x6e4] sm:$0xff]
        %v653 = vld [vmem:[%s239 + $0x6ec] sm:$0xff]
        %v654 = vld [vmem:[%s239 + $0x6f4] sm:$0xff]
        %v655 = vld [vmem:[%s239 + $0x6fc] sm:$0xff]
        %v656 = vld [vmem:[%s239 + $0x704] sm:$0xf]
        %v657 = vld [vmem:[%s239 + $0x708] sm:$0xff]
        %v658 = vld [vmem:[%s239 + $0x710] sm:$0xff]
        %v659 = vld [vmem:[%s239 + $0x718] sm:$0xff]
        %v660 = vld [vmem:[%s239 + $0x720] sm:$0xff]
        %v661 = vld [vmem:[%s239 + $0x728] sm:$0xf]
        %v662 = vld [vmem:[%s239 + $0x72c] sm:$0xff]
        %v663 = vld [vmem:[%s239 + $0x734] sm:$0xff]
        %v664 = vld [vmem:[%s239 + $0x73c] sm:$0xff]
        %v665 = vld [vmem:[%s239 + $0x744] sm:$0xff]
        %v666 = vld [vmem:[%s239 + $0x74c] sm:$0xf]
        %v667 = vld [vmem:[%s239 + $0x750] sm:$0xff]
        %v668 = vld [vmem:[%s239 + $0x758] sm:$0xff]
        %v669 = vld [vmem:[%s239 + $0x760] sm:$0xff]
        %v670 = vld [vmem:[%s239 + $0x768] sm:$0xff]
        %v671 = vld [vmem:[%s239 + $0x770] sm:$0xf]
        %v672 = vld [vmem:[%s239 + $0x774] sm:$0xff]
        %v673 = vld [vmem:[%s239 + $0x77c] sm:$0xff]
        %v674 = vld [vmem:[%s239 + $0x784] sm:$0xff]
        %v675 = vld [vmem:[%s239 + $0x78c] sm:$0xff]
        %v676 = vld [vmem:[%s239 + $0x794] sm:$0xf]
        %v677 = vld [vmem:[%s239 + $0x798] sm:$0xff]
        %v678 = vld [vmem:[%s239 + $0x7a0] sm:$0xff]
        %v679 = vld [vmem:[%s239 + $0x7a8] sm:$0xff]
        %v680 = vld [vmem:[%s239 + $0x7b0] sm:$0xff]
        %v681 = vld [vmem:[%s239 + $0x7b8] sm:$0xf]
        %v682 = vld [vmem:[%s239 + $0x7bc] sm:$0xff]
        %v683 = vld [vmem:[%s239 + $0x7c4] sm:$0xff]
        %v684 = vld [vmem:[%s239 + $0x7cc] sm:$0xff]
        %v685 = vld [vmem:[%s239 + $0x7d4] sm:$0xff]
        %v686 = vld [vmem:[%s239 + $0x7dc] sm:$0xf]
        %v687 = vld [vmem:[%s239 + $0x7e0] sm:$0xff]
        %v688 = vld [vmem:[%s239 + $0x7e8] sm:$0xff]
        %v689 = vld [vmem:[%s239 + $0x7f0] sm:$0xff]
        %v690 = vld [vmem:[%s239 + $0x7f8] sm:$0xff]
        %v691 = vld [vmem:[%s239 + $0x800] sm:$0xf]
        %v692 = vld [vmem:[%s239 + $0x804] sm:$0xff]
        %v693 = vld [vmem:[%s239 + $0x80c] sm:$0xff]
        %v694 = vld [vmem:[%s239 + $0x814] sm:$0xff]
        %v695 = vld [vmem:[%s239 + $0x81c] sm:$0xff]
        %v696 = vld [vmem:[%s239 + $0x824] sm:$0xf]
        %v697 = vld [vmem:[%s239 + $0x828] sm:$0xff]
        %v698 = vld [vmem:[%s239 + $0x830] sm:$0xff]
        %v699 = vld [vmem:[%s239 + $0x838] sm:$0xff]
        %v700 = vld [vmem:[%s239 + $0x840] sm:$0xff]
        %v701 = vld [vmem:[%s239 + $0x848] sm:$0xf]
        %v702 = vld [vmem:[%s239 + $0x84c] sm:$0xff]
        %v703 = vld [vmem:[%s239 + $0x854] sm:$0xff]
        %v704 = vld [vmem:[%s239 + $0x85c] sm:$0xff]
        %v705 = vld [vmem:[%s239 + $0x864] sm:$0xff]
        %v706 = vld [vmem:[%s239 + $0x86c] sm:$0xf]
        %v707 = vld [vmem:[%s239 + $0x870] sm:$0xff]
        %v708 = vld [vmem:[%s239 + $0x878] sm:$0xff]
        %v709 = vld [vmem:[%s239 + $0x880] sm:$0xff]
        %v710 = vld [vmem:[%s239 + $0x888] sm:$0xff]
        %v711 = vld [vmem:[%s239 + $0x890] sm:$0xf]
        %v712 = vld [vmem:[%s239 + $0x894] sm:$0xff]
        %v713 = vld [vmem:[%s239 + $0x89c] sm:$0xff]
        %v714 = vld [vmem:[%s239 + $0x8a4] sm:$0xff]
        %v715 = vld [vmem:[%s239 + $0x8ac] sm:$0xff]
        %v716 = vld [vmem:[%s239 + $0x8b4] sm:$0xf]
        %v717 = vld [vmem:[%s239 + $0x8b8] sm:$0xff]
        %v718 = vld [vmem:[%s239 + $0x8c0] sm:$0xff]
        %v719 = vld [vmem:[%s239 + $0x8c8] sm:$0xff]
        %v720 = vld [vmem:[%s239 + $0x8d0] sm:$0xff]
        %v721 = vld [vmem:[%s239 + $0x8d8] sm:$0xf]
        %v722 = vld [vmem:[%s239 + $0x8dc] sm:$0xff]
        %v723 = vld [vmem:[%s239 + $0x8e4] sm:$0xff]
        %v724 = vld [vmem:[%s239 + $0x8ec] sm:$0xff]
        %v725 = vld [vmem:[%s239 + $0x8f4] sm:$0xff]
        %v726 = vld [vmem:[%s239 + $0x8fc] sm:$0xf]
        %v727 = vld [vmem:[%s239 + $0x900] sm:$0xff]
        %v728 = vld [vmem:[%s239 + $0x908] sm:$0xff]
        %v729 = vld [vmem:[%s239 + $0x910] sm:$0xff]
        %v730 = vld [vmem:[%s239 + $0x918] sm:$0xff]
        %v731 = vld [vmem:[%s239 + $0x920] sm:$0xf]
        %v732 = vld [vmem:[%s239 + $0x924] sm:$0xff]
        %v733 = vld [vmem:[%s239 + $0x92c] sm:$0xff]
        %v734 = vld [vmem:[%s239 + $0x934] sm:$0xff]
        %v735 = vld [vmem:[%s239 + $0x93c] sm:$0xff]
        %v736 = vld [vmem:[%s239 + $0x944] sm:$0xf]
        %v737 = vld [vmem:[%s239 + $0x948] sm:$0xff]
        %v738 = vld [vmem:[%s239 + $0x950] sm:$0xff]
        %v739 = vld [vmem:[%s239 + $0x958] sm:$0xff]
        %v740 = vld [vmem:[%s239 + $0x960] sm:$0xff]
        %v741 = vld [vmem:[%s239 + $0x968] sm:$0xf]
        %v742 = vld [vmem:[%s239 + $0x96c] sm:$0xff]
        %v743 = vld [vmem:[%s239 + $0x974] sm:$0xff]
        %v744 = vld [vmem:[%s239 + $0x97c] sm:$0xff]
        %v745 = vld [vmem:[%s239 + $0x984] sm:$0xff]
        %v746 = vld [vmem:[%s239 + $0x98c] sm:$0xf]
        %v747 = vld [vmem:[%s239 + $0x990] sm:$0xff]
        %v748 = vld [vmem:[%s239 + $0x998] sm:$0xff]
        %v749 = vld [vmem:[%s239 + $0x9a0] sm:$0xff]
        %v750 = vld [vmem:[%s239 + $0x9a8] sm:$0xff]
        %v751 = vld [vmem:[%s239 + $0x9b0] sm:$0xf]
        %v752 = vld [vmem:[%s239 + $0x9b4] sm:$0xff]
        %v753 = vld [vmem:[%s239 + $0x9bc] sm:$0xff]
        %v754 = vld [vmem:[%s239 + $0x9c4] sm:$0xff]
        %v755 = vld [vmem:[%s239 + $0x9cc] sm:$0xff]
        %v756 = vld [vmem:[%s239 + $0x9d4] sm:$0xf]
        %v757 = vld [vmem:[%s239 + $0x9d8] sm:$0xff]
        %v758 = vld [vmem:[%s239 + $0x9e0] sm:$0xff]
        %v759 = vld [vmem:[%s239 + $0x9e8] sm:$0xff]
        %v760 = vld [vmem:[%s239 + $0x9f0] sm:$0xff]
        %v761 = vld [vmem:[%s239 + $0x9f8] sm:$0xf]
        %v762 = vld [vmem:[%s239 + $0x9fc] sm:$0xff]
        %v763 = vld [vmem:[%s239 + $0xa04] sm:$0xff]
        %v764 = vld [vmem:[%s239 + $0xa0c] sm:$0xff]
        %v765 = vld [vmem:[%s239 + $0xa14] sm:$0xff]
        %v766 = vld [vmem:[%s239 + $0xa1c] sm:$0xf]
        %v1127 = vunpack.c.l.b16 %v407
        %v1128 = vunpack.c.h.b16 %v407
        %v1129 = vunpack.c.l.b16 %v408
        %v1130 = vunpack.c.h.b16 %v408
        %v1131 = vunpack.c.l.b16 %v409
        %v1132 = vunpack.c.h.b16 %v409
        %v1133 = vunpack.c.l.b16 %v410
        %v1134 = vunpack.c.h.b16 %v410
        %v1135 = vunpack.c.l.b16 %v411
        %v1136 = vunpack.c.l.b16 %v412
        %v1137 = vunpack.c.h.b16 %v412
        %v1138 = vunpack.c.l.b16 %v413
        %v1139 = vunpack.c.h.b16 %v413
        %v1140 = vunpack.c.l.b16 %v414
        %v1141 = vunpack.c.h.b16 %v414
        %v1142 = vunpack.c.l.b16 %v415
        %v1143 = vunpack.c.h.b16 %v415
        %v1144 = vunpack.c.l.b16 %v416
        %v1145 = vunpack.c.l.b16 %v417
        %v1146 = vunpack.c.h.b16 %v417
        %v1147 = vunpack.c.l.b16 %v418
        %v1148 = vunpack.c.h.b16 %v418
        %v1149 = vunpack.c.l.b16 %v419
        %v1150 = vunpack.c.h.b16 %v419
        %v1151 = vunpack.c.l.b16 %v420
        %v1152 = vunpack.c.h.b16 %v420
        %v1153 = vunpack.c.l.b16 %v421
        %v1154 = vunpack.c.l.b16 %v422
        %v1155 = vunpack.c.h.b16 %v422
        %v1156 = vunpack.c.l.b16 %v423
        %v1157 = vunpack.c.h.b16 %v423
        %v1158 = vunpack.c.l.b16 %v424
        %v1159 = vunpack.c.h.b16 %v424
        %v1160 = vunpack.c.l.b16 %v425
        %v1161 = vunpack.c.h.b16 %v425
        %v1162 = vunpack.c.l.b16 %v426
        %v1163 = vunpack.c.l.b16 %v427
        %v1164 = vunpack.c.h.b16 %v427
        %v1165 = vunpack.c.l.b16 %v428
        %v1166 = vunpack.c.h.b16 %v428
        %v1167 = vunpack.c.l.b16 %v429
        %v1168 = vunpack.c.h.b16 %v429
        %v1169 = vunpack.c.l.b16 %v430
        %v1170 = vunpack.c.h.b16 %v430
        %v1171 = vunpack.c.l.b16 %v431
        %v1172 = vunpack.c.l.b16 %v432
        %v1173 = vunpack.c.h.b16 %v432
        %v1174 = vunpack.c.l.b16 %v433
        %v1175 = vunpack.c.h.b16 %v433
        %v1176 = vunpack.c.l.b16 %v434
        %v1177 = vunpack.c.h.b16 %v434
        %v1178 = vunpack.c.l.b16 %v435
        %v1179 = vunpack.c.h.b16 %v435
        %v1180 = vunpack.c.l.b16 %v436
        %v1181 = vunpack.c.l.b16 %v437
        %v1182 = vunpack.c.h.b16 %v437
        %v1183 = vunpack.c.l.b16 %v438
        %v1184 = vunpack.c.h.b16 %v438
        %v1185 = vunpack.c.l.b16 %v439
        %v1186 = vunpack.c.h.b16 %v439
        %v1187 = vunpack.c.l.b16 %v440
        %v1188 = vunpack.c.h.b16 %v440
        %v1189 = vunpack.c.l.b16 %v441
        %v1190 = vunpack.c.l.b16 %v442
        %v1191 = vunpack.c.h.b16 %v442
        %v1192 = vunpack.c.l.b16 %v443
        %v1193 = vunpack.c.h.b16 %v443
        %v1194 = vunpack.c.l.b16 %v444
        %v1195 = vunpack.c.h.b16 %v444
        %v1196 = vunpack.c.l.b16 %v445
        %v1197 = vunpack.c.h.b16 %v445
        %v1198 = vunpack.c.l.b16 %v446
        %v1199 = vunpack.c.l.b16 %v447
        %v1200 = vunpack.c.h.b16 %v447
        %v1201 = vunpack.c.l.b16 %v448
        %v1202 = vunpack.c.h.b16 %v448
        %v1203 = vunpack.c.l.b16 %v449
        %v1204 = vunpack.c.h.b16 %v449
        %v1205 = vunpack.c.l.b16 %v450
        %v1206 = vunpack.c.h.b16 %v450
        %v1207 = vunpack.c.l.b16 %v451
        %v1208 = vunpack.c.l.b16 %v452
        %v1209 = vunpack.c.h.b16 %v452
        %v1210 = vunpack.c.l.b16 %v453
        %v1211 = vunpack.c.h.b16 %v453
        %v1212 = vunpack.c.l.b16 %v454
        %v1213 = vunpack.c.h.b16 %v454
        %v1214 = vunpack.c.l.b16 %v455
        %v1215 = vunpack.c.h.b16 %v455
        %v1216 = vunpack.c.l.b16 %v456
        %v1217 = vunpack.c.l.b16 %v457
        %v1218 = vunpack.c.h.b16 %v457
        %v1219 = vunpack.c.l.b16 %v458
        %v1220 = vunpack.c.h.b16 %v458
        %v1221 = vunpack.c.l.b16 %v459
        %v1222 = vunpack.c.h.b16 %v459
        %v1223 = vunpack.c.l.b16 %v460
        %v1224 = vunpack.c.h.b16 %v460
        %v1225 = vunpack.c.l.b16 %v461
        %v1226 = vunpack.c.l.b16 %v462
        %v1227 = vunpack.c.h.b16 %v462
        %v1228 = vunpack.c.l.b16 %v463
        %v1229 = vunpack.c.h.b16 %v463
        %v1230 = vunpack.c.l.b16 %v464
        %v1231 = vunpack.c.h.b16 %v464
        %v1232 = vunpack.c.l.b16 %v465
        %v1233 = vunpack.c.h.b16 %v465
        %v1234 = vunpack.c.l.b16 %v466
        %v1235 = vunpack.c.l.b16 %v467
        %v1236 = vunpack.c.h.b16 %v467
        %v1237 = vunpack.c.l.b16 %v468
        %v1238 = vunpack.c.h.b16 %v468
        %v1239 = vunpack.c.l.b16 %v469
        %v1240 = vunpack.c.h.b16 %v469
        %v1241 = vunpack.c.l.b16 %v470
        %v1242 = vunpack.c.h.b16 %v470
        %v1243 = vunpack.c.l.b16 %v471
        %v1244 = vunpack.c.l.b16 %v472
        %v1245 = vunpack.c.h.b16 %v472
        %v1246 = vunpack.c.l.b16 %v473
        %v1247 = vunpack.c.h.b16 %v473
        %v1248 = vunpack.c.l.b16 %v474
        %v1249 = vunpack.c.h.b16 %v474
        %v1250 = vunpack.c.l.b16 %v475
        %v1251 = vunpack.c.h.b16 %v475
        %v1252 = vunpack.c.l.b16 %v476
        %v1253 = vunpack.c.l.b16 %v477
        %v1254 = vunpack.c.h.b16 %v477
        %v1255 = vunpack.c.l.b16 %v478
        %v1256 = vunpack.c.h.b16 %v478
        %v1257 = vunpack.c.l.b16 %v479
        %v1258 = vunpack.c.h.b16 %v479
        %v1259 = vunpack.c.l.b16 %v480
        %v1260 = vunpack.c.h.b16 %v480
        %v1261 = vunpack.c.l.b16 %v481
        %v1262 = vunpack.c.l.b16 %v482
        %v1263 = vunpack.c.h.b16 %v482
        %v1264 = vunpack.c.l.b16 %v483
        %v1265 = vunpack.c.h.b16 %v483
        %v1266 = vunpack.c.l.b16 %v484
        %v1267 = vunpack.c.h.b16 %v484
        %v1268 = vunpack.c.l.b16 %v485
        %v1269 = vunpack.c.h.b16 %v485
        %v1270 = vunpack.c.l.b16 %v486
        %v1271 = vunpack.c.l.b16 %v487
        %v1272 = vunpack.c.h.b16 %v487
        %v1273 = vunpack.c.l.b16 %v488
        %v1274 = vunpack.c.h.b16 %v488
        %v1275 = vunpack.c.l.b16 %v489
        %v1276 = vunpack.c.h.b16 %v489
        %v1277 = vunpack.c.l.b16 %v490
        %v1278 = vunpack.c.h.b16 %v490
        %v1279 = vunpack.c.l.b16 %v491
        %v1280 = vunpack.c.l.b16 %v492
        %v1281 = vunpack.c.h.b16 %v492
        %v1282 = vunpack.c.l.b16 %v493
        %v1283 = vunpack.c.h.b16 %v493
        %v1284 = vunpack.c.l.b16 %v494
        %v1285 = vunpack.c.h.b16 %v494
        %v1286 = vunpack.c.l.b16 %v495
        %v1287 = vunpack.c.h.b16 %v495
        %v1288 = vunpack.c.l.b16 %v496
        %v1289 = vunpack.c.l.b16 %v497
        %v1290 = vunpack.c.h.b16 %v497
        %v1291 = vunpack.c.l.b16 %v498
        %v1292 = vunpack.c.h.b16 %v498
        %v1293 = vunpack.c.l.b16 %v499
        %v1294 = vunpack.c.h.b16 %v499
        %v1295 = vunpack.c.l.b16 %v500
        %v1296 = vunpack.c.h.b16 %v500
        %v1297 = vunpack.c.l.b16 %v501
        %v1298 = vunpack.c.l.b16 %v502
        %v1299 = vunpack.c.h.b16 %v502
        %v1300 = vunpack.c.l.b16 %v503
        %v1301 = vunpack.c.h.b16 %v503
        %v1302 = vunpack.c.l.b16 %v504
        %v1303 = vunpack.c.h.b16 %v504
        %v1304 = vunpack.c.l.b16 %v505
        %v1305 = vunpack.c.h.b16 %v505
        %v1306 = vunpack.c.l.b16 %v506
        %v1307 = vunpack.c.l.b16 %v507
        %v1308 = vunpack.c.h.b16 %v507
        %v1309 = vunpack.c.l.b16 %v508
        %v1310 = vunpack.c.h.b16 %v508
        %v1311 = vunpack.c.l.b16 %v509
        %v1312 = vunpack.c.h.b16 %v509
        %v1313 = vunpack.c.l.b16 %v510
        %v1314 = vunpack.c.h.b16 %v510
        %v1315 = vunpack.c.l.b16 %v511
        %v1316 = vunpack.c.l.b16 %v512
        %v1317 = vunpack.c.h.b16 %v512
        %v1318 = vunpack.c.l.b16 %v513
        %v1319 = vunpack.c.h.b16 %v513
        %v1320 = vunpack.c.l.b16 %v514
        %v1321 = vunpack.c.h.b16 %v514
        %v1322 = vunpack.c.l.b16 %v515
        %v1323 = vunpack.c.h.b16 %v515
        %v1324 = vunpack.c.l.b16 %v516
        %v1325 = vunpack.c.l.b16 %v517
        %v1326 = vunpack.c.h.b16 %v517
        %v1327 = vunpack.c.l.b16 %v518
        %v1328 = vunpack.c.h.b16 %v518
        %v1329 = vunpack.c.l.b16 %v519
        %v1330 = vunpack.c.h.b16 %v519
        %v1331 = vunpack.c.l.b16 %v520
        %v1332 = vunpack.c.h.b16 %v520
        %v1333 = vunpack.c.l.b16 %v521
        %v1334 = vunpack.c.l.b16 %v522
        %v1335 = vunpack.c.h.b16 %v522
        %v1336 = vunpack.c.l.b16 %v523
        %v1337 = vunpack.c.h.b16 %v523
        %v1338 = vunpack.c.l.b16 %v524
        %v1339 = vunpack.c.h.b16 %v524
        %v1340 = vunpack.c.l.b16 %v525
        %v1341 = vunpack.c.h.b16 %v525
        %v1342 = vunpack.c.l.b16 %v526
        %v1343 = vunpack.c.l.b16 %v527
        %v1344 = vunpack.c.h.b16 %v527
        %v1345 = vunpack.c.l.b16 %v528
        %v1346 = vunpack.c.h.b16 %v528
        %v1347 = vunpack.c.l.b16 %v529
        %v1348 = vunpack.c.h.b16 %v529
        %v1349 = vunpack.c.l.b16 %v530
        %v1350 = vunpack.c.h.b16 %v530
        %v1351 = vunpack.c.l.b16 %v531
        %v1352 = vunpack.c.l.b16 %v532
        %v1353 = vunpack.c.h.b16 %v532
        %v1354 = vunpack.c.l.b16 %v533
        %v1355 = vunpack.c.h.b16 %v533
        %v1356 = vunpack.c.l.b16 %v534
        %v1357 = vunpack.c.h.b16 %v534
        %v1358 = vunpack.c.l.b16 %v535
        %v1359 = vunpack.c.h.b16 %v535
        %v1360 = vunpack.c.l.b16 %v536
        %v1361 = vunpack.c.l.b16 %v537
        %v1362 = vunpack.c.h.b16 %v537
        %v1363 = vunpack.c.l.b16 %v538
        %v1364 = vunpack.c.h.b16 %v538
        %v1365 = vunpack.c.l.b16 %v539
        %v1366 = vunpack.c.h.b16 %v539
        %v1367 = vunpack.c.l.b16 %v540
        %v1368 = vunpack.c.h.b16 %v540
        %v1369 = vunpack.c.l.b16 %v541
        %v1370 = vunpack.c.l.b16 %v542
        %v1371 = vunpack.c.h.b16 %v542
        %v1372 = vunpack.c.l.b16 %v543
        %v1373 = vunpack.c.h.b16 %v543
        %v1374 = vunpack.c.l.b16 %v544
        %v1375 = vunpack.c.h.b16 %v544
        %v1376 = vunpack.c.l.b16 %v545
        %v1377 = vunpack.c.h.b16 %v545
        %v1378 = vunpack.c.l.b16 %v546
        %v1379 = vunpack.c.l.b16 %v547
        %v1380 = vunpack.c.h.b16 %v547
        %v1381 = vunpack.c.l.b16 %v548
        %v1382 = vunpack.c.h.b16 %v548
        %v1383 = vunpack.c.l.b16 %v549
        %v1384 = vunpack.c.h.b16 %v549
        %v1385 = vunpack.c.l.b16 %v550
        %v1386 = vunpack.c.h.b16 %v550
        %v1387 = vunpack.c.l.b16 %v551
        %v1388 = vunpack.c.l.b16 %v552
        %v1389 = vunpack.c.h.b16 %v552
        %v1390 = vunpack.c.l.b16 %v553
        %v1391 = vunpack.c.h.b16 %v553
        %v1392 = vunpack.c.l.b16 %v554
        %v1393 = vunpack.c.h.b16 %v554
        %v1394 = vunpack.c.l.b16 %v555
        %v1395 = vunpack.c.h.b16 %v555
        %v1396 = vunpack.c.l.b16 %v556
        %v1397 = vunpack.c.l.b16 %v557
        %v1398 = vunpack.c.h.b16 %v557
        %v1399 = vunpack.c.l.b16 %v558
        %v1400 = vunpack.c.h.b16 %v558
        %v1401 = vunpack.c.l.b16 %v559
        %v1402 = vunpack.c.h.b16 %v559
        %v1403 = vunpack.c.l.b16 %v560
        %v1404 = vunpack.c.h.b16 %v560
        %v1405 = vunpack.c.l.b16 %v561
        %v1406 = vunpack.c.l.b16 %v562
        %v1407 = vunpack.c.h.b16 %v562
        %v1408 = vunpack.c.l.b16 %v563
        %v1409 = vunpack.c.h.b16 %v563
        %v1410 = vunpack.c.l.b16 %v564
        %v1411 = vunpack.c.h.b16 %v564
        %v1412 = vunpack.c.l.b16 %v565
        %v1413 = vunpack.c.h.b16 %v565
        %v1414 = vunpack.c.l.b16 %v566
        %v1415 = vunpack.c.l.b16 %v567
        %v1416 = vunpack.c.h.b16 %v567
        %v1417 = vunpack.c.l.b16 %v568
        %v1418 = vunpack.c.h.b16 %v568
        %v1419 = vunpack.c.l.b16 %v569
        %v1420 = vunpack.c.h.b16 %v569
        %v1421 = vunpack.c.l.b16 %v570
        %v1422 = vunpack.c.h.b16 %v570
        %v1423 = vunpack.c.l.b16 %v571
        %v1424 = vunpack.c.l.b16 %v572
        %v1425 = vunpack.c.h.b16 %v572
        %v1426 = vunpack.c.l.b16 %v573
        %v1427 = vunpack.c.h.b16 %v573
        %v1428 = vunpack.c.l.b16 %v574
        %v1429 = vunpack.c.h.b16 %v574
        %v1430 = vunpack.c.l.b16 %v575
        %v1431 = vunpack.c.h.b16 %v575
        %v1432 = vunpack.c.l.b16 %v576
        %v1433 = vunpack.c.l.b16 %v577
        %v1434 = vunpack.c.h.b16 %v577
        %v1435 = vunpack.c.l.b16 %v578
        %v1436 = vunpack.c.h.b16 %v578
        %v1437 = vunpack.c.l.b16 %v579
        %v1438 = vunpack.c.h.b16 %v579
        %v1439 = vunpack.c.l.b16 %v580
        %v1440 = vunpack.c.h.b16 %v580
        %v1441 = vunpack.c.l.b16 %v581
        %v1442 = vunpack.c.l.b16 %v582
        %v1443 = vunpack.c.h.b16 %v582
        %v1444 = vunpack.c.l.b16 %v583
        %v1445 = vunpack.c.h.b16 %v583
        %v1446 = vunpack.c.l.b16 %v584
        %v1447 = vunpack.c.h.b16 %v584
        %v1448 = vunpack.c.l.b16 %v585
        %v1449 = vunpack.c.h.b16 %v585
        %v1450 = vunpack.c.l.b16 %v586
        %v1451 = vunpack.c.l.b16 %v587
        %v1452 = vunpack.c.h.b16 %v587
        %v1453 = vunpack.c.l.b16 %v588
        %v1454 = vunpack.c.h.b16 %v588
        %v1455 = vunpack.c.l.b16 %v589
        %v1456 = vunpack.c.h.b16 %v589
        %v1457 = vunpack.c.l.b16 %v590
        %v1458 = vunpack.c.h.b16 %v590
        %v1459 = vunpack.c.l.b16 %v591
        %v1460 = vunpack.c.l.b16 %v592
        %v1461 = vunpack.c.h.b16 %v592
        %v1462 = vunpack.c.l.b16 %v593
        %v1463 = vunpack.c.h.b16 %v593
        %v1464 = vunpack.c.l.b16 %v594
        %v1465 = vunpack.c.h.b16 %v594
        %v1466 = vunpack.c.l.b16 %v595
        %v1467 = vunpack.c.h.b16 %v595
        %v1468 = vunpack.c.l.b16 %v596
        %v1469 = vunpack.c.l.b16 %v597
        %v1470 = vunpack.c.h.b16 %v597
        %v1471 = vunpack.c.l.b16 %v598
        %v1472 = vunpack.c.h.b16 %v598
        %v1473 = vunpack.c.l.b16 %v599
        %v1474 = vunpack.c.h.b16 %v599
        %v1475 = vunpack.c.l.b16 %v600
        %v1476 = vunpack.c.h.b16 %v600
        %v1477 = vunpack.c.l.b16 %v601
        %v1478 = vunpack.c.l.b16 %v602
        %v1479 = vunpack.c.h.b16 %v602
        %v1480 = vunpack.c.l.b16 %v603
        %v1481 = vunpack.c.h.b16 %v603
        %v1482 = vunpack.c.l.b16 %v604
        %v1483 = vunpack.c.h.b16 %v604
        %v1484 = vunpack.c.l.b16 %v605
        %v1485 = vunpack.c.h.b16 %v605
        %v1486 = vunpack.c.l.b16 %v606
        %v1487 = vunpack.c.l.b16 %v607
        %v1488 = vunpack.c.h.b16 %v607
        %v1489 = vunpack.c.l.b16 %v608
        %v1490 = vunpack.c.h.b16 %v608
        %v1491 = vunpack.c.l.b16 %v609
        %v1492 = vunpack.c.h.b16 %v609
        %v1493 = vunpack.c.l.b16 %v610
        %v1494 = vunpack.c.h.b16 %v610
        %v1495 = vunpack.c.l.b16 %v611
        %v1496 = vunpack.c.l.b16 %v612
        %v1497 = vunpack.c.h.b16 %v612
        %v1498 = vunpack.c.l.b16 %v613
        %v1499 = vunpack.c.h.b16 %v613
        %v1500 = vunpack.c.l.b16 %v614
        %v1501 = vunpack.c.h.b16 %v614
        %v1502 = vunpack.c.l.b16 %v615
        %v1503 = vunpack.c.h.b16 %v615
        %v1504 = vunpack.c.l.b16 %v616
        %v1505 = vunpack.c.l.b16 %v617
        %v1506 = vunpack.c.h.b16 %v617
        %v1507 = vunpack.c.l.b16 %v618
        %v1508 = vunpack.c.h.b16 %v618
        %v1509 = vunpack.c.l.b16 %v619
        %v1510 = vunpack.c.h.b16 %v619
        %v1511 = vunpack.c.l.b16 %v620
        %v1512 = vunpack.c.h.b16 %v620
        %v1513 = vunpack.c.l.b16 %v621
        %v1514 = vunpack.c.l.b16 %v622
        %v1515 = vunpack.c.h.b16 %v622
        %v1516 = vunpack.c.l.b16 %v623
        %v1517 = vunpack.c.h.b16 %v623
        %v1518 = vunpack.c.l.b16 %v624
        %v1519 = vunpack.c.h.b16 %v624
        %v1520 = vunpack.c.l.b16 %v625
        %v1521 = vunpack.c.h.b16 %v625
        %v1522 = vunpack.c.l.b16 %v626
        %v1523 = vunpack.c.l.b16 %v627
        %v1524 = vunpack.c.h.b16 %v627
        %v1525 = vunpack.c.l.b16 %v628
        %v1526 = vunpack.c.h.b16 %v628
        %v1527 = vunpack.c.l.b16 %v629
        %v1528 = vunpack.c.h.b16 %v629
        %v1529 = vunpack.c.l.b16 %v630
        %v1530 = vunpack.c.h.b16 %v630
        %v1531 = vunpack.c.l.b16 %v631
        %v1532 = vunpack.c.l.b16 %v632
        %v1533 = vunpack.c.h.b16 %v632
        %v1534 = vunpack.c.l.b16 %v633
        %v1535 = vunpack.c.h.b16 %v633
        %v1536 = vunpack.c.l.b16 %v634
        %v1537 = vunpack.c.h.b16 %v634
        %v1538 = vunpack.c.l.b16 %v635
        %v1539 = vunpack.c.h.b16 %v635
        %v1540 = vunpack.c.l.b16 %v636
        %v1541 = vunpack.c.l.b16 %v637
        %v1542 = vunpack.c.h.b16 %v637
        %v1543 = vunpack.c.l.b16 %v638
        %v1544 = vunpack.c.h.b16 %v638
        %v1545 = vunpack.c.l.b16 %v639
        %v1546 = vunpack.c.h.b16 %v639
        %v1547 = vunpack.c.l.b16 %v640
        %v1548 = vunpack.c.h.b16 %v640
        %v1549 = vunpack.c.l.b16 %v641
        %v1550 = vunpack.c.l.b16 %v642
        %v1551 = vunpack.c.h.b16 %v642
        %v1552 = vunpack.c.l.b16 %v643
        %v1553 = vunpack.c.h.b16 %v643
        %v1554 = vunpack.c.l.b16 %v644
        %v1555 = vunpack.c.h.b16 %v644
        %v1556 = vunpack.c.l.b16 %v645
        %v1557 = vunpack.c.h.b16 %v645
        %v1558 = vunpack.c.l.b16 %v646
        %v1559 = vunpack.c.l.b16 %v647
        %v1560 = vunpack.c.h.b16 %v647
        %v1561 = vunpack.c.l.b16 %v648
        %v1562 = vunpack.c.h.b16 %v648
        %v1563 = vunpack.c.l.b16 %v649
        %v1564 = vunpack.c.h.b16 %v649
        %v1565 = vunpack.c.l.b16 %v650
        %v1566 = vunpack.c.h.b16 %v650
        %v1567 = vunpack.c.l.b16 %v651
        %v1568 = vunpack.c.l.b16 %v652
        %v1569 = vunpack.c.h.b16 %v652
        %v1570 = vunpack.c.l.b16 %v653
        %v1571 = vunpack.c.h.b16 %v653
        %v1572 = vunpack.c.l.b16 %v654
        %v1573 = vunpack.c.h.b16 %v654
        %v1574 = vunpack.c.l.b16 %v655
        %v1575 = vunpack.c.h.b16 %v655
        %v1576 = vunpack.c.l.b16 %v656
        %v1577 = vunpack.c.l.b16 %v657
        %v1578 = vunpack.c.h.b16 %v657
        %v1579 = vunpack.c.l.b16 %v658
        %v1580 = vunpack.c.h.b16 %v658
        %v1581 = vunpack.c.l.b16 %v659
        %v1582 = vunpack.c.h.b16 %v659
        %v1583 = vunpack.c.l.b16 %v660
        %v1584 = vunpack.c.h.b16 %v660
        %v1585 = vunpack.c.l.b16 %v661
        %v1586 = vunpack.c.l.b16 %v662
        %v1587 = vunpack.c.h.b16 %v662
        %v1588 = vunpack.c.l.b16 %v663
        %v1589 = vunpack.c.h.b16 %v663
        %v1590 = vunpack.c.l.b16 %v664
        %v1591 = vunpack.c.h.b16 %v664
        %v1592 = vunpack.c.l.b16 %v665
        %v1593 = vunpack.c.h.b16 %v665
        %v1594 = vunpack.c.l.b16 %v666
        %v1595 = vunpack.c.l.b16 %v667
        %v1596 = vunpack.c.h.b16 %v667
        %v1597 = vunpack.c.l.b16 %v668
        %v1598 = vunpack.c.h.b16 %v668
        %v1599 = vunpack.c.l.b16 %v669
        %v1600 = vunpack.c.h.b16 %v669
        %v1601 = vunpack.c.l.b16 %v670
        %v1602 = vunpack.c.h.b16 %v670
        %v1603 = vunpack.c.l.b16 %v671
        %v1604 = vunpack.c.l.b16 %v672
        %v1605 = vunpack.c.h.b16 %v672
        %v1606 = vunpack.c.l.b16 %v673
        %v1607 = vunpack.c.h.b16 %v673
        %v1608 = vunpack.c.l.b16 %v674
        %v1609 = vunpack.c.h.b16 %v674
        %v1610 = vunpack.c.l.b16 %v675
        %v1611 = vunpack.c.h.b16 %v675
        %v1612 = vunpack.c.l.b16 %v676
        %v1613 = vunpack.c.l.b16 %v677
        %v1614 = vunpack.c.h.b16 %v677
        %v1615 = vunpack.c.l.b16 %v678
        %v1616 = vunpack.c.h.b16 %v678
        %v1617 = vunpack.c.l.b16 %v679
        %v1618 = vunpack.c.h.b16 %v679
        %v1619 = vunpack.c.l.b16 %v680
        %v1620 = vunpack.c.h.b16 %v680
        %v1621 = vunpack.c.l.b16 %v681
        %v1622 = vunpack.c.l.b16 %v682
        %v1623 = vunpack.c.h.b16 %v682
        %v1624 = vunpack.c.l.b16 %v683
        %v1625 = vunpack.c.h.b16 %v683
        %v1626 = vunpack.c.l.b16 %v684
        %v1627 = vunpack.c.h.b16 %v684
        %v1628 = vunpack.c.l.b16 %v685
        %v1629 = vunpack.c.h.b16 %v685
        %v1630 = vunpack.c.l.b16 %v686
        %v1631 = vunpack.c.l.b16 %v687
        %v1632 = vunpack.c.h.b16 %v687
        %v1633 = vunpack.c.l.b16 %v688
        %v1634 = vunpack.c.h.b16 %v688
        %v1635 = vunpack.c.l.b16 %v689
        %v1636 = vunpack.c.h.b16 %v689
        %v1637 = vunpack.c.l.b16 %v690
        %v1638 = vunpack.c.h.b16 %v690
        %v1639 = vunpack.c.l.b16 %v691
        %v1640 = vunpack.c.l.b16 %v692
        %v1641 = vunpack.c.h.b16 %v692
        %v1642 = vunpack.c.l.b16 %v693
        %v1643 = vunpack.c.h.b16 %v693
        %v1644 = vunpack.c.l.b16 %v694
        %v1645 = vunpack.c.h.b16 %v694
        %v1646 = vunpack.c.l.b16 %v695
        %v1647 = vunpack.c.h.b16 %v695
        %v1648 = vunpack.c.l.b16 %v696
        %v1649 = vunpack.c.l.b16 %v697
        %v1650 = vunpack.c.h.b16 %v697
        %v1651 = vunpack.c.l.b16 %v698
        %v1652 = vunpack.c.h.b16 %v698
        %v1653 = vunpack.c.l.b16 %v699
        %v1654 = vunpack.c.h.b16 %v699
        %v1655 = vunpack.c.l.b16 %v700
        %v1656 = vunpack.c.h.b16 %v700
        %v1657 = vunpack.c.l.b16 %v701
        %v1658 = vunpack.c.l.b16 %v702
        %v1659 = vunpack.c.h.b16 %v702
        %v1660 = vunpack.c.l.b16 %v703
        %v1661 = vunpack.c.h.b16 %v703
        %v1662 = vunpack.c.l.b16 %v704
        %v1663 = vunpack.c.h.b16 %v704
        %v1664 = vunpack.c.l.b16 %v705
        %v1665 = vunpack.c.h.b16 %v705
        %v1666 = vunpack.c.l.b16 %v706
        %v1667 = vunpack.c.l.b16 %v707
        %v1668 = vunpack.c.h.b16 %v707
        %v1669 = vunpack.c.l.b16 %v708
        %v1670 = vunpack.c.h.b16 %v708
        %v1671 = vunpack.c.l.b16 %v709
        %v1672 = vunpack.c.h.b16 %v709
        %v1673 = vunpack.c.l.b16 %v710
        %v1674 = vunpack.c.h.b16 %v710
        %v1675 = vunpack.c.l.b16 %v711
        %v1676 = vunpack.c.l.b16 %v712
        %v1677 = vunpack.c.h.b16 %v712
        %v1678 = vunpack.c.l.b16 %v713
        %v1679 = vunpack.c.h.b16 %v713
        %v1680 = vunpack.c.l.b16 %v714
        %v1681 = vunpack.c.h.b16 %v714
        %v1682 = vunpack.c.l.b16 %v715
        %v1683 = vunpack.c.h.b16 %v715
        %v1684 = vunpack.c.l.b16 %v716
        %v1685 = vunpack.c.l.b16 %v717
        %v1686 = vunpack.c.h.b16 %v717
        %v1687 = vunpack.c.l.b16 %v718
        %v1688 = vunpack.c.h.b16 %v718
        %v1689 = vunpack.c.l.b16 %v719
        %v1690 = vunpack.c.h.b16 %v719
        %v1691 = vunpack.c.l.b16 %v720
        %v1692 = vunpack.c.h.b16 %v720
        %v1693 = vunpack.c.l.b16 %v721
        %v1694 = vunpack.c.l.b16 %v722
        %v1695 = vunpack.c.h.b16 %v722
        %v1696 = vunpack.c.l.b16 %v723
        %v1697 = vunpack.c.h.b16 %v723
        %v1698 = vunpack.c.l.b16 %v724
        %v1699 = vunpack.c.h.b16 %v724
        %v1700 = vunpack.c.l.b16 %v725
        %v1701 = vunpack.c.h.b16 %v725
        %v1702 = vunpack.c.l.b16 %v726
        %v1703 = vunpack.c.l.b16 %v727
        %v1704 = vunpack.c.h.b16 %v727
        %v1705 = vunpack.c.l.b16 %v728
        %v1706 = vunpack.c.h.b16 %v728
        %v1707 = vunpack.c.l.b16 %v729
        %v1708 = vunpack.c.h.b16 %v729
        %v1709 = vunpack.c.l.b16 %v730
        %v1710 = vunpack.c.h.b16 %v730
        %v1711 = vunpack.c.l.b16 %v731
        %v1712 = vunpack.c.l.b16 %v732
        %v1713 = vunpack.c.h.b16 %v732
        %v1714 = vunpack.c.l.b16 %v733
        %v1715 = vunpack.c.h.b16 %v733
        %v1716 = vunpack.c.l.b16 %v734
        %v1717 = vunpack.c.h.b16 %v734
        %v1718 = vunpack.c.l.b16 %v735
        %v1719 = vunpack.c.h.b16 %v735
        %v1720 = vunpack.c.l.b16 %v736
        %v1721 = vunpack.c.l.b16 %v737
        %v1722 = vunpack.c.h.b16 %v737
        %v1723 = vunpack.c.l.b16 %v738
        %v1724 = vunpack.c.h.b16 %v738
        %v1725 = vunpack.c.l.b16 %v739
        %v1726 = vunpack.c.h.b16 %v739
        %v1727 = vunpack.c.l.b16 %v740
        %v1728 = vunpack.c.h.b16 %v740
        %v1729 = vunpack.c.l.b16 %v741
        %v1730 = vunpack.c.l.b16 %v742
        %v1731 = vunpack.c.h.b16 %v742
        %v1732 = vunpack.c.l.b16 %v743
        %v1733 = vunpack.c.h.b16 %v743
        %v1734 = vunpack.c.l.b16 %v744
        %v1735 = vunpack.c.h.b16 %v744
        %v1736 = vunpack.c.l.b16 %v745
        %v1737 = vunpack.c.h.b16 %v745
        %v1738 = vunpack.c.l.b16 %v746
        %v1739 = vunpack.c.l.b16 %v747
        %v1740 = vunpack.c.h.b16 %v747
        %v1741 = vunpack.c.l.b16 %v748
        %v1742 = vunpack.c.h.b16 %v748
        %v1743 = vunpack.c.l.b16 %v749
        %v1744 = vunpack.c.h.b16 %v749
        %v1745 = vunpack.c.l.b16 %v750
        %v1746 = vunpack.c.h.b16 %v750
        %v1747 = vunpack.c.l.b16 %v751
        %v1748 = vunpack.c.l.b16 %v752
        %v1749 = vunpack.c.h.b16 %v752
        %v1750 = vunpack.c.l.b16 %v753
        %v1751 = vunpack.c.h.b16 %v753
        %v1752 = vunpack.c.l.b16 %v754
        %v1753 = vunpack.c.h.b16 %v754
        %v1754 = vunpack.c.l.b16 %v755
        %v1755 = vunpack.c.h.b16 %v755
        %v1756 = vunpack.c.l.b16 %v756
        %v1757 = vunpack.c.l.b16 %v757
        %v1758 = vunpack.c.h.b16 %v757
        %v1759 = vunpack.c.l.b16 %v758
        %v1760 = vunpack.c.h.b16 %v758
        %v1761 = vunpack.c.l.b16 %v759
        %v1762 = vunpack.c.h.b16 %v759
        %v1763 = vunpack.c.l.b16 %v760
        %v1764 = vunpack.c.h.b16 %v760
        %v1765 = vunpack.c.l.b16 %v761
        %v1766 = vunpack.c.l.b16 %v762
        %v1767 = vunpack.c.h.b16 %v762
        %v1768 = vunpack.c.l.b16 %v763
        %v1769 = vunpack.c.h.b16 %v763
        %v1770 = vunpack.c.l.b16 %v764
        %v1771 = vunpack.c.h.b16 %v764
        %v1772 = vunpack.c.l.b16 %v765
        %v1773 = vunpack.c.h.b16 %v765
        %v1774 = vunpack.c.l.b16 %v766
        %v1775 = vpack.c.b16 %v1136, %v1127
        %v1776 = vpack.c.b16 %v1137, %v1128
        %v1777 = vpack.c.b16 %v1138, %v1129
        %v1778 = vpack.c.b16 %v1139, %v1130
        %v1779 = vpack.c.b16 %v1140, %v1131
        %v1780 = vpack.c.b16 %v1141, %v1132
        %v1781 = vpack.c.b16 %v1142, %v1133
        %v1782 = vpack.c.b16 %v1143, %v1134
        %v1783 = vpack.c.b16 %v1144, %v1135
        %v1784 = vpack.c.b16 %v1154, %v1145
        %v1785 = vpack.c.b16 %v1155, %v1146
        %v1786 = vpack.c.b16 %v1156, %v1147
        %v1787 = vpack.c.b16 %v1157, %v1148
        %v1788 = vpack.c.b16 %v1158, %v1149
        %v1789 = vpack.c.b16 %v1159, %v1150
        %v1790 = vpack.c.b16 %v1160, %v1151
        %v1791 = vpack.c.b16 %v1161, %v1152
        %v1792 = vpack.c.b16 %v1162, %v1153
        %v1793 = vpack.c.b16 %v1172, %v1163
        %v1794 = vpack.c.b16 %v1173, %v1164
        %v1795 = vpack.c.b16 %v1174, %v1165
        %v1796 = vpack.c.b16 %v1175, %v1166
        %v1797 = vpack.c.b16 %v1176, %v1167
        %v1798 = vpack.c.b16 %v1177, %v1168
        %v1799 = vpack.c.b16 %v1178, %v1169
        %v1800 = vpack.c.b16 %v1179, %v1170
        %v1801 = vpack.c.b16 %v1180, %v1171
        %v1802 = vpack.c.b16 %v1190, %v1181
        %v1803 = vpack.c.b16 %v1191, %v1182
        %v1804 = vpack.c.b16 %v1192, %v1183
        %v1805 = vpack.c.b16 %v1193, %v1184
        %v1806 = vpack.c.b16 %v1194, %v1185
        %v1807 = vpack.c.b16 %v1195, %v1186
        %v1808 = vpack.c.b16 %v1196, %v1187
        %v1809 = vpack.c.b16 %v1197, %v1188
        %v1810 = vpack.c.b16 %v1198, %v1189
        %v1811 = vpack.c.b16 %v1208, %v1199
        %v1812 = vpack.c.b16 %v1209, %v1200
        %v1813 = vpack.c.b16 %v1210, %v1201
        %v1814 = vpack.c.b16 %v1211, %v1202
        %v1815 = vpack.c.b16 %v1212, %v1203
        %v1816 = vpack.c.b16 %v1213, %v1204
        %v1817 = vpack.c.b16 %v1214, %v1205
        %v1818 = vpack.c.b16 %v1215, %v1206
        %v1819 = vpack.c.b16 %v1216, %v1207
        %v1820 = vpack.c.b16 %v1226, %v1217
        %v1821 = vpack.c.b16 %v1227, %v1218
        %v1822 = vpack.c.b16 %v1228, %v1219
        %v1823 = vpack.c.b16 %v1229, %v1220
        %v1824 = vpack.c.b16 %v1230, %v1221
        %v1825 = vpack.c.b16 %v1231, %v1222
        %v1826 = vpack.c.b16 %v1232, %v1223
        %v1827 = vpack.c.b16 %v1233, %v1224
        %v1828 = vpack.c.b16 %v1234, %v1225
        %v1829 = vpack.c.b16 %v1244, %v1235
        %v1830 = vpack.c.b16 %v1245, %v1236
        %v1831 = vpack.c.b16 %v1246, %v1237
        %v1832 = vpack.c.b16 %v1247, %v1238
        %v1833 = vpack.c.b16 %v1248, %v1239
        %v1834 = vpack.c.b16 %v1249, %v1240
        %v1835 = vpack.c.b16 %v1250, %v1241
        %v1836 = vpack.c.b16 %v1251, %v1242
        %v1837 = vpack.c.b16 %v1252, %v1243
        %v1838 = vpack.c.b16 %v1262, %v1253
        %v1839 = vpack.c.b16 %v1263, %v1254
        %v1840 = vpack.c.b16 %v1264, %v1255
        %v1841 = vpack.c.b16 %v1265, %v1256
        %v1842 = vpack.c.b16 %v1266, %v1257
        %v1843 = vpack.c.b16 %v1267, %v1258
        %v1844 = vpack.c.b16 %v1268, %v1259
        %v1845 = vpack.c.b16 %v1269, %v1260
        %v1846 = vpack.c.b16 %v1270, %v1261
        %v1847 = vpack.c.b16 %v1280, %v1271
        %v1848 = vpack.c.b16 %v1281, %v1272
        %v1849 = vpack.c.b16 %v1282, %v1273
        %v1850 = vpack.c.b16 %v1283, %v1274
        %v1851 = vpack.c.b16 %v1284, %v1275
        %v1852 = vpack.c.b16 %v1285, %v1276
        %v1853 = vpack.c.b16 %v1286, %v1277
        %v1854 = vpack.c.b16 %v1287, %v1278
        %v1855 = vpack.c.b16 %v1288, %v1279
        %v1856 = vpack.c.b16 %v1298, %v1289
        %v1857 = vpack.c.b16 %v1299, %v1290
        %v1858 = vpack.c.b16 %v1300, %v1291
        %v1859 = vpack.c.b16 %v1301, %v1292
        %v1860 = vpack.c.b16 %v1302, %v1293
        %v1861 = vpack.c.b16 %v1303, %v1294
        %v1862 = vpack.c.b16 %v1304, %v1295
        %v1863 = vpack.c.b16 %v1305, %v1296
        %v1864 = vpack.c.b16 %v1306, %v1297
        %v1865 = vpack.c.b16 %v1316, %v1307
        %v1866 = vpack.c.b16 %v1317, %v1308
        %v1867 = vpack.c.b16 %v1318, %v1309
        %v1868 = vpack.c.b16 %v1319, %v1310
        %v1869 = vpack.c.b16 %v1320, %v1311
        %v1870 = vpack.c.b16 %v1321, %v1312
        %v1871 = vpack.c.b16 %v1322, %v1313
        %v1872 = vpack.c.b16 %v1323, %v1314
        %v1873 = vpack.c.b16 %v1324, %v1315
        %v1874 = vpack.c.b16 %v1334, %v1325
        %v1875 = vpack.c.b16 %v1335, %v1326
        %v1876 = vpack.c.b16 %v1336, %v1327
        %v1877 = vpack.c.b16 %v1337, %v1328
        %v1878 = vpack.c.b16 %v1338, %v1329
        %v1879 = vpack.c.b16 %v1339, %v1330
        %v1880 = vpack.c.b16 %v1340, %v1331
        %v1881 = vpack.c.b16 %v1341, %v1332
        %v1882 = vpack.c.b16 %v1342, %v1333
        %v1883 = vpack.c.b16 %v1352, %v1343
        %v1884 = vpack.c.b16 %v1353, %v1344
        %v1885 = vpack.c.b16 %v1354, %v1345
        %v1886 = vpack.c.b16 %v1355, %v1346
        %v1887 = vpack.c.b16 %v1356, %v1347
        %v1888 = vpack.c.b16 %v1357, %v1348
        %v1889 = vpack.c.b16 %v1358, %v1349
        %v1890 = vpack.c.b16 %v1359, %v1350
        %v1891 = vpack.c.b16 %v1360, %v1351
        %v1892 = vpack.c.b16 %v1370, %v1361
        %v1893 = vpack.c.b16 %v1371, %v1362
        %v1894 = vpack.c.b16 %v1372, %v1363
        %v1895 = vpack.c.b16 %v1373, %v1364
        %v1896 = vpack.c.b16 %v1374, %v1365
        %v1897 = vpack.c.b16 %v1375, %v1366
        %v1898 = vpack.c.b16 %v1376, %v1367
        %v1899 = vpack.c.b16 %v1377, %v1368
        %v1900 = vpack.c.b16 %v1378, %v1369
        %v1901 = vpack.c.b16 %v1388, %v1379
        %v1902 = vpack.c.b16 %v1389, %v1380
        %v1903 = vpack.c.b16 %v1390, %v1381
        %v1904 = vpack.c.b16 %v1391, %v1382
        %v1905 = vpack.c.b16 %v1392, %v1383
        %v1906 = vpack.c.b16 %v1393, %v1384
        %v1907 = vpack.c.b16 %v1394, %v1385
        %v1908 = vpack.c.b16 %v1395, %v1386
        %v1909 = vpack.c.b16 %v1396, %v1387
        %v1910 = vpack.c.b16 %v1406, %v1397
        %v1911 = vpack.c.b16 %v1407, %v1398
        %v1912 = vpack.c.b16 %v1408, %v1399
        %v1913 = vpack.c.b16 %v1409, %v1400
        %v1914 = vpack.c.b16 %v1410, %v1401
        %v1915 = vpack.c.b16 %v1411, %v1402
        %v1916 = vpack.c.b16 %v1412, %v1403
        %v1917 = vpack.c.b16 %v1413, %v1404
        %v1918 = vpack.c.b16 %v1414, %v1405
        %v1919 = vpack.c.b16 %v1424, %v1415
        %v1920 = vpack.c.b16 %v1425, %v1416
        %v1921 = vpack.c.b16 %v1426, %v1417
        %v1922 = vpack.c.b16 %v1427, %v1418
        %v1923 = vpack.c.b16 %v1428, %v1419
        %v1924 = vpack.c.b16 %v1429, %v1420
        %v1925 = vpack.c.b16 %v1430, %v1421
        %v1926 = vpack.c.b16 %v1431, %v1422
        %v1927 = vpack.c.b16 %v1432, %v1423
        %v1928 = vpack.c.b16 %v1442, %v1433
        %v1929 = vpack.c.b16 %v1443, %v1434
        %v1930 = vpack.c.b16 %v1444, %v1435
        %v1931 = vpack.c.b16 %v1445, %v1436
        %v1932 = vpack.c.b16 %v1446, %v1437
        %v1933 = vpack.c.b16 %v1447, %v1438
        %v1934 = vpack.c.b16 %v1448, %v1439
        %v1935 = vpack.c.b16 %v1449, %v1440
        %v1936 = vpack.c.b16 %v1450, %v1441
        %v1937 = vpack.c.b16 %v1460, %v1451
        %v1938 = vpack.c.b16 %v1461, %v1452
        %v1939 = vpack.c.b16 %v1462, %v1453
        %v1940 = vpack.c.b16 %v1463, %v1454
        %v1941 = vpack.c.b16 %v1464, %v1455
        %v1942 = vpack.c.b16 %v1465, %v1456
        %v1943 = vpack.c.b16 %v1466, %v1457
        %v1944 = vpack.c.b16 %v1467, %v1458
        %v1945 = vpack.c.b16 %v1468, %v1459
        %v1946 = vpack.c.b16 %v1478, %v1469
        %v1947 = vpack.c.b16 %v1479, %v1470
        %v1948 = vpack.c.b16 %v1480, %v1471
        %v1949 = vpack.c.b16 %v1481, %v1472
        %v1950 = vpack.c.b16 %v1482, %v1473
        %v1951 = vpack.c.b16 %v1483, %v1474
        %v1952 = vpack.c.b16 %v1484, %v1475
        %v1953 = vpack.c.b16 %v1485, %v1476
        %v1954 = vpack.c.b16 %v1486, %v1477
        %v1955 = vpack.c.b16 %v1496, %v1487
        %v1956 = vpack.c.b16 %v1497, %v1488
        %v1957 = vpack.c.b16 %v1498, %v1489
        %v1958 = vpack.c.b16 %v1499, %v1490
        %v1959 = vpack.c.b16 %v1500, %v1491
        %v1960 = vpack.c.b16 %v1501, %v1492
        %v1961 = vpack.c.b16 %v1502, %v1493
        %v1962 = vpack.c.b16 %v1503, %v1494
        %v1963 = vpack.c.b16 %v1504, %v1495
        %v1964 = vpack.c.b16 %v1514, %v1505
        %v1965 = vpack.c.b16 %v1515, %v1506
        %v1966 = vpack.c.b16 %v1516, %v1507
        %v1967 = vpack.c.b16 %v1517, %v1508
        %v1968 = vpack.c.b16 %v1518, %v1509
        %v1969 = vpack.c.b16 %v1519, %v1510
        %v1970 = vpack.c.b16 %v1520, %v1511
        %v1971 = vpack.c.b16 %v1521, %v1512
        %v1972 = vpack.c.b16 %v1522, %v1513
        %v1973 = vpack.c.b16 %v1532, %v1523
        %v1974 = vpack.c.b16 %v1533, %v1524
        %v1975 = vpack.c.b16 %v1534, %v1525
        %v1976 = vpack.c.b16 %v1535, %v1526
        %v1977 = vpack.c.b16 %v1536, %v1527
        %v1978 = vpack.c.b16 %v1537, %v1528
        %v1979 = vpack.c.b16 %v1538, %v1529
        %v1980 = vpack.c.b16 %v1539, %v1530
        %v1981 = vpack.c.b16 %v1540, %v1531
        %v1982 = vpack.c.b16 %v1550, %v1541
        %v1983 = vpack.c.b16 %v1551, %v1542
        %v1984 = vpack.c.b16 %v1552, %v1543
        %v1985 = vpack.c.b16 %v1553, %v1544
        %v1986 = vpack.c.b16 %v1554, %v1545
        %v1987 = vpack.c.b16 %v1555, %v1546
        %v1988 = vpack.c.b16 %v1556, %v1547
        %v1989 = vpack.c.b16 %v1557, %v1548
        %v1990 = vpack.c.b16 %v1558, %v1549
        %v1991 = vpack.c.b16 %v1568, %v1559
        %v1992 = vpack.c.b16 %v1569, %v1560
        %v1993 = vpack.c.b16 %v1570, %v1561
        %v1994 = vpack.c.b16 %v1571, %v1562
        %v1995 = vpack.c.b16 %v1572, %v1563
        %v1996 = vpack.c.b16 %v1573, %v1564
        %v1997 = vpack.c.b16 %v1574, %v1565
        %v1998 = vpack.c.b16 %v1575, %v1566
        %v1999 = vpack.c.b16 %v1576, %v1567
        %v2000 = vpack.c.b16 %v1586, %v1577
        %v2001 = vpack.c.b16 %v1587, %v1578
        %v2002 = vpack.c.b16 %v1588, %v1579
        %v2003 = vpack.c.b16 %v1589, %v1580
        %v2004 = vpack.c.b16 %v1590, %v1581
        %v2005 = vpack.c.b16 %v1591, %v1582
        %v2006 = vpack.c.b16 %v1592, %v1583
        %v2007 = vpack.c.b16 %v1593, %v1584
        %v2008 = vpack.c.b16 %v1594, %v1585
        %v2009 = vpack.c.b16 %v1604, %v1595
        %v2010 = vpack.c.b16 %v1605, %v1596
        %v2011 = vpack.c.b16 %v1606, %v1597
        %v2012 = vpack.c.b16 %v1607, %v1598
        %v2013 = vpack.c.b16 %v1608, %v1599
        %v2014 = vpack.c.b16 %v1609, %v1600
        %v2015 = vpack.c.b16 %v1610, %v1601
        %v2016 = vpack.c.b16 %v1611, %v1602
        %v2017 = vpack.c.b16 %v1612, %v1603
        %v2018 = vpack.c.b16 %v1622, %v1613
        %v2019 = vpack.c.b16 %v1623, %v1614
        %v2020 = vpack.c.b16 %v1624, %v1615
        %v2021 = vpack.c.b16 %v1625, %v1616
        %v2022 = vpack.c.b16 %v1626, %v1617
        %v2023 = vpack.c.b16 %v1627, %v1618
        %v2024 = vpack.c.b16 %v1628, %v1619
        %v2025 = vpack.c.b16 %v1629, %v1620
        %v2026 = vpack.c.b16 %v1630, %v1621
        %v2027 = vpack.c.b16 %v1640, %v1631
        %v2028 = vpack.c.b16 %v1641, %v1632
        %v2029 = vpack.c.b16 %v1642, %v1633
        %v2030 = vpack.c.b16 %v1643, %v1634
        %v2031 = vpack.c.b16 %v1644, %v1635
        %v2032 = vpack.c.b16 %v1645, %v1636
        %v2033 = vpack.c.b16 %v1646, %v1637
        %v2034 = vpack.c.b16 %v1647, %v1638
        %v2035 = vpack.c.b16 %v1648, %v1639
        %v2036 = vpack.c.b16 %v1658, %v1649
        %v2037 = vpack.c.b16 %v1659, %v1650
        %v2038 = vpack.c.b16 %v1660, %v1651
        %v2039 = vpack.c.b16 %v1661, %v1652
        %v2040 = vpack.c.b16 %v1662, %v1653
        %v2041 = vpack.c.b16 %v1663, %v1654
        %v2042 = vpack.c.b16 %v1664, %v1655
        %v2043 = vpack.c.b16 %v1665, %v1656
        %v2044 = vpack.c.b16 %v1666, %v1657
        %v2045 = vpack.c.b16 %v1676, %v1667
        %v2046 = vpack.c.b16 %v1677, %v1668
        %v2047 = vpack.c.b16 %v1678, %v1669
        %v2048 = vpack.c.b16 %v1679, %v1670
        %v2049 = vpack.c.b16 %v1680, %v1671
        %v2050 = vpack.c.b16 %v1681, %v1672
        %v2051 = vpack.c.b16 %v1682, %v1673
        %v2052 = vpack.c.b16 %v1683, %v1674
        %v2053 = vpack.c.b16 %v1684, %v1675
        %v2054 = vpack.c.b16 %v1694, %v1685
        %v2055 = vpack.c.b16 %v1695, %v1686
        %v2056 = vpack.c.b16 %v1696, %v1687
        %v2057 = vpack.c.b16 %v1697, %v1688
        %v2058 = vpack.c.b16 %v1698, %v1689
        %v2059 = vpack.c.b16 %v1699, %v1690
        %v2060 = vpack.c.b16 %v1700, %v1691
        %v2061 = vpack.c.b16 %v1701, %v1692
        %v2062 = vpack.c.b16 %v1702, %v1693
        %v2063 = vpack.c.b16 %v1712, %v1703
        %v2064 = vpack.c.b16 %v1713, %v1704
        %v2065 = vpack.c.b16 %v1714, %v1705
        %v2066 = vpack.c.b16 %v1715, %v1706
        %v2067 = vpack.c.b16 %v1716, %v1707
        %v2068 = vpack.c.b16 %v1717, %v1708
        %v2069 = vpack.c.b16 %v1718, %v1709
        %v2070 = vpack.c.b16 %v1719, %v1710
        %v2071 = vpack.c.b16 %v1720, %v1711
        %v2072 = vpack.c.b16 %v1730, %v1721
        %v2073 = vpack.c.b16 %v1731, %v1722
        %v2074 = vpack.c.b16 %v1732, %v1723
        %v2075 = vpack.c.b16 %v1733, %v1724
        %v2076 = vpack.c.b16 %v1734, %v1725
        %v2077 = vpack.c.b16 %v1735, %v1726
        %v2078 = vpack.c.b16 %v1736, %v1727
        %v2079 = vpack.c.b16 %v1737, %v1728
        %v2080 = vpack.c.b16 %v1738, %v1729
        %v2081 = vpack.c.b16 %v1748, %v1739
        %v2082 = vpack.c.b16 %v1749, %v1740
        %v2083 = vpack.c.b16 %v1750, %v1741
        %v2084 = vpack.c.b16 %v1751, %v1742
        %v2085 = vpack.c.b16 %v1752, %v1743
        %v2086 = vpack.c.b16 %v1753, %v1744
        %v2087 = vpack.c.b16 %v1754, %v1745
        %v2088 = vpack.c.b16 %v1755, %v1746
        %v2089 = vpack.c.b16 %v1756, %v1747
        %v2090 = vpack.c.b16 %v1766, %v1757
        %v2091 = vpack.c.b16 %v1767, %v1758
        %v2092 = vpack.c.b16 %v1768, %v1759
        %v2093 = vpack.c.b16 %v1769, %v1760
        %v2094 = vpack.c.b16 %v1770, %v1761
        %v2095 = vpack.c.b16 %v1771, %v1762
        %v2096 = vpack.c.b16 %v1772, %v1763
        %v2097 = vpack.c.b16 %v1773, %v1764
        %v2098 = vpack.c.b16 %v1774, %v1765
        %vm2423 = vcmask 523264
        %v2425 = vsel %vm2423, %v391, 0
        %v2428 = vsel %vm2423, %v396, 0
        %v2431 = vsel %vm2423, %v401, 0
        %v2434 = vsel %vm2423, %v406, 0
        %2436 = vmatprep.subr.bf16.mxu0 %v1776
        %2437 = vmatpush1.bf16.msra.mxu0 %v1775
        %2438 = vmatprep.subr.bf16.mxu0 %v1785
        %2439 = vmatpush1.bf16.msra.mxu0 %v1784
        %2440 = vmatprep.subr.bf16.mxu0 %v1794
        %2441 = vmatpush1.bf16.msra.mxu0 %v1793
        %2442 = vmatprep.subr.bf16.mxu0 %v1803
        %2443 = vmatpush1.bf16.msra.mxu0 %v1802
        %2444 = vmatprep.subr.bf16.mxu0 %v1812
        %2445 = vmatpush1.bf16.msra.mxu0 %v1811
        %2446 = vmatprep.subr.bf16.mxu0 %v1821
        %2447 = vmatpush1.bf16.msra.mxu0 %v1820
        %2448 = vmatprep.subr.bf16.mxu0 %v1830
        %2449 = vmatpush1.bf16.msra.mxu0 %v1829
        %2450 = vmatprep.subr.bf16.mxu0 %v1839
        %2451 = vmatpush1.bf16.msra.mxu0 %v1838
        %2452 = vmatprep.subr.bf16.mxu0 %v1848
        %2453 = vmatpush1.bf16.msra.mxu0 %v1847
        %2454 = vmatprep.subr.bf16.mxu0 %v1857
        %2455 = vmatpush1.bf16.msra.mxu0 %v1856
        %2456 = vmatprep.subr.bf16.mxu0 %v1866
        %2457 = vmatpush1.bf16.msra.mxu0 %v1865
        %2458 = vmatprep.subr.bf16.mxu0 %v1875
        %2459 = vmatpush1.bf16.msra.mxu0 %v1874
        %2460 = vmatprep.subr.bf16.mxu0 %v1884
        %2461 = vmatpush1.bf16.msra.mxu0 %v1883
        %2462 = vmatprep.subr.bf16.mxu0 %v1893
        %2463 = vmatpush1.bf16.msra.mxu0 %v1892
        %2464 = vmatprep.subr.bf16.mxu0 %v1902
        %2465 = vmatpush1.bf16.msra.mxu0 %v1901
        %2466 = vmatprep.subr.bf16.mxu0 %v1911
        %2467 = vmatpush1.bf16.msra.mxu0 %v1910
        %2468 = vmatprep.mubr.bf16.mxu0 %v388
        %2469 = vmatmul.mubr.bf16.gmra.mrb[0].mxu0 %v387
        %v2470 = vpop.f32.mrb[0].mxu0
        %v2471 = vadd.f32 0.0, %v2470
        %v2472 = vpop.f32.mrb[0].mxu0
        %v2473 = vadd.f32 0.0, %v2472
        %v2474 = vpop.f32.mrb[0].mxu0
        %v2475 = vadd.f32 0.0, %v2474
        %v2476 = vpop.f32.mrb[0].mxu0
        %v2477 = vadd.f32 0.0, %v2476
        %2478 = vmatprep.mubr.bf16.mxu0 %v393
        %2479 = vmatmul.mubr.bf16.gmra.mrb[0].mxu0 %v392
        %v2480 = vpop.f32.mrb[0].mxu0
        %v2481 = vadd.f32 0.0, %v2480
        %v2482 = vpop.f32.mrb[0].mxu0
        %v2483 = vadd.f32 0.0, %v2482
        %v2484 = vpop.f32.mrb[0].mxu0
        %v2485 = vadd.f32 0.0, %v2484
        %v2486 = vpop.f32.mrb[0].mxu0
        %v2487 = vadd.f32 0.0, %v2486
        %2488 = vmatprep.mubr.bf16.mxu0 %v398
        %2489 = vmatmul.mubr.bf16.gmra.mrb[0].mxu0 %v397
        %v2490 = vpop.f32.mrb[0].mxu0
        %v2491 = vadd.f32 0.0, %v2490
        %v2492 = vpop.f32.mrb[0].mxu0
        %v2493 = vadd.f32 0.0, %v2492
        %v2494 = vpop.f32.mrb[0].mxu0
        %v2495 = vadd.f32 0.0, %v2494
        %v2496 = vpop.f32.mrb[0].mxu0
        %v2497 = vadd.f32 0.0, %v2496
        %2498 = vmatprep.mubr.bf16.mxu0 %v403
        %2499 = vmatmul.mubr.bf16.gmra.mrb[0].mxu0 %v402
        %v2500 = vpop.f32.mrb[0].mxu0
        %v2501 = vadd.f32 0.0, %v2500
        %v2502 = vpop.f32.mrb[0].mxu0
        %v2503 = vadd.f32 0.0, %v2502
        %v2504 = vpop.f32.mrb[0].mxu0
        %v2505 = vpop.f32.mrb[0].mxu0
        %2506 = vdwg.mxu0
        %2507 = vmatprep.subr.bf16.mxu0 %v1920
        %2508 = vmatpush1.bf16.msra.mxu0 %v1919
        %2509 = vmatprep.subr.bf16.mxu0 %v1929
        %2510 = vmatpush1.bf16.msra.mxu0 %v1928
        %2511 = vmatprep.subr.bf16.mxu0 %v1938
        %2512 = vmatpush1.bf16.msra.mxu0 %v1937
        %2513 = vmatprep.subr.bf16.mxu0 %v1947
        %2514 = vmatpush1.bf16.msra.mxu0 %v1946
        %2515 = vmatprep.subr.bf16.mxu0 %v1956
        %2516 = vmatpush1.bf16.msra.mxu0 %v1955
        %2517 = vmatprep.subr.bf16.mxu0 %v1965
        %2518 = vmatpush1.bf16.msra.mxu0 %v1964
        %2519 = vmatprep.subr.bf16.mxu0 %v1974
        %2520 = vmatpush1.bf16.msra.mxu0 %v1973
        %2521 = vmatprep.subr.bf16.mxu0 %v1983
        %2522 = vmatpush1.bf16.msra.mxu0 %v1982
        %2523 = vmatprep.subr.bf16.mxu0 %v1992
        %2524 = vmatpush1.bf16.msra.mxu0 %v1991
        %2525 = vmatprep.subr.bf16.mxu0 %v2001
        %2526 = vmatpush1.bf16.msra.mxu0 %v2000
        %2527 = vmatprep.subr.bf16.mxu0 %v2010
        %2528 = vmatpush1.bf16.msra.mxu0 %v2009
        %2529 = vmatprep.subr.bf16.mxu0 %v2019
        %2530 = vmatpush1.bf16.msra.mxu0 %v2018
        %2531 = vmatprep.subr.bf16.mxu0 %v2028
        %2532 = vmatpush1.bf16.msra.mxu0 %v2027
        %2533 = vmatprep.subr.bf16.mxu0 %v2037
        %2534 = vmatpush1.bf16.msra.mxu0 %v2036
        %2535 = vmatprep.subr.bf16.mxu0 %v2046
        %2536 = vmatpush1.bf16.msra.mxu0 %v2045
        %2537 = vmatprep.subr.bf16.mxu0 %v2055
        %2538 = vmatpush1.bf16.msra.mxu0 %v2054
        %2539 = vmatprep.mubr.bf16.mxu0 %v390
        %2540 = vmatmul.mubr.bf16.gmra.mrb[0].mxu0 %v389
        %v2541 = vpop.f32.mrb[0].mxu0
        %v2542 = vadd.f32 %v2471, %v2541
        %v2543 = vpop.f32.mrb[0].mxu0
        %v2544 = vadd.f32 %v2473, %v2543
        %v2545 = vpop.f32.mrb[0].mxu0
        %v2546 = vadd.f32 %v2475, %v2545
        %v2547 = vpop.f32.mrb[0].mxu0
        %v2548 = vadd.f32 %v2477, %v2547
        %2549 = vmatprep.mubr.bf16.mxu0 %v395
        %2550 = vmatmul.mubr.bf16.gmra.mrb[0].mxu0 %v394
        %v2551 = vpop.f32.mrb[0].mxu0
        %v2552 = vadd.f32 %v2481, %v2551
        %v2553 = vpop.f32.mrb[0].mxu0
        %v2554 = vadd.f32 %v2483, %v2553
        %v2555 = vpop.f32.mrb[0].mxu0
        %v2556 = vadd.f32 %v2485, %v2555
        %v2557 = vpop.f32.mrb[0].mxu0
        %v2558 = vadd.f32 %v2487, %v2557
        %2559 = vmatprep.mubr.bf16.mxu0 %v400
        %2560 = vmatmul.mubr.bf16.gmra.mrb[0].mxu0 %v399
        %v2561 = vpop.f32.mrb[0].mxu0
        %v2562 = vadd.f32 %v2491, %v2561
        %v2563 = vpop.f32.mrb[0].mxu0
        %v2564 = vadd.f32 %v2493, %v2563
        %v2565 = vpop.f32.mrb[0].mxu0
        %v2566 = vadd.f32 %v2495, %v2565
        %v2567 = vpop.f32.mrb[0].mxu0
        %v2568 = vadd.f32 %v2497, %v2567
        %2569 = vmatprep.mubr.bf16.mxu0 %v405
        %2570 = vmatmul.mubr.bf16.gmra.mrb[0].mxu0 %v404
        %v2571 = vpop.f32.mrb[0].mxu0
        %v2572 = vadd.f32 %v2501, %v2571
        %v2573 = vpop.f32.mrb[0].mxu0
        %v2574 = vadd.f32 %v2503, %v2573
        %v2575 = vpop.f32.mrb[0].mxu0
        %v2576 = vpop.f32.mrb[0].mxu0
        %2577 = vdwg.mxu0
        %2578 = vmatprep.subr.bf16.mxu0 %v2064
        %2579 = vmatpush1.bf16.msra.mxu0 %v2063
        %2580 = vmatprep.subr.bf16.mxu0 %v2073
        %2581 = vmatpush1.bf16.msra.mxu0 %v2072
        %2582 = vmatprep.subr.bf16.mxu0 %v2082
        %2583 = vmatpush1.bf16.msra.mxu0 %v2081
        %2584 = vmatprep.subr.bf16.mxu0 %v2091
        %2585 = vmatpush1.bf16.msra.mxu0 %v2090
        %2586 = vmatprep.subr.bf16.mxu0 0
        %2587 = vmatpush1.bf16.msra.mxu0 0
        %2588 = vmatprep.subr.bf16.mxu0 0
        %2589 = vmatpush1.bf16.msra.mxu0 0
        %2590 = vmatprep.subr.bf16.mxu0 0
        %2591 = vmatpush1.bf16.msra.mxu0 0
        %2592 = vmatprep.subr.bf16.mxu0 0
        %2593 = vmatpush1.bf16.msra.mxu0 0
        %2594 = vmatprep.subr.bf16.mxu0 0
        %2595 = vmatpush1.bf16.msra.mxu0 0
        %2596 = vmatprep.subr.bf16.mxu0 0
        %2597 = vmatpush1.bf16.msra.mxu0 0
        %2598 = vmatprep.subr.bf16.mxu0 0
        %2599 = vmatpush1.bf16.msra.mxu0 0
        %2600 = vmatprep.subr.bf16.mxu0 0
        %2601 = vmatpush1.bf16.msra.mxu0 0
        %2602 = vmatprep.subr.bf16.mxu0 0
        %2603 = vmatpush1.bf16.msra.mxu0 0
        %2604 = vmatprep.subr.bf16.mxu0 0
        %2605 = vmatpush1.bf16.msra.mxu0 0
        %2606 = vmatprep.subr.bf16.mxu0 0
        %2607 = vmatpush1.bf16.msra.mxu0 0
        %2608 = vmatprep.subr.bf16.mxu0 0
        %2609 = vmatpush1.bf16.msra.mxu0 0
        %2610 = vmatprep.mubr.bf16.mxu0 0
        %2611 = vmatmul.mubr.bf16.gmra.mrb[0].mxu0 %v2425
        %v2612 = vpop.f32.mrb[0].mxu0
        %v2613 = vadd.f32 %v2542, %v2612
        %v2614 = vpop.f32.mrb[0].mxu0
        %v2615 = vadd.f32 %v2544, %v2614
        %v2616 = vpop.f32.mrb[0].mxu0
        %v2617 = vadd.f32 %v2546, %v2616
        %v2618 = vpop.f32.mrb[0].mxu0
        %v2619 = vadd.f32 %v2548, %v2618
        %2620 = vmatprep.mubr.bf16.mxu0 0
        %2621 = vmatmul.mubr.bf16.gmra.mrb[0].mxu0 %v2428
        %v2622 = vpop.f32.mrb[0].mxu0
        %v2623 = vadd.f32 %v2552, %v2622
        %v2624 = vpop.f32.mrb[0].mxu0
        %v2625 = vadd.f32 %v2554, %v2624
        %v2626 = vpop.f32.mrb[0].mxu0
        %v2627 = vadd.f32 %v2556, %v2626
        %v2628 = vpop.f32.mrb[0].mxu0
        %v2629 = vadd.f32 %v2558, %v2628
        %2630 = vmatprep.mubr.bf16.mxu0 0
        %2631 = vmatmul.mubr.bf16.gmra.mrb[0].mxu0 %v2431
        %v2632 = vpop.f32.mrb[0].mxu0
        %v2633 = vadd.f32 %v2562, %v2632
        %v2634 = vpop.f32.mrb[0].mxu0
        %v2635 = vadd.f32 %v2564, %v2634
        %v2636 = vpop.f32.mrb[0].mxu0
        %v2637 = vadd.f32 %v2566, %v2636
        %v2638 = vpop.f32.mrb[0].mxu0
        %v2639 = vadd.f32 %v2568, %v2638
        %2640 = vmatprep.mubr.bf16.mxu0 0
        %2641 = vmatmul.mubr.bf16.gmra.mrb[0].mxu0 %v2434
        %v2642 = vpop.f32.mrb[0].mxu0
        %v2643 = vadd.f32 %v2572, %v2642
        %v2644 = vpop.f32.mrb[0].mxu0
        %v2645 = vadd.f32 %v2574, %v2644
        %v2646 = vpop.f32.mrb[0].mxu0
        %v2647 = vpop.f32.mrb[0].mxu0
        %2648 = vdwg.mxu0
        %2649 = vmatprep.subr.bf16.mxu0 %v1778
        %2650 = vmatpush1.bf16.msra.mxu0 %v1777
        %2651 = vmatprep.subr.bf16.mxu0 %v1787
        %2652 = vmatpush1.bf16.msra.mxu0 %v1786
        %2653 = vmatprep.subr.bf16.mxu0 %v1796
        %2654 = vmatpush1.bf16.msra.mxu0 %v1795
        %2655 = vmatprep.subr.bf16.mxu0 %v1805
        %2656 = vmatpush1.bf16.msra.mxu0 %v1804
        %2657 = vmatprep.subr.bf16.mxu0 %v1814
        %2658 = vmatpush1.bf16.msra.mxu0 %v1813
        %2659 = vmatprep.subr.bf16.mxu0 %v1823
        %2660 = vmatpush1.bf16.msra.mxu0 %v1822
        %2661 = vmatprep.subr.bf16.mxu0 %v1832
        %2662 = vmatpush1.bf16.msra.mxu0 %v1831
        %2663 = vmatprep.subr.bf16.mxu0 %v1841
        %2664 = vmatpush1.bf16.msra.mxu0 %v1840
        %2665 = vmatprep.subr.bf16.mxu0 %v1850
        %2666 = vmatpush1.bf16.msra.mxu0 %v1849
        %2667 = vmatprep.subr.bf16.mxu0 %v1859
        %2668 = vmatpush1.bf16.msra.mxu0 %v1858
        %2669 = vmatprep.subr.bf16.mxu0 %v1868
        %2670 = vmatpush1.bf16.msra.mxu0 %v1867
        %2671 = vmatprep.subr.bf16.mxu0 %v1877
        %2672 = vmatpush1.bf16.msra.mxu0 %v1876
        %2673 = vmatprep.subr.bf16.mxu0 %v1886
        %2674 = vmatpush1.bf16.msra.mxu0 %v1885
        %2675 = vmatprep.subr.bf16.mxu0 %v1895
        %2676 = vmatpush1.bf16.msra.mxu0 %v1894
        %2677 = vmatprep.subr.bf16.mxu0 %v1904
        %2678 = vmatpush1.bf16.msra.mxu0 %v1903
        %2679 = vmatprep.subr.bf16.mxu0 %v1913
        %2680 = vmatpush1.bf16.msra.mxu0 %v1912
        %2681 = vmatprep.mubr.bf16.mxu0 %v388
        %2682 = vmatmul.mubr.bf16.gmra.mrb[0].mxu0 %v387
        %v2683 = vpop.f32.mrb[0].mxu0
        %v2684 = vadd.f32 0.0, %v2683
        %v2685 = vpop.f32.mrb[0].mxu0
        %v2686 = vadd.f32 0.0, %v2685
        %v2687 = vpop.f32.mrb[0].mxu0
        %v2688 = vadd.f32 0.0, %v2687
        %v2689 = vpop.f32.mrb[0].mxu0
        %v2690 = vadd.f32 0.0, %v2689
        %2691 = vmatprep.mubr.bf16.mxu0 %v393
        %2692 = vmatmul.mubr.bf16.gmra.mrb[0].mxu0 %v392
        %v2693 = vpop.f32.mrb[0].mxu0
        %v2694 = vadd.f32 0.0, %v2693
        %v2695 = vpop.f32.mrb[0].mxu0
        %v2696 = vadd.f32 0.0, %v2695
        %v2697 = vpop.f32.mrb[0].mxu0
        %v2698 = vadd.f32 0.0, %v2697
        %v2699 = vpop.f32.mrb[0].mxu0
        %v2700 = vadd.f32 0.0, %v2699
        %2701 = vmatprep.mubr.bf16.mxu0 %v398
        %2702 = vmatmul.mubr.bf16.gmra.mrb[0].mxu0 %v397
        %v2703 = vpop.f32.mrb[0].mxu0
        %v2704 = vadd.f32 0.0, %v2703
        %v2705 = vpop.f32.mrb[0].mxu0
        %v2706 = vadd.f32 0.0, %v2705
        %v2707 = vpop.f32.mrb[0].mxu0
        %v2708 = vadd.f32 0.0, %v2707
        %v2709 = vpop.f32.mrb[0].mxu0
        %v2710 = vadd.f32 0.0, %v2709
        %2711 = vmatprep.mubr.bf16.mxu0 %v403
        %2712 = vmatmul.mubr.bf16.gmra.mrb[0].mxu0 %v402
        %v2713 = vpop.f32.mrb[0].mxu0
        %v2714 = vadd.f32 0.0, %v2713
        %v2715 = vpop.f32.mrb[0].mxu0
        %v2716 = vadd.f32 0.0, %v2715
        %v2717 = vpop.f32.mrb[0].mxu0
        %v2718 = vpop.f32.mrb[0].mxu0
        %2719 = vdwg.mxu0
        %2720 = vmatprep.subr.bf16.mxu0 %v1922
        %2721 = vmatpush1.bf16.msra.mxu0 %v1921
        %2722 = vmatprep.subr.bf16.mxu0 %v1931
        %2723 = vmatpush1.bf16.msra.mxu0 %v1930
        %2724 = vmatprep.subr.bf16.mxu0 %v1940
        %2725 = vmatpush1.bf16.msra.mxu0 %v1939
        %2726 = vmatprep.subr.bf16.mxu0 %v1949
        %2727 = vmatpush1.bf16.msra.mxu0 %v1948
        %2728 = vmatprep.subr.bf16.mxu0 %v1958
        %2729 = vmatpush1.bf16.msra.mxu0 %v1957
        %2730 = vmatprep.subr.bf16.mxu0 %v1967
        %2731 = vmatpush1.bf16.msra.mxu0 %v1966
        %2732 = vmatprep.subr.bf16.mxu0 %v1976
        %2733 = vmatpush1.bf16.msra.mxu0 %v1975
        %2734 = vmatprep.subr.bf16.mxu0 %v1985
        %2735 = vmatpush1.bf16.msra.mxu0 %v1984
        %2736 = vmatprep.subr.bf16.mxu0 %v1994
        %2737 = vmatpush1.bf16.msra.mxu0 %v1993
        %2738 = vmatprep.subr.bf16.mxu0 %v2003
        %2739 = vmatpush1.bf16.msra.mxu0 %v2002
        %2740 = vmatprep.subr.bf16.mxu0 %v2012
        %2741 = vmatpush1.bf16.msra.mxu0 %v2011
        %2742 = vmatprep.subr.bf16.mxu0 %v2021
        %2743 = vmatpush1.bf16.msra.mxu0 %v2020
        %2744 = vmatprep.subr.bf16.mxu0 %v2030
        %2745 = vmatpush1.bf16.msra.mxu0 %v2029
        %2746 = vmatprep.subr.bf16.mxu0 %v2039
        %2747 = vmatpush1.bf16.msra.mxu0 %v2038
        %2748 = vmatprep.subr.bf16.mxu0 %v2048
        %2749 = vmatpush1.bf16.msra.mxu0 %v2047
        %2750 = vmatprep.subr.bf16.mxu0 %v2057
        %2751 = vmatpush1.bf16.msra.mxu0 %v2056
        %2752 = vmatprep.mubr.bf16.mxu0 %v390
        %2753 = vmatmul.mubr.bf16.gmra.mrb[0].mxu0 %v389
        %v2754 = vpop.f32.mrb[0].mxu0
        %v2755 = vadd.f32 %v2684, %v2754
        %v2756 = vpop.f32.mrb[0].mxu0
        %v2757 = vadd.f32 %v2686, %v2756
        %v2758 = vpop.f32.mrb[0].mxu0
        %v2759 = vadd.f32 %v2688, %v2758
        %v2760 = vpop.f32.mrb[0].mxu0
        %v2761 = vadd.f32 %v2690, %v2760
        %2762 = vmatprep.mubr.bf16.mxu0 %v395
        %2763 = vmatmul.mubr.bf16.gmra.mrb[0].mxu0 %v394
        %v2764 = vpop.f32.mrb[0].mxu0
        %v2765 = vadd.f32 %v2694, %v2764
        %v2766 = vpop.f32.mrb[0].mxu0
        %v2767 = vadd.f32 %v2696, %v2766
        %v2768 = vpop.f32.mrb[0].mxu0
        %v2769 = vadd.f32 %v2698, %v2768
        %v2770 = vpop.f32.mrb[0].mxu0
        %v2771 = vadd.f32 %v2700, %v2770
        %2772 = vmatprep.mubr.bf16.mxu0 %v400
        %2773 = vmatmul.mubr.bf16.gmra.mrb[0].mxu0 %v399
        %v2774 = vpop.f32.mrb[0].mxu0
        %v2775 = vadd.f32 %v2704, %v2774
        %v2776 = vpop.f32.mrb[0].mxu0
        %v2777 = vadd.f32 %v2706, %v2776
        %v2778 = vpop.f32.mrb[0].mxu0
        %v2779 = vadd.f32 %v2708, %v2778
        %v2780 = vpop.f32.mrb[0].mxu0
        %v2781 = vadd.f32 %v2710, %v2780
        %2782 = vmatprep.mubr.bf16.mxu0 %v405
        %2783 = vmatmul.mubr.bf16.gmra.mrb[0].mxu0 %v404
        %v2784 = vpop.f32.mrb[0].mxu0
        %v2785 = vadd.f32 %v2714, %v2784
        %v2786 = vpop.f32.mrb[0].mxu0
        %v2787 = vadd.f32 %v2716, %v2786
        %v2788 = vpop.f32.mrb[0].mxu0
        %v2789 = vpop.f32.mrb[0].mxu0
        %2790 = vdwg.mxu0
        %2791 = vmatprep.subr.bf16.mxu0 %v2066
        %2792 = vmatpush1.bf16.msra.mxu0 %v2065
        %2793 = vmatprep.subr.bf16.mxu0 %v2075
        %2794 = vmatpush1.bf16.msra.mxu0 %v2074
        %2795 = vmatprep.subr.bf16.mxu0 %v2084
        %2796 = vmatpush1.bf16.msra.mxu0 %v2083
        %2797 = vmatprep.subr.bf16.mxu0 %v2093
        %2798 = vmatpush1.bf16.msra.mxu0 %v2092
        %2799 = vmatprep.subr.bf16.mxu0 0
        %2800 = vmatpush1.bf16.msra.mxu0 0
        %2801 = vmatprep.subr.bf16.mxu0 0
        %2802 = vmatpush1.bf16.msra.mxu0 0
        %2803 = vmatprep.subr.bf16.mxu0 0
        %2804 = vmatpush1.bf16.msra.mxu0 0
        %2805 = vmatprep.subr.bf16.mxu0 0
        %2806 = vmatpush1.bf16.msra.mxu0 0
        %2807 = vmatprep.subr.bf16.mxu0 0
        %2808 = vmatpush1.bf16.msra.mxu0 0
        %2809 = vmatprep.subr.bf16.mxu0 0
        %2810 = vmatpush1.bf16.msra.mxu0 0
        %2811 = vmatprep.subr.bf16.mxu0 0
        %2812 = vmatpush1.bf16.msra.mxu0 0
        %2813 = vmatprep.subr.bf16.mxu0 0
        %2814 = vmatpush1.bf16.msra.mxu0 0
        %2815 = vmatprep.subr.bf16.mxu0 0
        %2816 = vmatpush1.bf16.msra.mxu0 0
        %2817 = vmatprep.subr.bf16.mxu0 0
        %2818 = vmatpush1.bf16.msra.mxu0 0
        %2819 = vmatprep.subr.bf16.mxu0 0
        %2820 = vmatpush1.bf16.msra.mxu0 0
        %2821 = vmatprep.subr.bf16.mxu0 0
        %2822 = vmatpush1.bf16.msra.mxu0 0
        %2823 = vmatprep.mubr.bf16.mxu0 0
        %2824 = vmatmul.mubr.bf16.gmra.mrb[0].mxu0 %v2425
        %v2825 = vpop.f32.mrb[0].mxu0
        %v2826 = vadd.f32 %v2755, %v2825
        %v2827 = vpop.f32.mrb[0].mxu0
        %v2828 = vadd.f32 %v2757, %v2827
        %v2829 = vpop.f32.mrb[0].mxu0
        %v2830 = vadd.f32 %v2759, %v2829
        %v2831 = vpop.f32.mrb[0].mxu0
        %v2832 = vadd.f32 %v2761, %v2831
        %2833 = vmatprep.mubr.bf16.mxu0 0
        %2834 = vmatmul.mubr.bf16.gmra.mrb[0].mxu0 %v2428
        %v2835 = vpop.f32.mrb[0].mxu0
        %v2836 = vadd.f32 %v2765, %v2835
        %v2837 = vpop.f32.mrb[0].mxu0
        %v2838 = vadd.f32 %v2767, %v2837
        %v2839 = vpop.f32.mrb[0].mxu0
        %v2840 = vadd.f32 %v2769, %v2839
        %v2841 = vpop.f32.mrb[0].mxu0
        %v2842 = vadd.f32 %v2771, %v2841
        %2843 = vmatprep.mubr.bf16.mxu0 0
        %2844 = vmatmul.mubr.bf16.gmra.mrb[0].mxu0 %v2431
        %v2845 = vpop.f32.mrb[0].mxu0
        %v2846 = vadd.f32 %v2775, %v2845
        %v2847 = vpop.f32.mrb[0].mxu0
        %v2848 = vadd.f32 %v2777, %v2847
        %v2849 = vpop.f32.mrb[0].mxu0
        %v2850 = vadd.f32 %v2779, %v2849
        %v2851 = vpop.f32.mrb[0].mxu0
        %v2852 = vadd.f32 %v2781, %v2851
        %2853 = vmatprep.mubr.bf16.mxu0 0
        %2854 = vmatmul.mubr.bf16.gmra.mrb[0].mxu0 %v2434
        %v2855 = vpop.f32.mrb[0].mxu0
        %v2856 = vadd.f32 %v2785, %v2855
        %v2857 = vpop.f32.mrb[0].mxu0
        %v2858 = vadd.f32 %v2787, %v2857
        %v2859 = vpop.f32.mrb[0].mxu0
        %v2860 = vpop.f32.mrb[0].mxu0
        %2861 = vdwg.mxu0
        %2862 = vmatprep.subr.bf16.mxu0 %v1780
        %2863 = vmatpush1.bf16.msra.mxu0 %v1779
        %2864 = vmatprep.subr.bf16.mxu0 %v1789
        %2865 = vmatpush1.bf16.msra.mxu0 %v1788
        %2866 = vmatprep.subr.bf16.mxu0 %v1798
        %2867 = vmatpush1.bf16.msra.mxu0 %v1797
        %2868 = vmatprep.subr.bf16.mxu0 %v1807
        %2869 = vmatpush1.bf16.msra.mxu0 %v1806
        %2870 = vmatprep.subr.bf16.mxu0 %v1816
        %2871 = vmatpush1.bf16.msra.mxu0 %v1815
        %2872 = vmatprep.subr.bf16.mxu0 %v1825
        %2873 = vmatpush1.bf16.msra.mxu0 %v1824
        %2874 = vmatprep.subr.bf16.mxu0 %v1834
        %2875 = vmatpush1.bf16.msra.mxu0 %v1833
        %2876 = vmatprep.subr.bf16.mxu0 %v1843
        %2877 = vmatpush1.bf16.msra.mxu0 %v1842
        %2878 = vmatprep.subr.bf16.mxu0 %v1852
        %2879 = vmatpush1.bf16.msra.mxu0 %v1851
        %2880 = vmatprep.subr.bf16.mxu0 %v1861
        %2881 = vmatpush1.bf16.msra.mxu0 %v1860
        %2882 = vmatprep.subr.bf16.mxu0 %v1870
        %2883 = vmatpush1.bf16.msra.mxu0 %v1869
        %2884 = vmatprep.subr.bf16.mxu0 %v1879
        %2885 = vmatpush1.bf16.msra.mxu0 %v1878
        %2886 = vmatprep.subr.bf16.mxu0 %v1888
        %2887 = vmatpush1.bf16.msra.mxu0 %v1887
        %2888 = vmatprep.subr.bf16.mxu0 %v1897
        %2889 = vmatpush1.bf16.msra.mxu0 %v1896
        %2890 = vmatprep.subr.bf16.mxu0 %v1906
        %2891 = vmatpush1.bf16.msra.mxu0 %v1905
        %2892 = vmatprep.subr.bf16.mxu0 %v1915
        %2893 = vmatpush1.bf16.msra.mxu0 %v1914
        %2894 = vmatprep.mubr.bf16.mxu0 %v388
        %2895 = vmatmul.mubr.bf16.gmra.mrb[0].mxu0 %v387
        %v2896 = vpop.f32.mrb[0].mxu0
        %v2897 = vadd.f32 0.0, %v2896
        %v2898 = vpop.f32.mrb[0].mxu0
        %v2899 = vadd.f32 0.0, %v2898
        %v2900 = vpop.f32.mrb[0].mxu0
        %v2901 = vadd.f32 0.0, %v2900
        %v2902 = vpop.f32.mrb[0].mxu0
        %v2903 = vadd.f32 0.0, %v2902
        %2904 = vmatprep.mubr.bf16.mxu0 %v393
        %2905 = vmatmul.mubr.bf16.gmra.mrb[0].mxu0 %v392
        %v2906 = vpop.f32.mrb[0].mxu0
        %v2907 = vadd.f32 0.0, %v2906
        %v2908 = vpop.f32.mrb[0].mxu0
        %v2909 = vadd.f32 0.0, %v2908
        %v2910 = vpop.f32.mrb[0].mxu0
        %v2911 = vadd.f32 0.0, %v2910
        %v2912 = vpop.f32.mrb[0].mxu0
        %v2913 = vadd.f32 0.0, %v2912
        %2914 = vmatprep.mubr.bf16.mxu0 %v398
        %2915 = vmatmul.mubr.bf16.gmra.mrb[0].mxu0 %v397
        %v2916 = vpop.f32.mrb[0].mxu0
        %v2917 = vadd.f32 0.0, %v2916
        %v2918 = vpop.f32.mrb[0].mxu0
        %v2919 = vadd.f32 0.0, %v2918
        %v2920 = vpop.f32.mrb[0].mxu0
        %v2921 = vadd.f32 0.0, %v2920
        %v2922 = vpop.f32.mrb[0].mxu0
        %v2923 = vadd.f32 0.0, %v2922
        %2924 = vmatprep.mubr.bf16.mxu0 %v403
        %2925 = vmatmul.mubr.bf16.gmra.mrb[0].mxu0 %v402
        %v2926 = vpop.f32.mrb[0].mxu0
        %v2927 = vadd.f32 0.0, %v2926
        %v2928 = vpop.f32.mrb[0].mxu0
        %v2929 = vadd.f32 0.0, %v2928
        %v2930 = vpop.f32.mrb[0].mxu0
        %v2931 = vpop.f32.mrb[0].mxu0
        %2932 = vdwg.mxu0
        %2933 = vmatprep.subr.bf16.mxu0 %v1924
        %2934 = vmatpush1.bf16.msra.mxu0 %v1923
        %2935 = vmatprep.subr.bf16.mxu0 %v1933
        %2936 = vmatpush1.bf16.msra.mxu0 %v1932
        %2937 = vmatprep.subr.bf16.mxu0 %v1942
        %2938 = vmatpush1.bf16.msra.mxu0 %v1941
        %2939 = vmatprep.subr.bf16.mxu0 %v1951
        %2940 = vmatpush1.bf16.msra.mxu0 %v1950
        %2941 = vmatprep.subr.bf16.mxu0 %v1960
        %2942 = vmatpush1.bf16.msra.mxu0 %v1959
        %2943 = vmatprep.subr.bf16.mxu0 %v1969
        %2944 = vmatpush1.bf16.msra.mxu0 %v1968
        %2945 = vmatprep.subr.bf16.mxu0 %v1978
        %2946 = vmatpush1.bf16.msra.mxu0 %v1977
        %2947 = vmatprep.subr.bf16.mxu0 %v1987
        %2948 = vmatpush1.bf16.msra.mxu0 %v1986
        %2949 = vmatprep.subr.bf16.mxu0 %v1996
        %2950 = vmatpush1.bf16.msra.mxu0 %v1995
        %2951 = vmatprep.subr.bf16.mxu0 %v2005
        %2952 = vmatpush1.bf16.msra.mxu0 %v2004
        %2953 = vmatprep.subr.bf16.mxu0 %v2014
        %2954 = vmatpush1.bf16.msra.mxu0 %v2013
        %2955 = vmatprep.subr.bf16.mxu0 %v2023
        %2956 = vmatpush1.bf16.msra.mxu0 %v2022
        %2957 = vmatprep.subr.bf16.mxu0 %v2032
        %2958 = vmatpush1.bf16.msra.mxu0 %v2031
        %2959 = vmatprep.subr.bf16.mxu0 %v2041
        %2960 = vmatpush1.bf16.msra.mxu0 %v2040
        %2961 = vmatprep.subr.bf16.mxu0 %v2050
        %2962 = vmatpush1.bf16.msra.mxu0 %v2049
        %2963 = vmatprep.subr.bf16.mxu0 %v2059
        %2964 = vmatpush1.bf16.msra.mxu0 %v2058
        %2965 = vmatprep.mubr.bf16.mxu0 %v390
        %2966 = vmatmul.mubr.bf16.gmra.mrb[0].mxu0 %v389
        %v2967 = vpop.f32.mrb[0].mxu0
        %v2968 = vadd.f32 %v2897, %v2967
        %v2969 = vpop.f32.mrb[0].mxu0
        %v2970 = vadd.f32 %v2899, %v2969
        %v2971 = vpop.f32.mrb[0].mxu0
        %v2972 = vadd.f32 %v2901, %v2971
        %v2973 = vpop.f32.mrb[0].mxu0
        %v2974 = vadd.f32 %v2903, %v2973
        %2975 = vmatprep.mubr.bf16.mxu0 %v395
        %2976 = vmatmul.mubr.bf16.gmra.mrb[0].mxu0 %v394
        %v2977 = vpop.f32.mrb[0].mxu0
        %v2978 = vadd.f32 %v2907, %v2977
        %v2979 = vpop.f32.mrb[0].mxu0
        %v2980 = vadd.f32 %v2909, %v2979
        %v2981 = vpop.f32.mrb[0].mxu0
        %v2982 = vadd.f32 %v2911, %v2981
        %v2983 = vpop.f32.mrb[0].mxu0
        %v2984 = vadd.f32 %v2913, %v2983
        %2985 = vmatprep.mubr.bf16.mxu0 %v400
        %2986 = vmatmul.mubr.bf16.gmra.mrb[0].mxu0 %v399
        %v2987 = vpop.f32.mrb[0].mxu0
        %v2988 = vadd.f32 %v2917, %v2987
        %v2989 = vpop.f32.mrb[0].mxu0
        %v2990 = vadd.f32 %v2919, %v2989
        %v2991 = vpop.f32.mrb[0].mxu0
        %v2992 = vadd.f32 %v2921, %v2991
        %v2993 = vpop.f32.mrb[0].mxu0
        %v2994 = vadd.f32 %v2923, %v2993
        %2995 = vmatprep.mubr.bf16.mxu0 %v405
        %2996 = vmatmul.mubr.bf16.gmra.mrb[0].mxu0 %v404
        %v2997 = vpop.f32.mrb[0].mxu0
        %v2998 = vadd.f32 %v2927, %v2997
        %v2999 = vpop.f32.mrb[0].mxu0
        %v3000 = vadd.f32 %v2929, %v2999
        %v3001 = vpop.f32.mrb[0].mxu0
        %v3002 = vpop.f32.mrb[0].mxu0
        %3003 = vdwg.mxu0
        %3004 = vmatprep.subr.bf16.mxu0 %v2068
        %3005 = vmatpush1.bf16.msra.mxu0 %v2067
        %3006 = vmatprep.subr.bf16.mxu0 %v2077
        %3007 = vmatpush1.bf16.msra.mxu0 %v2076
        %3008 = vmatprep.subr.bf16.mxu0 %v2086
        %3009 = vmatpush1.bf16.msra.mxu0 %v2085
        %3010 = vmatprep.subr.bf16.mxu0 %v2095
        %3011 = vmatpush1.bf16.msra.mxu0 %v2094
        %3012 = vmatprep.subr.bf16.mxu0 0
        %3013 = vmatpush1.bf16.msra.mxu0 0
        %3014 = vmatprep.subr.bf16.mxu0 0
        %3015 = vmatpush1.bf16.msra.mxu0 0
        %3016 = vmatprep.subr.bf16.mxu0 0
        %3017 = vmatpush1.bf16.msra.mxu0 0
        %3018 = vmatprep.subr.bf16.mxu0 0
        %3019 = vmatpush1.bf16.msra.mxu0 0
        %3020 = vmatprep.subr.bf16.mxu0 0
        %3021 = vmatpush1.bf16.msra.mxu0 0
        %3022 = vmatprep.subr.bf16.mxu0 0
        %3023 = vmatpush1.bf16.msra.mxu0 0
        %3024 = vmatprep.subr.bf16.mxu0 0
        %3025 = vmatpush1.bf16.msra.mxu0 0
        %3026 = vmatprep.subr.bf16.mxu0 0
        %3027 = vmatpush1.bf16.msra.mxu0 0
        %3028 = vmatprep.subr.bf16.mxu0 0
        %3029 = vmatpush1.bf16.msra.mxu0 0
        %3030 = vmatprep.subr.bf16.mxu0 0
        %3031 = vmatpush1.bf16.msra.mxu0 0
        %3032 = vmatprep.subr.bf16.mxu0 0
        %3033 = vmatpush1.bf16.msra.mxu0 0
        %3034 = vmatprep.subr.bf16.mxu0 0
        %3035 = vmatpush1.bf16.msra.mxu0 0
        %3036 = vmatprep.mubr.bf16.mxu0 0
        %3037 = vmatmul.mubr.bf16.gmra.mrb[0].mxu0 %v2425
        %v3038 = vpop.f32.mrb[0].mxu0
        %v3039 = vadd.f32 %v2968, %v3038
        %v3040 = vpop.f32.mrb[0].mxu0
        %v3041 = vadd.f32 %v2970, %v3040
        %v3042 = vpop.f32.mrb[0].mxu0
        %v3043 = vadd.f32 %v2972, %v3042
        %v3044 = vpop.f32.mrb[0].mxu0
        %v3045 = vadd.f32 %v2974, %v3044
        %3046 = vmatprep.mubr.bf16.mxu0 0
        %3047 = vmatmul.mubr.bf16.gmra.mrb[0].mxu0 %v2428
        %v3048 = vpop.f32.mrb[0].mxu0
        %v3049 = vadd.f32 %v2978, %v3048
        %v3050 = vpop.f32.mrb[0].mxu0
        %v3051 = vadd.f32 %v2980, %v3050
        %v3052 = vpop.f32.mrb[0].mxu0
        %v3053 = vadd.f32 %v2982, %v3052
        %v3054 = vpop.f32.mrb[0].mxu0
        %v3055 = vadd.f32 %v2984, %v3054
        %3056 = vmatprep.mubr.bf16.mxu0 0
        %3057 = vmatmul.mubr.bf16.gmra.mrb[0].mxu0 %v2431
        %v3058 = vpop.f32.mrb[0].mxu0
        %v3059 = vadd.f32 %v2988, %v3058
        %v3060 = vpop.f32.mrb[0].mxu0
        %v3061 = vadd.f32 %v2990, %v3060
        %v3062 = vpop.f32.mrb[0].mxu0
        %v3063 = vadd.f32 %v2992, %v3062
        %v3064 = vpop.f32.mrb[0].mxu0
        %v3065 = vadd.f32 %v2994, %v3064
        %3066 = vmatprep.mubr.bf16.mxu0 0
        %3067 = vmatmul.mubr.bf16.gmra.mrb[0].mxu0 %v2434
        %v3068 = vpop.f32.mrb[0].mxu0
        %v3069 = vadd.f32 %v2998, %v3068
        %v3070 = vpop.f32.mrb[0].mxu0
        %v3071 = vadd.f32 %v3000, %v3070
        %v3072 = vpop.f32.mrb[0].mxu0
        %v3073 = vpop.f32.mrb[0].mxu0
        %3074 = vdwg.mxu0
        %3075 = vmatprep.subr.bf16.mxu0 %v1782
        %3076 = vmatpush1.bf16.msra.mxu0 %v1781
        %3077 = vmatprep.subr.bf16.mxu0 %v1791
        %3078 = vmatpush1.bf16.msra.mxu0 %v1790
        %3079 = vmatprep.subr.bf16.mxu0 %v1800
        %3080 = vmatpush1.bf16.msra.mxu0 %v1799
        %3081 = vmatprep.subr.bf16.mxu0 %v1809
        %3082 = vmatpush1.bf16.msra.mxu0 %v1808
        %3083 = vmatprep.subr.bf16.mxu0 %v1818
        %3084 = vmatpush1.bf16.msra.mxu0 %v1817
        %3085 = vmatprep.subr.bf16.mxu0 %v1827
        %3086 = vmatpush1.bf16.msra.mxu0 %v1826
        %3087 = vmatprep.subr.bf16.mxu0 %v1836
        %3088 = vmatpush1.bf16.msra.mxu0 %v1835
        %3089 = vmatprep.subr.bf16.mxu0 %v1845
        %3090 = vmatpush1.bf16.msra.mxu0 %v1844
        %3091 = vmatprep.subr.bf16.mxu0 %v1854
        %3092 = vmatpush1.bf16.msra.mxu0 %v1853
        %3093 = vmatprep.subr.bf16.mxu0 %v1863
        %3094 = vmatpush1.bf16.msra.mxu0 %v1862
        %3095 = vmatprep.subr.bf16.mxu0 %v1872
        %3096 = vmatpush1.bf16.msra.mxu0 %v1871
        %3097 = vmatprep.subr.bf16.mxu0 %v1881
        %3098 = vmatpush1.bf16.msra.mxu0 %v1880
        %3099 = vmatprep.subr.bf16.mxu0 %v1890
        %3100 = vmatpush1.bf16.msra.mxu0 %v1889
        %3101 = vmatprep.subr.bf16.mxu0 %v1899
        %3102 = vmatpush1.bf16.msra.mxu0 %v1898
        %3103 = vmatprep.subr.bf16.mxu0 %v1908
        %3104 = vmatpush1.bf16.msra.mxu0 %v1907
        %3105 = vmatprep.subr.bf16.mxu0 %v1917
        %3106 = vmatpush1.bf16.msra.mxu0 %v1916
        %3107 = vmatprep.mubr.bf16.mxu0 %v388
        %3108 = vmatmul.mubr.bf16.gmra.mrb[0].mxu0 %v387
        %v3109 = vpop.f32.mrb[0].mxu0
        %v3110 = vadd.f32 0.0, %v3109
        %v3111 = vpop.f32.mrb[0].mxu0
        %v3112 = vadd.f32 0.0, %v3111
        %v3113 = vpop.f32.mrb[0].mxu0
        %v3114 = vadd.f32 0.0, %v3113
        %v3115 = vpop.f32.mrb[0].mxu0
        %v3116 = vadd.f32 0.0, %v3115
        %3117 = vmatprep.mubr.bf16.mxu0 %v393
        %3118 = vmatmul.mubr.bf16.gmra.mrb[0].mxu0 %v392
        %v3119 = vpop.f32.mrb[0].mxu0
        %v3120 = vadd.f32 0.0, %v3119
        %v3121 = vpop.f32.mrb[0].mxu0
        %v3122 = vadd.f32 0.0, %v3121
        %v3123 = vpop.f32.mrb[0].mxu0
        %v3124 = vadd.f32 0.0, %v3123
        %v3125 = vpop.f32.mrb[0].mxu0
        %v3126 = vadd.f32 0.0, %v3125
        %3127 = vmatprep.mubr.bf16.mxu0 %v398
        %3128 = vmatmul.mubr.bf16.gmra.mrb[0].mxu0 %v397
        %v3129 = vpop.f32.mrb[0].mxu0
        %v3130 = vadd.f32 0.0, %v3129
        %v3131 = vpop.f32.mrb[0].mxu0
        %v3132 = vadd.f32 0.0, %v3131
        %v3133 = vpop.f32.mrb[0].mxu0
        %v3134 = vadd.f32 0.0, %v3133
        %v3135 = vpop.f32.mrb[0].mxu0
        %v3136 = vadd.f32 0.0, %v3135
        %3137 = vmatprep.mubr.bf16.mxu0 %v403
        %3138 = vmatmul.mubr.bf16.gmra.mrb[0].mxu0 %v402
        %v3139 = vpop.f32.mrb[0].mxu0
        %v3140 = vadd.f32 0.0, %v3139
        %v3141 = vpop.f32.mrb[0].mxu0
        %v3142 = vadd.f32 0.0, %v3141
        %v3143 = vpop.f32.mrb[0].mxu0
        %v3144 = vpop.f32.mrb[0].mxu0
        %3145 = vdwg.mxu0
        %3146 = vmatprep.subr.bf16.mxu0 %v1926
        %3147 = vmatpush1.bf16.msra.mxu0 %v1925
        %3148 = vmatprep.subr.bf16.mxu0 %v1935
        %3149 = vmatpush1.bf16.msra.mxu0 %v1934
        %3150 = vmatprep.subr.bf16.mxu0 %v1944
        %3151 = vmatpush1.bf16.msra.mxu0 %v1943
        %3152 = vmatprep.subr.bf16.mxu0 %v1953
        %3153 = vmatpush1.bf16.msra.mxu0 %v1952
        %3154 = vmatprep.subr.bf16.mxu0 %v1962
        %3155 = vmatpush1.bf16.msra.mxu0 %v1961
        %3156 = vmatprep.subr.bf16.mxu0 %v1971
        %3157 = vmatpush1.bf16.msra.mxu0 %v1970
        %3158 = vmatprep.subr.bf16.mxu0 %v1980
        %3159 = vmatpush1.bf16.msra.mxu0 %v1979
        %3160 = vmatprep.subr.bf16.mxu0 %v1989
        %3161 = vmatpush1.bf16.msra.mxu0 %v1988
        %3162 = vmatprep.subr.bf16.mxu0 %v1998
        %3163 = vmatpush1.bf16.msra.mxu0 %v1997
        %3164 = vmatprep.subr.bf16.mxu0 %v2007
        %3165 = vmatpush1.bf16.msra.mxu0 %v2006
        %3166 = vmatprep.subr.bf16.mxu0 %v2016
        %3167 = vmatpush1.bf16.msra.mxu0 %v2015
        %3168 = vmatprep.subr.bf16.mxu0 %v2025
        %3169 = vmatpush1.bf16.msra.mxu0 %v2024
        %3170 = vmatprep.subr.bf16.mxu0 %v2034
        %3171 = vmatpush1.bf16.msra.mxu0 %v2033
        %3172 = vmatprep.subr.bf16.mxu0 %v2043
        %3173 = vmatpush1.bf16.msra.mxu0 %v2042
        %3174 = vmatprep.subr.bf16.mxu0 %v2052
        %3175 = vmatpush1.bf16.msra.mxu0 %v2051
        %3176 = vmatprep.subr.bf16.mxu0 %v2061
        %3177 = vmatpush1.bf16.msra.mxu0 %v2060
        %3178 = vmatprep.mubr.bf16.mxu0 %v390
        %3179 = vmatmul.mubr.bf16.gmra.mrb[0].mxu0 %v389
        %v3180 = vpop.f32.mrb[0].mxu0
        %v3181 = vadd.f32 %v3110, %v3180
        %v3182 = vpop.f32.mrb[0].mxu0
        %v3183 = vadd.f32 %v3112, %v3182
        %v3184 = vpop.f32.mrb[0].mxu0
        %v3185 = vadd.f32 %v3114, %v3184
        %v3186 = vpop.f32.mrb[0].mxu0
        %v3187 = vadd.f32 %v3116, %v3186
        %3188 = vmatprep.mubr.bf16.mxu0 %v395
        %3189 = vmatmul.mubr.bf16.gmra.mrb[0].mxu0 %v394
        %v3190 = vpop.f32.mrb[0].mxu0
        %v3191 = vadd.f32 %v3120, %v3190
        %v3192 = vpop.f32.mrb[0].mxu0
        %v3193 = vadd.f32 %v3122, %v3192
        %v3194 = vpop.f32.mrb[0].mxu0
        %v3195 = vadd.f32 %v3124, %v3194
        %v3196 = vpop.f32.mrb[0].mxu0
        %v3197 = vadd.f32 %v3126, %v3196
        %3198 = vmatprep.mubr.bf16.mxu0 %v400
        %3199 = vmatmul.mubr.bf16.gmra.mrb[0].mxu0 %v399
        %v3200 = vpop.f32.mrb[0].mxu0
        %v3201 = vadd.f32 %v3130, %v3200
        %v3202 = vpop.f32.mrb[0].mxu0
        %v3203 = vadd.f32 %v3132, %v3202
        %v3204 = vpop.f32.mrb[0].mxu0
        %v3205 = vadd.f32 %v3134, %v3204
        %v3206 = vpop.f32.mrb[0].mxu0
        %v3207 = vadd.f32 %v3136, %v3206
        %3208 = vmatprep.mubr.bf16.mxu0 %v405
        %3209 = vmatmul.mubr.bf16.gmra.mrb[0].mxu0 %v404
        %v3210 = vpop.f32.mrb[0].mxu0
        %v3211 = vadd.f32 %v3140, %v3210
        %v3212 = vpop.f32.mrb[0].mxu0
        %v3213 = vadd.f32 %v3142, %v3212
        %v3214 = vpop.f32.mrb[0].mxu0
        %v3215 = vpop.f32.mrb[0].mxu0
        %3216 = vdwg.mxu0
        %3217 = vmatprep.subr.bf16.mxu0 %v2070
        %3218 = vmatpush1.bf16.msra.mxu0 %v2069
        %3219 = vmatprep.subr.bf16.mxu0 %v2079
        %3220 = vmatpush1.bf16.msra.mxu0 %v2078
        %3221 = vmatprep.subr.bf16.mxu0 %v2088
        %3222 = vmatpush1.bf16.msra.mxu0 %v2087
        %3223 = vmatprep.subr.bf16.mxu0 %v2097
        %3224 = vmatpush1.bf16.msra.mxu0 %v2096
        %3225 = vmatprep.subr.bf16.mxu0 0
        %3226 = vmatpush1.bf16.msra.mxu0 0
        %3227 = vmatprep.subr.bf16.mxu0 0
        %3228 = vmatpush1.bf16.msra.mxu0 0
        %3229 = vmatprep.subr.bf16.mxu0 0
        %3230 = vmatpush1.bf16.msra.mxu0 0
        %3231 = vmatprep.subr.bf16.mxu0 0
        %3232 = vmatpush1.bf16.msra.mxu0 0
        %3233 = vmatprep.subr.bf16.mxu0 0
        %3234 = vmatpush1.bf16.msra.mxu0 0
        %3235 = vmatprep.subr.bf16.mxu0 0
        %3236 = vmatpush1.bf16.msra.mxu0 0
        %3237 = vmatprep.subr.bf16.mxu0 0
        %3238 = vmatpush1.bf16.msra.mxu0 0
        %3239 = vmatprep.subr.bf16.mxu0 0
        %3240 = vmatpush1.bf16.msra.mxu0 0
        %3241 = vmatprep.subr.bf16.mxu0 0
        %3242 = vmatpush1.bf16.msra.mxu0 0
        %3243 = vmatprep.subr.bf16.mxu0 0
        %3244 = vmatpush1.bf16.msra.mxu0 0
        %3245 = vmatprep.subr.bf16.mxu0 0
        %3246 = vmatpush1.bf16.msra.mxu0 0
        %3247 = vmatprep.subr.bf16.mxu0 0
        %3248 = vmatpush1.bf16.msra.mxu0 0
        %3249 = vmatprep.mubr.bf16.mxu0 0
        %3250 = vmatmul.mubr.bf16.gmra.mrb[0].mxu0 %v2425
        %v3251 = vpop.f32.mrb[0].mxu0
        %v3252 = vadd.f32 %v3181, %v3251
        %v3253 = vpop.f32.mrb[0].mxu0
        %v3254 = vadd.f32 %v3183, %v3253
        %v3255 = vpop.f32.mrb[0].mxu0
        %v3256 = vadd.f32 %v3185, %v3255
        %v3257 = vpop.f32.mrb[0].mxu0
        %v3258 = vadd.f32 %v3187, %v3257
        %3259 = vmatprep.mubr.bf16.mxu0 0
        %3260 = vmatmul.mubr.bf16.gmra.mrb[0].mxu0 %v2428
        %v3261 = vpop.f32.mrb[0].mxu0
        %v3262 = vadd.f32 %v3191, %v3261
        %v3263 = vpop.f32.mrb[0].mxu0
        %v3264 = vadd.f32 %v3193, %v3263
        %v3265 = vpop.f32.mrb[0].mxu0
        %v3266 = vadd.f32 %v3195, %v3265
        %v3267 = vpop.f32.mrb[0].mxu0
        %v3268 = vadd.f32 %v3197, %v3267
        %3269 = vmatprep.mubr.bf16.mxu0 0
        %3270 = vmatmul.mubr.bf16.gmra.mrb[0].mxu0 %v2431
        %v3271 = vpop.f32.mrb[0].mxu0
        %v3272 = vadd.f32 %v3201, %v3271
        %v3273 = vpop.f32.mrb[0].mxu0
        %v3274 = vadd.f32 %v3203, %v3273
        %v3275 = vpop.f32.mrb[0].mxu0
        %v3276 = vadd.f32 %v3205, %v3275
        %v3277 = vpop.f32.mrb[0].mxu0
        %v3278 = vadd.f32 %v3207, %v3277
        %3279 = vmatprep.mubr.bf16.mxu0 0
        %3280 = vmatmul.mubr.bf16.gmra.mrb[0].mxu0 %v2434
        %v3281 = vpop.f32.mrb[0].mxu0
        %v3282 = vadd.f32 %v3211, %v3281
        %v3283 = vpop.f32.mrb[0].mxu0
        %v3284 = vadd.f32 %v3213, %v3283
        %v3285 = vpop.f32.mrb[0].mxu0
        %v3286 = vpop.f32.mrb[0].mxu0
        %3287 = vdwg.mxu0
        %3288 = vmatprep.subr.bf16.mxu0 0
        %3289 = vmatpush1.bf16.msra.mxu0 %v1783
        %3290 = vmatprep.subr.bf16.mxu0 0
        %3291 = vmatpush1.bf16.msra.mxu0 %v1792
        %3292 = vmatprep.subr.bf16.mxu0 0
        %3293 = vmatpush1.bf16.msra.mxu0 %v1801
        %3294 = vmatprep.subr.bf16.mxu0 0
        %3295 = vmatpush1.bf16.msra.mxu0 %v1810
        %3296 = vmatprep.subr.bf16.mxu0 0
        %3297 = vmatpush1.bf16.msra.mxu0 %v1819
        %3298 = vmatprep.subr.bf16.mxu0 0
        %3299 = vmatpush1.bf16.msra.mxu0 %v1828
        %3300 = vmatprep.subr.bf16.mxu0 0
        %3301 = vmatpush1.bf16.msra.mxu0 %v1837
        %3302 = vmatprep.subr.bf16.mxu0 0
        %3303 = vmatpush1.bf16.msra.mxu0 %v1846
        %3304 = vmatprep.subr.bf16.mxu0 0
        %3305 = vmatpush1.bf16.msra.mxu0 %v1855
        %3306 = vmatprep.subr.bf16.mxu0 0
        %3307 = vmatpush1.bf16.msra.mxu0 %v1864
        %3308 = vmatprep.subr.bf16.mxu0 0
        %3309 = vmatpush1.bf16.msra.mxu0 %v1873
        %3310 = vmatprep.subr.bf16.mxu0 0
        %3311 = vmatpush1.bf16.msra.mxu0 %v1882
        %3312 = vmatprep.subr.bf16.mxu0 0
        %3313 = vmatpush1.bf16.msra.mxu0 %v1891
        %3314 = vmatprep.subr.bf16.mxu0 0
        %3315 = vmatpush1.bf16.msra.mxu0 %v1900
        %3316 = vmatprep.subr.bf16.mxu0 0
        %3317 = vmatpush1.bf16.msra.mxu0 %v1909
        %3318 = vmatprep.subr.bf16.mxu0 0
        %3319 = vmatpush1.bf16.msra.mxu0 %v1918
        %3320 = vmatprep.mubr.bf16.mxu0 %v388
        %3321 = vmatmul.mubr.bf16.gmra.mrb[0].mxu0 %v387
        %v3322 = vpop.f32.mrb[0].mxu0
        %v3323 = vadd.f32 0.0, %v3322
        %v3324 = vpop.f32.mrb[0].mxu0
        %v3325 = vpop.f32.mrb[0].mxu0
        %v3326 = vadd.f32 0.0, %v3325
        %v3327 = vpop.f32.mrb[0].mxu0
        %3328 = vmatprep.mubr.bf16.mxu0 %v393
        %3329 = vmatmul.mubr.bf16.gmra.mrb[0].mxu0 %v392
        %v3330 = vpop.f32.mrb[0].mxu0
        %v3331 = vadd.f32 0.0, %v3330
        %v3332 = vpop.f32.mrb[0].mxu0
        %v3333 = vpop.f32.mrb[0].mxu0
        %v3334 = vadd.f32 0.0, %v3333
        %v3335 = vpop.f32.mrb[0].mxu0
        %3336 = vmatprep.mubr.bf16.mxu0 %v398
        %3337 = vmatmul.mubr.bf16.gmra.mrb[0].mxu0 %v397
        %v3338 = vpop.f32.mrb[0].mxu0
        %v3339 = vadd.f32 0.0, %v3338
        %v3340 = vpop.f32.mrb[0].mxu0
        %v3341 = vpop.f32.mrb[0].mxu0
        %v3342 = vadd.f32 0.0, %v3341
        %v3343 = vpop.f32.mrb[0].mxu0
        %3344 = vmatprep.mubr.bf16.mxu0 %v403
        %3345 = vmatmul.mubr.bf16.gmra.mrb[0].mxu0 %v402
        %v3346 = vpop.f32.mrb[0].mxu0
        %v3347 = vadd.f32 0.0, %v3346
        %v3348 = vpop.f32.mrb[0].mxu0
        %v3349 = vpop.f32.mrb[0].mxu0
        %v3350 = vpop.f32.mrb[0].mxu0
        %3351 = vdwg.mxu0
        %3352 = vmatprep.subr.bf16.mxu0 0
        %3353 = vmatpush1.bf16.msra.mxu0 %v1927
        %3354 = vmatprep.subr.bf16.mxu0 0
        %3355 = vmatpush1.bf16.msra.mxu0 %v1936
        %3356 = vmatprep.subr.bf16.mxu0 0
        %3357 = vmatpush1.bf16.msra.mxu0 %v1945
        %3358 = vmatprep.subr.bf16.mxu0 0
        %3359 = vmatpush1.bf16.msra.mxu0 %v1954
        %3360 = vmatprep.subr.bf16.mxu0 0
        %3361 = vmatpush1.bf16.msra.mxu0 %v1963
        %3362 = vmatprep.subr.bf16.mxu0 0
        %3363 = vmatpush1.bf16.msra.mxu0 %v1972
        %3364 = vmatprep.subr.bf16.mxu0 0
        %3365 = vmatpush1.bf16.msra.mxu0 %v1981
        %3366 = vmatprep.subr.bf16.mxu0 0
        %3367 = vmatpush1.bf16.msra.mxu0 %v1990
        %3368 = vmatprep.subr.bf16.mxu0 0
        %3369 = vmatpush1.bf16.msra.mxu0 %v1999
        %3370 = vmatprep.subr.bf16.mxu0 0
        %3371 = vmatpush1.bf16.msra.mxu0 %v2008
        %3372 = vmatprep.subr.bf16.mxu0 0
        %3373 = vmatpush1.bf16.msra.mxu0 %v2017
        %3374 = vmatprep.subr.bf16.mxu0 0
        %3375 = vmatpush1.bf16.msra.mxu0 %v2026
        %3376 = vmatprep.subr.bf16.mxu0 0
        %3377 = vmatpush1.bf16.msra.mxu0 %v2035
        %3378 = vmatprep.subr.bf16.mxu0 0
        %3379 = vmatpush1.bf16.msra.mxu0 %v2044
        %3380 = vmatprep.subr.bf16.mxu0 0
        %3381 = vmatpush1.bf16.msra.mxu0 %v2053
        %3382 = vmatprep.subr.bf16.mxu0 0
        %3383 = vmatpush1.bf16.msra.mxu0 %v2062
        %3384 = vmatprep.mubr.bf16.mxu0 %v390
        %3385 = vmatmul.mubr.bf16.gmra.mrb[0].mxu0 %v389
        %v3386 = vpop.f32.mrb[0].mxu0
        %v3387 = vadd.f32 %v3323, %v3386
        %v3388 = vpop.f32.mrb[0].mxu0
        %v3389 = vpop.f32.mrb[0].mxu0
        %v3390 = vadd.f32 %v3326, %v3389
        %v3391 = vpop.f32.mrb[0].mxu0
        %3392 = vmatprep.mubr.bf16.mxu0 %v395
        %3393 = vmatmul.mubr.bf16.gmra.mrb[0].mxu0 %v394
        %v3394 = vpop.f32.mrb[0].mxu0
        %v3395 = vadd.f32 %v3331, %v3394
        %v3396 = vpop.f32.mrb[0].mxu0
        %v3397 = vpop.f32.mrb[0].mxu0
        %v3398 = vadd.f32 %v3334, %v3397
        %v3399 = vpop.f32.mrb[0].mxu0
        %3400 = vmatprep.mubr.bf16.mxu0 %v400
        %3401 = vmatmul.mubr.bf16.gmra.mrb[0].mxu0 %v399
        %v3402 = vpop.f32.mrb[0].mxu0
        %v3403 = vadd.f32 %v3339, %v3402
        %v3404 = vpop.f32.mrb[0].mxu0
        %v3405 = vpop.f32.mrb[0].mxu0
        %v3406 = vadd.f32 %v3342, %v3405
        %v3407 = vpop.f32.mrb[0].mxu0
        %3408 = vmatprep.mubr.bf16.mxu0 %v405
        %3409 = vmatmul.mubr.bf16.gmra.mrb[0].mxu0 %v404
        %v3410 = vpop.f32.mrb[0].mxu0
        %v3411 = vadd.f32 %v3347, %v3410
        %v3412 = vpop.f32.mrb[0].mxu0
        %v3413 = vpop.f32.mrb[0].mxu0
        %v3414 = vpop.f32.mrb[0].mxu0
        %3415 = vdwg.mxu0
        %3416 = vmatprep.subr.bf16.mxu0 0
        %3417 = vmatpush1.bf16.msra.mxu0 %v2071
        %3418 = vmatprep.subr.bf16.mxu0 0
        %3419 = vmatpush1.bf16.msra.mxu0 %v2080
        %3420 = vmatprep.subr.bf16.mxu0 0
        %3421 = vmatpush1.bf16.msra.mxu0 %v2089
        %3422 = vmatprep.subr.bf16.mxu0 0
        %3423 = vmatpush1.bf16.msra.mxu0 %v2098
        %3424 = vmatprep.subr.bf16.mxu0 0
        %3425 = vmatpush1.bf16.msra.mxu0 0
        %3426 = vmatprep.subr.bf16.mxu0 0
        %3427 = vmatpush1.bf16.msra.mxu0 0
        %3428 = vmatprep.subr.bf16.mxu0 0
        %3429 = vmatpush1.bf16.msra.mxu0 0
        %3430 = vmatprep.subr.bf16.mxu0 0
        %3431 = vmatpush1.bf16.msra.mxu0 0
        %3432 = vmatprep.subr.bf16.mxu0 0
        %3433 = vmatpush1.bf16.msra.mxu0 0
        %3434 = vmatprep.subr.bf16.mxu0 0
        %3435 = vmatpush1.bf16.msra.mxu0 0
        %3436 = vmatprep.subr.bf16.mxu0 0
        %3437 = vmatpush1.bf16.msra.mxu0 0
        %3438 = vmatprep.subr.bf16.mxu0 0
        %3439 = vmatpush1.bf16.msra.mxu0 0
        %3440 = vmatprep.subr.bf16.mxu0 0
        %3441 = vmatpush1.bf16.msra.mxu0 0
        %3442 = vmatprep.subr.bf16.mxu0 0
        %3443 = vmatpush1.bf16.msra.mxu0 0
        %3444 = vmatprep.subr.bf16.mxu0 0
        %3445 = vmatpush1.bf16.msra.mxu0 0
        %3446 = vmatprep.subr.bf16.mxu0 0
        %3447 = vmatpush1.bf16.msra.mxu0 0
        %3448 = vmatprep.mubr.bf16.mxu0 0
        %3449 = vmatmul.mubr.bf16.gmra.mrb[0].mxu0 %v2425
        %v3450 = vpop.f32.mrb[0].mxu0
        %v3451 = vadd.f32 %v3387, %v3450
        %v3452 = vpop.f32.mrb[0].mxu0
        %v3453 = vpop.f32.mrb[0].mxu0
        %v3454 = vadd.f32 %v3390, %v3453
        %v3455 = vpop.f32.mrb[0].mxu0
        %3456 = vmatprep.mubr.bf16.mxu0 0
        %3457 = vmatmul.mubr.bf16.gmra.mrb[0].mxu0 %v2428
        %v3458 = vpop.f32.mrb[0].mxu0
        %v3459 = vadd.f32 %v3395, %v3458
        %v3460 = vpop.f32.mrb[0].mxu0
        %v3461 = vpop.f32.mrb[0].mxu0
        %v3462 = vadd.f32 %v3398, %v3461
        %v3463 = vpop.f32.mrb[0].mxu0
        %3464 = vmatprep.mubr.bf16.mxu0 0
        %3465 = vmatmul.mubr.bf16.gmra.mrb[0].mxu0 %v2431
        %v3466 = vpop.f32.mrb[0].mxu0
        %v3467 = vadd.f32 %v3403, %v3466
        %v3468 = vpop.f32.mrb[0].mxu0
        %v3469 = vpop.f32.mrb[0].mxu0
        %v3470 = vadd.f32 %v3406, %v3469
        %v3471 = vpop.f32.mrb[0].mxu0
        %3472 = vmatprep.mubr.bf16.mxu0 0
        %3473 = vmatmul.mubr.bf16.gmra.mrb[0].mxu0 %v2434
        %v3474 = vpop.f32.mrb[0].mxu0
        %v3475 = vadd.f32 %v3411, %v3474
        %v3476 = vpop.f32.mrb[0].mxu0
        %v3477 = vpop.f32.mrb[0].mxu0
        %v3478 = vpop.f32.mrb[0].mxu0
        %3479 = vdwg.mxu0
        %v3480 = vadd.f32 %v2613, %v2617
        %v3481 = vadd.f32 %v3480, %v2623
        %v3482 = vadd.f32 %v3481, %v2627
        %v3483 = vadd.f32 %v3482, %v2633
        %v3484 = vadd.f32 %v3483, %v2637
        %vm3485 = vcmask 1040384
        %v3486 = vsel %vm3485, %v2643, 0.0
        %v3487 = vadd.f32 %v3484, %v3486
        %v3488 = vrot.slane %v3487, 4
        %v3489 = vadd.f32 %v3487, %v3488
        %v3490 = vrot.slane %v3489, 2
        %v3491 = vadd.f32 %v3489, %v3490
        %v3492 = vrot.slane %v3491, 1
        %v3493 = vadd.f32 %v3491, %v3492
        %v3494 = vadd.f32 %v2615, %v2619
        %v3495 = vadd.f32 %v3494, %v2625
        %v3496 = vadd.f32 %v3495, %v2629
        %v3497 = vadd.f32 %v3496, %v2635
        %v3498 = vadd.f32 %v3497, %v2639
        %v3499 = vsel %vm3485, %v2645, 0.0
        %v3500 = vadd.f32 %v3498, %v3499
        %v3501 = vrot.slane %v3500, 4
        %v3502 = vadd.f32 %v3500, %v3501
        %v3503 = vrot.slane %v3502, 2
        %v3504 = vadd.f32 %v3502, %v3503
        %v3505 = vrot.slane %v3504, 1
        %v3506 = vadd.f32 %v3504, %v3505
        %v3507 = vadd.f32 %v2826, %v2830
        %v3508 = vadd.f32 %v3507, %v2836
        %v3509 = vadd.f32 %v3508, %v2840
        %v3510 = vadd.f32 %v3509, %v2846
        %v3511 = vadd.f32 %v3510, %v2850
        %v3512 = vsel %vm3485, %v2856, 0.0
        %v3513 = vadd.f32 %v3511, %v3512
        %v3514 = vrot.slane %v3513, 4
        %v3515 = vadd.f32 %v3513, %v3514
        %v3516 = vrot.slane %v3515, 2
        %v3517 = vadd.f32 %v3515, %v3516
        %v3518 = vrot.slane %v3517, 1
        %v3519 = vadd.f32 %v3517, %v3518
        %v3520 = vadd.f32 %v2828, %v2832
        %v3521 = vadd.f32 %v3520, %v2838
        %v3522 = vadd.f32 %v3521, %v2842
        %v3523 = vadd.f32 %v3522, %v2848
        %v3524 = vadd.f32 %v3523, %v2852
        %v3525 = vsel %vm3485, %v2858, 0.0
        %v3526 = vadd.f32 %v3524, %v3525
        %v3527 = vrot.slane %v3526, 4
        %v3528 = vadd.f32 %v3526, %v3527
        %v3529 = vrot.slane %v3528, 2
        %v3530 = vadd.f32 %v3528, %v3529
        %v3531 = vrot.slane %v3530, 1
        %v3532 = vadd.f32 %v3530, %v3531
        %v3533 = vadd.f32 %v3039, %v3043
        %v3534 = vadd.f32 %v3533, %v3049
        %v3535 = vadd.f32 %v3534, %v3053
        %v3536 = vadd.f32 %v3535, %v3059
        %v3537 = vadd.f32 %v3536, %v3063
        %v3538 = vsel %vm3485, %v3069, 0.0
        %v3539 = vadd.f32 %v3537, %v3538
        %v3540 = vrot.slane %v3539, 4
        %v3541 = vadd.f32 %v3539, %v3540
        %v3542 = vrot.slane %v3541, 2
        %v3543 = vadd.f32 %v3541, %v3542
        %v3544 = vrot.slane %v3543, 1
        %v3545 = vadd.f32 %v3543, %v3544
        %v3546 = vadd.f32 %v3041, %v3045
        %v3547 = vadd.f32 %v3546, %v3051
        %v3548 = vadd.f32 %v3547, %v3055
        %v3549 = vadd.f32 %v3548, %v3061
        %v3550 = vadd.f32 %v3549, %v3065
        %v3551 = vsel %vm3485, %v3071, 0.0
        %v3552 = vadd.f32 %v3550, %v3551
        %v3553 = vrot.slane %v3552, 4
        %v3554 = vadd.f32 %v3552, %v3553
        %v3555 = vrot.slane %v3554, 2
        %v3556 = vadd.f32 %v3554, %v3555
        %v3557 = vrot.slane %v3556, 1
        %v3558 = vadd.f32 %v3556, %v3557
        %v3559 = vadd.f32 %v3252, %v3256
        %v3560 = vadd.f32 %v3559, %v3262
        %v3561 = vadd.f32 %v3560, %v3266
        %v3562 = vadd.f32 %v3561, %v3272
        %v3563 = vadd.f32 %v3562, %v3276
        %v3564 = vsel %vm3485, %v3282, 0.0
        %v3565 = vadd.f32 %v3563, %v3564
        %v3566 = vrot.slane %v3565, 4
        %v3567 = vadd.f32 %v3565, %v3566
        %v3568 = vrot.slane %v3567, 2
        %v3569 = vadd.f32 %v3567, %v3568
        %v3570 = vrot.slane %v3569, 1
        %v3571 = vadd.f32 %v3569, %v3570
        %v3572 = vadd.f32 %v3254, %v3258
        %v3573 = vadd.f32 %v3572, %v3264
        %v3574 = vadd.f32 %v3573, %v3268
        %v3575 = vadd.f32 %v3574, %v3274
        %v3576 = vadd.f32 %v3575, %v3278
        %v3577 = vsel %vm3485, %v3284, 0.0
        %v3578 = vadd.f32 %v3576, %v3577
        %v3579 = vrot.slane %v3578, 4
        %v3580 = vadd.f32 %v3578, %v3579
        %v3581 = vrot.slane %v3580, 2
        %v3582 = vadd.f32 %v3580, %v3581
        %v3583 = vrot.slane %v3582, 1
        %v3584 = vadd.f32 %v3582, %v3583
        %v3585 = vadd.f32 %v3451, %v3454
        %v3586 = vadd.f32 %v3585, %v3459
        %v3587 = vadd.f32 %v3586, %v3462
        %v3588 = vadd.f32 %v3587, %v3467
        %v3589 = vadd.f32 %v3588, %v3470
        %v3590 = vsel %vm3485, %v3475, 0.0
        %v3591 = vadd.f32 %v3589, %v3590
        %v3592 = vrot.slane %v3591, 4
        %v3593 = vadd.f32 %v3591, %v3592
        %v3594 = vrot.slane %v3593, 2
        %v3595 = vadd.f32 %v3593, %v3594
        %v3596 = vrot.slane %v3595, 1
        %v3597 = vadd.f32 %v3595, %v3596
        %v3598 = vmul.f32 %v3493, 0.020408163
        %v3599 = vmul.f32 %v3506, 0.020408163
        %v3600 = vmul.f32 %v3519, 0.020408163
        %v3601 = vmul.f32 %v3532, 0.020408163
        %v3602 = vmul.f32 %v3545, 0.020408163
        %v3603 = vmul.f32 %v3558, 0.020408163
        %v3604 = vmul.f32 %v3571, 0.020408163
        %v3605 = vmul.f32 %v3584, 0.020408163
        %v3606 = vmul.f32 %v3597, 0.020408163
        %v3607 = vsub.f32 %v2613, %v3598
        %v3608 = vsub.f32 %v2615, %v3599
        %v3609 = vsub.f32 %v2826, %v3600
        %v3610 = vsub.f32 %v2828, %v3601
        %v3611 = vsub.f32 %v3039, %v3602
        %v3612 = vsub.f32 %v3041, %v3603
        %v3613 = vsub.f32 %v3252, %v3604
        %v3614 = vsub.f32 %v3254, %v3605
        %v3615 = vsub.f32 %v3451, %v3606
        %v3616 = vsub.f32 %v2617, %v3598
        %v3617 = vsub.f32 %v2619, %v3599
        %v3618 = vsub.f32 %v2830, %v3600
        %v3619 = vsub.f32 %v2832, %v3601
        %v3620 = vsub.f32 %v3043, %v3602
        %v3621 = vsub.f32 %v3045, %v3603
        %v3622 = vsub.f32 %v3256, %v3604
        %v3623 = vsub.f32 %v3258, %v3605
        %v3624 = vsub.f32 %v3454, %v3606
        %v3625 = vsub.f32 %v2623, %v3598
        %v3626 = vsub.f32 %v2625, %v3599
        %v3627 = vsub.f32 %v2836, %v3600
        %v3628 = vsub.f32 %v2838, %v3601
        %v3629 = vsub.f32 %v3049, %v3602
        %v3630 = vsub.f32 %v3051, %v3603
        %v3631 = vsub.f32 %v3262, %v3604
        %v3632 = vsub.f32 %v3264, %v3605
        %v3633 = vsub.f32 %v3459, %v3606
        %v3634 = vsub.f32 %v2627, %v3598
        %v3635 = vsub.f32 %v2629, %v3599
        %v3636 = vsub.f32 %v2840, %v3600
        %v3637 = vsub.f32 %v2842, %v3601
        %v3638 = vsub.f32 %v3053, %v3602
        %v3639 = vsub.f32 %v3055, %v3603
        %v3640 = vsub.f32 %v3266, %v3604
        %v3641 = vsub.f32 %v3268, %v3605
        %v3642 = vsub.f32 %v3462, %v3606
        %v3643 = vsub.f32 %v2633, %v3598
        %v3644 = vsub.f32 %v2635, %v3599
        %v3645 = vsub.f32 %v2846, %v3600
        %v3646 = vsub.f32 %v2848, %v3601
        %v3647 = vsub.f32 %v3059, %v3602
        %v3648 = vsub.f32 %v3061, %v3603
        %v3649 = vsub.f32 %v3272, %v3604
        %v3650 = vsub.f32 %v3274, %v3605
        %v3651 = vsub.f32 %v3467, %v3606
        %v3652 = vsub.f32 %v2637, %v3598
        %v3653 = vsub.f32 %v2639, %v3599
        %v3654 = vsub.f32 %v2850, %v3600
        %v3655 = vsub.f32 %v2852, %v3601
        %v3656 = vsub.f32 %v3063, %v3602
        %v3657 = vsub.f32 %v3065, %v3603
        %v3658 = vsub.f32 %v3276, %v3604
        %v3659 = vsub.f32 %v3278, %v3605
        %v3660 = vsub.f32 %v3470, %v3606
        %v3661 = vsub.f32 %v2643, %v3598
        %v3662 = vsub.f32 %v2645, %v3599
        %v3663 = vsub.f32 %v2856, %v3600
        %v3664 = vsub.f32 %v2858, %v3601
        %v3665 = vsub.f32 %v3069, %v3602
        %v3666 = vsub.f32 %v3071, %v3603
        %v3667 = vsub.f32 %v3282, %v3604
        %v3668 = vsub.f32 %v3284, %v3605
        %v3669 = vsub.f32 %v3475, %v3606
        %v3670 = vmul.f32 %v3607, %v3607
        %v3671 = vmul.f32 %v3608, %v3608
        %v3672 = vmul.f32 %v3609, %v3609
        %v3673 = vmul.f32 %v3610, %v3610
        %v3674 = vmul.f32 %v3611, %v3611
        %v3675 = vmul.f32 %v3612, %v3612
        %v3676 = vmul.f32 %v3613, %v3613
        %v3677 = vmul.f32 %v3614, %v3614
        %v3678 = vmul.f32 %v3615, %v3615
        %v3679 = vmul.f32 %v3616, %v3616
        %v3680 = vmul.f32 %v3617, %v3617
        %v3681 = vmul.f32 %v3618, %v3618
        %v3682 = vmul.f32 %v3619, %v3619
        %v3683 = vmul.f32 %v3620, %v3620
        %v3684 = vmul.f32 %v3621, %v3621
        %v3685 = vmul.f32 %v3622, %v3622
        %v3686 = vmul.f32 %v3623, %v3623
        %v3687 = vmul.f32 %v3624, %v3624
        %v3688 = vmul.f32 %v3625, %v3625
        %v3689 = vmul.f32 %v3626, %v3626
        %v3690 = vmul.f32 %v3627, %v3627
        %v3691 = vmul.f32 %v3628, %v3628
        %v3692 = vmul.f32 %v3629, %v3629
        %v3693 = vmul.f32 %v3630, %v3630
        %v3694 = vmul.f32 %v3631, %v3631
        %v3695 = vmul.f32 %v3632, %v3632
        %v3696 = vmul.f32 %v3633, %v3633
        %v3697 = vmul.f32 %v3634, %v3634
        %v3698 = vmul.f32 %v3635, %v3635
        %v3699 = vmul.f32 %v3636, %v3636
        %v3700 = vmul.f32 %v3637, %v3637
        %v3701 = vmul.f32 %v3638, %v3638
        %v3702 = vmul.f32 %v3639, %v3639
        %v3703 = vmul.f32 %v3640, %v3640
        %v3704 = vmul.f32 %v3641, %v3641
        %v3705 = vmul.f32 %v3642, %v3642
        %v3706 = vmul.f32 %v3643, %v3643
        %v3707 = vmul.f32 %v3644, %v3644
        %v3708 = vmul.f32 %v3645, %v3645
        %v3709 = vmul.f32 %v3646, %v3646
        %v3710 = vmul.f32 %v3647, %v3647
        %v3711 = vmul.f32 %v3648, %v3648
        %v3712 = vmul.f32 %v3649, %v3649
        %v3713 = vmul.f32 %v3650, %v3650
        %v3714 = vmul.f32 %v3651, %v3651
        %v3715 = vmul.f32 %v3652, %v3652
        %v3716 = vmul.f32 %v3653, %v3653
        %v3717 = vmul.f32 %v3654, %v3654
        %v3718 = vmul.f32 %v3655, %v3655
        %v3719 = vmul.f32 %v3656, %v3656
        %v3720 = vmul.f32 %v3657, %v3657
        %v3721 = vmul.f32 %v3658, %v3658
        %v3722 = vmul.f32 %v3659, %v3659
        %v3723 = vmul.f32 %v3660, %v3660
        %v3724 = vmul.f32 %v3661, %v3661
        %v3725 = vmul.f32 %v3662, %v3662
        %v3726 = vmul.f32 %v3663, %v3663
        %v3727 = vmul.f32 %v3664, %v3664
        %v3728 = vmul.f32 %v3665, %v3665
        %v3729 = vmul.f32 %v3666, %v3666
        %v3730 = vmul.f32 %v3667, %v3667
        %v3731 = vmul.f32 %v3668, %v3668
        %v3732 = vmul.f32 %v3669, %v3669
        %v3733 = vadd.f32 %v3670, %v3679
        %v3734 = vadd.f32 %v3733, %v3688
        %v3735 = vadd.f32 %v3734, %v3697
        %v3736 = vadd.f32 %v3735, %v3706
        %v3737 = vadd.f32 %v3736, %v3715
        %v3738 = vsel %vm3485, %v3724, 0.0
        %v3739 = vadd.f32 %v3737, %v3738
        %v3740 = vrot.slane %v3739, 4
        %v3741 = vadd.f32 %v3739, %v3740
        %v3742 = vrot.slane %v3741, 2
        %v3743 = vadd.f32 %v3741, %v3742
        %v3744 = vrot.slane %v3743, 1
        %v3745 = vadd.f32 %v3743, %v3744
        %v3746 = vadd.f32 %v3671, %v3680
        %v3747 = vadd.f32 %v3746, %v3689
        %v3748 = vadd.f32 %v3747, %v3698
        %v3749 = vadd.f32 %v3748, %v3707
        %v3750 = vadd.f32 %v3749, %v3716
        %v3751 = vsel %vm3485, %v3725, 0.0
        %v3752 = vadd.f32 %v3750, %v3751
        %v3753 = vrot.slane %v3752, 4
        %v3754 = vadd.f32 %v3752, %v3753
        %v3755 = vrot.slane %v3754, 2
        %v3756 = vadd.f32 %v3754, %v3755
        %v3757 = vrot.slane %v3756, 1
        %v3758 = vadd.f32 %v3756, %v3757
        %v3759 = vadd.f32 %v3672, %v3681
        %v3760 = vadd.f32 %v3759, %v3690
        %v3761 = vadd.f32 %v3760, %v3699
        %v3762 = vadd.f32 %v3761, %v3708
        %v3763 = vadd.f32 %v3762, %v3717
        %v3764 = vsel %vm3485, %v3726, 0.0
        %v3765 = vadd.f32 %v3763, %v3764
        %v3766 = vrot.slane %v3765, 4
        %v3767 = vadd.f32 %v3765, %v3766
        %v3768 = vrot.slane %v3767, 2
        %v3769 = vadd.f32 %v3767, %v3768
        %v3770 = vrot.slane %v3769, 1
        %v3771 = vadd.f32 %v3769, %v3770
        %v3772 = vadd.f32 %v3673, %v3682
        %v3773 = vadd.f32 %v3772, %v3691
        %v3774 = vadd.f32 %v3773, %v3700
        %v3775 = vadd.f32 %v3774, %v3709
        %v3776 = vadd.f32 %v3775, %v3718
        %v3777 = vsel %vm3485, %v3727, 0.0
        %v3778 = vadd.f32 %v3776, %v3777
        %v3779 = vrot.slane %v3778, 4
        %v3780 = vadd.f32 %v3778, %v3779
        %v3781 = vrot.slane %v3780, 2
        %v3782 = vadd.f32 %v3780, %v3781
        %v3783 = vrot.slane %v3782, 1
        %v3784 = vadd.f32 %v3782, %v3783
        %v3785 = vadd.f32 %v3674, %v3683
        %v3786 = vadd.f32 %v3785, %v3692
        %v3787 = vadd.f32 %v3786, %v3701
        %v3788 = vadd.f32 %v3787, %v3710
        %v3789 = vadd.f32 %v3788, %v3719
        %v3790 = vsel %vm3485, %v3728, 0.0
        %v3791 = vadd.f32 %v3789, %v3790
        %v3792 = vrot.slane %v3791, 4
        %v3793 = vadd.f32 %v3791, %v3792
        %v3794 = vrot.slane %v3793, 2
        %v3795 = vadd.f32 %v3793, %v3794
        %v3796 = vrot.slane %v3795, 1
        %v3797 = vadd.f32 %v3795, %v3796
        %v3798 = vadd.f32 %v3675, %v3684
        %v3799 = vadd.f32 %v3798, %v3693
        %v3800 = vadd.f32 %v3799, %v3702
        %v3801 = vadd.f32 %v3800, %v3711
        %v3802 = vadd.f32 %v3801, %v3720
        %v3803 = vsel %vm3485, %v3729, 0.0
        %v3804 = vadd.f32 %v3802, %v3803
        %v3805 = vrot.slane %v3804, 4
        %v3806 = vadd.f32 %v3804, %v3805
        %v3807 = vrot.slane %v3806, 2
        %v3808 = vadd.f32 %v3806, %v3807
        %v3809 = vrot.slane %v3808, 1
        %v3810 = vadd.f32 %v3808, %v3809
        %v3811 = vadd.f32 %v3676, %v3685
        %v3812 = vadd.f32 %v3811, %v3694
        %v3813 = vadd.f32 %v3812, %v3703
        %v3814 = vadd.f32 %v3813, %v3712
        %v3815 = vadd.f32 %v3814, %v3721
        %v3816 = vsel %vm3485, %v3730, 0.0
        %v3817 = vadd.f32 %v3815, %v3816
        %v3818 = vrot.slane %v3817, 4
        %v3819 = vadd.f32 %v3817, %v3818
        %v3820 = vrot.slane %v3819, 2
        %v3821 = vadd.f32 %v3819, %v3820
        %v3822 = vrot.slane %v3821, 1
        %v3823 = vadd.f32 %v3821, %v3822
        %v3824 = vadd.f32 %v3677, %v3686
        %v3825 = vadd.f32 %v3824, %v3695
        %v3826 = vadd.f32 %v3825, %v3704
        %v3827 = vadd.f32 %v3826, %v3713
        %v3828 = vadd.f32 %v3827, %v3722
        %v3829 = vsel %vm3485, %v3731, 0.0
        %v3830 = vadd.f32 %v3828, %v3829
        %v3831 = vrot.slane %v3830, 4
        %v3832 = vadd.f32 %v3830, %v3831
        %v3833 = vrot.slane %v3832, 2
        %v3834 = vadd.f32 %v3832, %v3833
        %v3835 = vrot.slane %v3834, 1
        %v3836 = vadd.f32 %v3834, %v3835
        %v3837 = vadd.f32 %v3678, %v3687
        %v3838 = vadd.f32 %v3837, %v3696
        %v3839 = vadd.f32 %v3838, %v3705
        %v3840 = vadd.f32 %v3839, %v3714
        %v3841 = vadd.f32 %v3840, %v3723
        %v3842 = vsel %vm3485, %v3732, 0.0
        %v3843 = vadd.f32 %v3841, %v3842
        %v3844 = vrot.slane %v3843, 4
        %v3845 = vadd.f32 %v3843, %v3844
        %v3846 = vrot.slane %v3845, 2
        %v3847 = vadd.f32 %v3845, %v3846
        %v3848 = vrot.slane %v3847, 1
        %v3849 = vadd.f32 %v3847, %v3848
        %v3850 = vmul.f32 %v3745, 0.020408163
        %v3851 = vmul.f32 %v3758, 0.020408163
        %v3852 = vmul.f32 %v3771, 0.020408163
        %v3853 = vmul.f32 %v3784, 0.020408163
        %v3854 = vmul.f32 %v3797, 0.020408163
        %v3855 = vmul.f32 %v3810, 0.020408163
        %v3856 = vmul.f32 %v3823, 0.020408163
        %v3857 = vmul.f32 %v3836, 0.020408163
        %v3858 = vmul.f32 %v3849, 0.020408163
        %v3859 = vadd.f32 %v3850, 1e-05
        %v3860 = vadd.f32 %v3851, 1e-05
        %v3861 = vadd.f32 %v3852, 1e-05
        %v3862 = vadd.f32 %v3853, 1e-05
        %v3863 = vadd.f32 %v3854, 1e-05
        %v3864 = vadd.f32 %v3855, 1e-05
        %v3865 = vadd.f32 %v3856, 1e-05
        %v3866 = vadd.f32 %v3857, 1e-05
        %v3867 = vadd.f32 %v3858, 1e-05
        %v3868 = vrsqrt.pop %v3859
        %v3869 = vrsqrt.pop %v3860
        %v3870 = vrsqrt.pop %v3861
        %v3871 = vrsqrt.pop %v3862
        %v3872 = vrsqrt.pop %v3863
        %v3873 = vrsqrt.pop %v3864
        %v3874 = vrsqrt.pop %v3865
        %v3875 = vrsqrt.pop %v3866
        %v3876 = vrsqrt.pop %v3867
        %v3877 = vld [vmem:[%s248] sm:$0xff]
        %v3878 = vld [vmem:[%s248 + $0x8] sm:$0xff]
        %v3879 = vld [vmem:[%s248 + $0x10] sm:$0x3]
        %v3889 = vcombine.low %v3868, %v3869
        %v3890 = vcombine.low %v3870, %v3871
        %v3892 = vunpack.c.l.s4 1983009808
        %v3893 = vunpack.c.0.s8 %v3892
        %v3894 = vlaneseq
        %v3895 = vshrl.u32 %v3894, 7
        %v3896 = vsub.s32 %v3893, %v3895
        %v3897 = vrot.slane %v3889, %v3896
        %v3899 = vunpack.c.l.s4 1983009808
        %v3900 = vunpack.c.0.s8 %v3899
        %v3901 = vlaneseq
        %v3902 = vshrl.u32 %v3901, 7
        %v3903 = vsub.s32 %v3900, %v3902
        %v3904 = vrot.slane %v3890, %v3903
        %v3905 = vcombine.low %v3897, %v3904
        %v3906 = vcombine.low %v3872, %v3873
        %v3907 = vcombine.low %v3874, %v3875
        %v3909 = vunpack.c.l.s4 1983009808
        %v3910 = vunpack.c.0.s8 %v3909
        %v3911 = vlaneseq
        %v3912 = vshrl.u32 %v3911, 7
        %v3913 = vsub.s32 %v3910, %v3912
        %v3914 = vrot.slane %v3906, %v3913
        %v3916 = vunpack.c.l.s4 1983009808
        %v3917 = vunpack.c.0.s8 %v3916
        %v3918 = vlaneseq
        %v3919 = vshrl.u32 %v3918, 7
        %v3920 = vsub.s32 %v3917, %v3919
        %v3921 = vrot.slane %v3907, %v3920
        %v3922 = vcombine.low %v3914, %v3921
        %v3924 = vunpack.c.l.s4 1983009808
        %v3925 = vunpack.c.0.s8 %v3924
        %v3926 = vlaneseq
        %v3927 = vshrl.u32 %v3926, 7
        %v3928 = vsub.s32 %v3925, %v3927
        %v3929 = vrot.slane %v3876, %v3928
        %v3933 = vmul.f32 %v3877, %v3905
        %v3934 = vmul.f32 %v3878, %v3922
        %v3935 = vmul.f32 %v3879, %v3929
        %v3939 = vlaneseq
        %v3940 = vshrl.u32 %v3939, 7
        %v3941 = vsub.s32 0, %v3940
        %v3942 = vrot.slane %v3933, %v3941
        %v3943 = vlaneseq
        %v3944 = vshrl.u32 %v3943, 7
        %v3945 = vsub.s32 2, %v3944
        %v3946 = vrot.slane %v3933, %v3945
        %v3947 = vlaneseq
        %v3948 = vshrl.u32 %v3947, 7
        %v3949 = vsub.s32 4, %v3948
        %v3950 = vrot.slane %v3933, %v3949
        %v3951 = vlaneseq
        %v3952 = vshrl.u32 %v3951, 7
        %v3953 = vsub.s32 6, %v3952
        %v3954 = vrot.slane %v3933, %v3953
        %v3955 = vlaneseq
        %v3956 = vshrl.u32 %v3955, 7
        %v3957 = vsub.s32 0, %v3956
        %v3958 = vrot.slane %v3934, %v3957
        %v3959 = vlaneseq
        %v3960 = vshrl.u32 %v3959, 7
        %v3961 = vsub.s32 2, %v3960
        %v3962 = vrot.slane %v3934, %v3961
        %v3963 = vlaneseq
        %v3964 = vshrl.u32 %v3963, 7
        %v3965 = vsub.s32 4, %v3964
        %v3966 = vrot.slane %v3934, %v3965
        %v3967 = vlaneseq
        %v3968 = vshrl.u32 %v3967, 7
        %v3969 = vsub.s32 6, %v3968
        %v3970 = vrot.slane %v3934, %v3969
        %v3971 = vlaneseq
        %v3972 = vshrl.u32 %v3971, 7
        %v3973 = vsub.s32 0, %v3972
        %v3974 = vrot.slane %v3935, %v3973
        %v3984 = vlaneseq
        %v3985 = vshrl.u32 %v3984, 7
        %v3986 = vsub.s32 0, %v3985
        %v3987 = vrot.slane %v3942, %v3986
        %v3988 = vlaneseq
        %v3989 = vshrl.u32 %v3988, 7
        %v3990 = vsub.s32 0, %v3989
        %v3991 = vrot.slane %v3946, %v3990
        %v3992 = vlaneseq
        %v3993 = vshrl.u32 %v3992, 7
        %v3994 = vsub.s32 0, %v3993
        %v3995 = vrot.slane %v3950, %v3994
        %v3996 = vlaneseq
        %v3997 = vshrl.u32 %v3996, 7
        %v3998 = vsub.s32 0, %v3997
        %v3999 = vrot.slane %v3954, %v3998
        %v4000 = vlaneseq
        %v4001 = vshrl.u32 %v4000, 7
        %v4002 = vsub.s32 0, %v4001
        %v4003 = vrot.slane %v3958, %v4002
        %v4004 = vlaneseq
        %v4005 = vshrl.u32 %v4004, 7
        %v4006 = vsub.s32 0, %v4005
        %v4007 = vrot.slane %v3962, %v4006
        %v4008 = vlaneseq
        %v4009 = vshrl.u32 %v4008, 7
        %v4010 = vsub.s32 0, %v4009
        %v4011 = vrot.slane %v3966, %v4010
        %v4012 = vlaneseq
        %v4013 = vshrl.u32 %v4012, 7
        %v4014 = vsub.s32 0, %v4013
        %v4015 = vrot.slane %v3970, %v4014
        %v4016 = vlaneseq
        %v4017 = vshrl.u32 %v4016, 7
        %v4018 = vsub.s32 0, %v4017
        %v4019 = vrot.slane %v3974, %v4018
        %v4020 = vmul.f32 %v3607, %v3987
        %v4021 = vmul.f32 %v3608, %v3991
        %v4022 = vmul.f32 %v3609, %v3995
        %v4023 = vmul.f32 %v3610, %v3999
        %v4024 = vmul.f32 %v3611, %v4003
        %v4025 = vmul.f32 %v3612, %v4007
        %v4026 = vmul.f32 %v3613, %v4011
        %v4027 = vmul.f32 %v3614, %v4015
        %v4028 = vmul.f32 %v3615, %v4019
        %v4029 = vmul.f32 %v3616, %v3987
        %v4030 = vmul.f32 %v3617, %v3991
        %v4031 = vmul.f32 %v3618, %v3995
        %v4032 = vmul.f32 %v3619, %v3999
        %v4033 = vmul.f32 %v3620, %v4003
        %v4034 = vmul.f32 %v3621, %v4007
        %v4035 = vmul.f32 %v3622, %v4011
        %v4036 = vmul.f32 %v3623, %v4015
        %v4037 = vmul.f32 %v3624, %v4019
        %v4038 = vmul.f32 %v3625, %v3987
        %v4039 = vmul.f32 %v3626, %v3991
        %v4040 = vmul.f32 %v3627, %v3995
        %v4041 = vmul.f32 %v3628, %v3999
        %v4042 = vmul.f32 %v3629, %v4003
        %v4043 = vmul.f32 %v3630, %v4007
        %v4044 = vmul.f32 %v3631, %v4011
        %v4045 = vmul.f32 %v3632, %v4015
        %v4046 = vmul.f32 %v3633, %v4019
        %v4047 = vmul.f32 %v3634, %v3987
        %v4048 = vmul.f32 %v3635, %v3991
        %v4049 = vmul.f32 %v3636, %v3995
        %v4050 = vmul.f32 %v3637, %v3999
        %v4051 = vmul.f32 %v3638, %v4003
        %v4052 = vmul.f32 %v3639, %v4007
        %v4053 = vmul.f32 %v3640, %v4011
        %v4054 = vmul.f32 %v3641, %v4015
        %v4055 = vmul.f32 %v3642, %v4019
        %v4056 = vmul.f32 %v3643, %v3987
        %v4057 = vmul.f32 %v3644, %v3991
        %v4058 = vmul.f32 %v3645, %v3995
        %v4059 = vmul.f32 %v3646, %v3999
        %v4060 = vmul.f32 %v3647, %v4003
        %v4061 = vmul.f32 %v3648, %v4007
        %v4062 = vmul.f32 %v3649, %v4011
        %v4063 = vmul.f32 %v3650, %v4015
        %v4064 = vmul.f32 %v3651, %v4019
        %v4065 = vmul.f32 %v3652, %v3987
        %v4066 = vmul.f32 %v3653, %v3991
        %v4067 = vmul.f32 %v3654, %v3995
        %v4068 = vmul.f32 %v3655, %v3999
        %v4069 = vmul.f32 %v3656, %v4003
        %v4070 = vmul.f32 %v3657, %v4007
        %v4071 = vmul.f32 %v3658, %v4011
        %v4072 = vmul.f32 %v3659, %v4015
        %v4073 = vmul.f32 %v3660, %v4019
        %v4074 = vmul.f32 %v3661, %v3987
        %v4075 = vmul.f32 %v3662, %v3991
        %v4076 = vmul.f32 %v3663, %v3995
        %v4077 = vmul.f32 %v3664, %v3999
        %v4078 = vmul.f32 %v3665, %v4003
        %v4079 = vmul.f32 %v3666, %v4007
        %v4080 = vmul.f32 %v3667, %v4011
        %v4081 = vmul.f32 %v3668, %v4015
        %v4082 = vmul.f32 %v3669, %v4019
        %v4086 = vlaneseq
        %v4087 = vshrl.u32 %v4086, 7
        %v4088 = vsub.s32 1, %v4087
        %v4089 = vrot.slane %v3877, %v4088
        %v4090 = vlaneseq
        %v4091 = vshrl.u32 %v4090, 7
        %v4092 = vsub.s32 3, %v4091
        %v4093 = vrot.slane %v3877, %v4092
        %v4094 = vlaneseq
        %v4095 = vshrl.u32 %v4094, 7
        %v4096 = vsub.s32 5, %v4095
        %v4097 = vrot.slane %v3877, %v4096
        %v4098 = vlaneseq
        %v4099 = vshrl.u32 %v4098, 7
        %v4100 = vsub.s32 7, %v4099
        %v4101 = vrot.slane %v3877, %v4100
        %v4102 = vlaneseq
        %v4103 = vshrl.u32 %v4102, 7
        %v4104 = vsub.s32 1, %v4103
        %v4105 = vrot.slane %v3878, %v4104
        %v4106 = vlaneseq
        %v4107 = vshrl.u32 %v4106, 7
        %v4108 = vsub.s32 3, %v4107
        %v4109 = vrot.slane %v3878, %v4108
        %v4110 = vlaneseq
        %v4111 = vshrl.u32 %v4110, 7
        %v4112 = vsub.s32 5, %v4111
        %v4113 = vrot.slane %v3878, %v4112
        %v4114 = vlaneseq
        %v4115 = vshrl.u32 %v4114, 7
        %v4116 = vsub.s32 7, %v4115
        %v4117 = vrot.slane %v3878, %v4116
        %v4118 = vlaneseq
        %v4119 = vshrl.u32 %v4118, 7
        %v4120 = vsub.s32 1, %v4119
        %v4121 = vrot.slane %v3879, %v4120
        %v4131 = vlaneseq
        %v4132 = vshrl.u32 %v4131, 7
        %v4133 = vsub.s32 1, %v4132
        %v4134 = vrot.slane %v4089, %v4133
        %v4135 = vlaneseq
        %v4136 = vshrl.u32 %v4135, 7
        %v4137 = vsub.s32 1, %v4136
        %v4138 = vrot.slane %v4093, %v4137
        %v4139 = vlaneseq
        %v4140 = vshrl.u32 %v4139, 7
        %v4141 = vsub.s32 1, %v4140
        %v4142 = vrot.slane %v4097, %v4141
        %v4143 = vlaneseq
        %v4144 = vshrl.u32 %v4143, 7
        %v4145 = vsub.s32 1, %v4144
        %v4146 = vrot.slane %v4101, %v4145
        %v4147 = vlaneseq
        %v4148 = vshrl.u32 %v4147, 7
        %v4149 = vsub.s32 1, %v4148
        %v4150 = vrot.slane %v4105, %v4149
        %v4151 = vlaneseq
        %v4152 = vshrl.u32 %v4151, 7
        %v4153 = vsub.s32 1, %v4152
        %v4154 = vrot.slane %v4109, %v4153
        %v4155 = vlaneseq
        %v4156 = vshrl.u32 %v4155, 7
        %v4157 = vsub.s32 1, %v4156
        %v4158 = vrot.slane %v4113, %v4157
        %v4159 = vlaneseq
        %v4160 = vshrl.u32 %v4159, 7
        %v4161 = vsub.s32 1, %v4160
        %v4162 = vrot.slane %v4117, %v4161
        %v4163 = vlaneseq
        %v4164 = vshrl.u32 %v4163, 7
        %v4165 = vsub.s32 1, %v4164
        %v4166 = vrot.slane %v4121, %v4165
        %v4167 = vadd.f32 %v4020, %v4134
        %v4168 = vadd.f32 %v4021, %v4138
        %v4169 = vadd.f32 %v4022, %v4142
        %v4170 = vadd.f32 %v4023, %v4146
        %v4171 = vadd.f32 %v4024, %v4150
        %v4172 = vadd.f32 %v4025, %v4154
        %v4173 = vadd.f32 %v4026, %v4158
        %v4174 = vadd.f32 %v4027, %v4162
        %v4175 = vadd.f32 %v4028, %v4166
        %v4176 = vadd.f32 %v4029, %v4134
        %v4177 = vadd.f32 %v4030, %v4138
        %v4178 = vadd.f32 %v4031, %v4142
        %v4179 = vadd.f32 %v4032, %v4146
        %v4180 = vadd.f32 %v4033, %v4150
        %v4181 = vadd.f32 %v4034, %v4154
        %v4182 = vadd.f32 %v4035, %v4158
        %v4183 = vadd.f32 %v4036, %v4162
        %v4184 = vadd.f32 %v4037, %v4166
        %v4185 = vadd.f32 %v4038, %v4134
        %v4186 = vadd.f32 %v4039, %v4138
        %v4187 = vadd.f32 %v4040, %v4142
        %v4188 = vadd.f32 %v4041, %v4146
        %v4189 = vadd.f32 %v4042, %v4150
        %v4190 = vadd.f32 %v4043, %v4154
        %v4191 = vadd.f32 %v4044, %v4158
        %v4192 = vadd.f32 %v4045, %v4162
        %v4193 = vadd.f32 %v4046, %v4166
        %v4194 = vadd.f32 %v4047, %v4134
        %v4195 = vadd.f32 %v4048, %v4138
        %v4196 = vadd.f32 %v4049, %v4142
        %v4197 = vadd.f32 %v4050, %v4146
        %v4198 = vadd.f32 %v4051, %v4150
        %v4199 = vadd.f32 %v4052, %v4154
        %v4200 = vadd.f32 %v4053, %v4158
        %v4201 = vadd.f32 %v4054, %v4162
        %v4202 = vadd.f32 %v4055, %v4166
        %v4203 = vadd.f32 %v4056, %v4134
        %v4204 = vadd.f32 %v4057, %v4138
        %v4205 = vadd.f32 %v4058, %v4142
        %v4206 = vadd.f32 %v4059, %v4146
        %v4207 = vadd.f32 %v4060, %v4150
        %v4208 = vadd.f32 %v4061, %v4154
        %v4209 = vadd.f32 %v4062, %v4158
        %v4210 = vadd.f32 %v4063, %v4162
        %v4211 = vadd.f32 %v4064, %v4166
        %v4212 = vadd.f32 %v4065, %v4134
        %v4213 = vadd.f32 %v4066, %v4138
        %v4214 = vadd.f32 %v4067, %v4142
        %v4215 = vadd.f32 %v4068, %v4146
        %v4216 = vadd.f32 %v4069, %v4150
        %v4217 = vadd.f32 %v4070, %v4154
        %v4218 = vadd.f32 %v4071, %v4158
        %v4219 = vadd.f32 %v4072, %v4162
        %v4220 = vadd.f32 %v4073, %v4166
        %v4221 = vadd.f32 %v4074, %v4134
        %v4222 = vadd.f32 %v4075, %v4138
        %v4223 = vadd.f32 %v4076, %v4142
        %v4224 = vadd.f32 %v4077, %v4146
        %v4225 = vadd.f32 %v4078, %v4150
        %v4226 = vadd.f32 %v4079, %v4154
        %v4227 = vadd.f32 %v4080, %v4158
        %v4228 = vadd.f32 %v4081, %v4162
        %v4229 = vadd.f32 %v4082, %v4166
        %4230 = vst [vmem:[%s277] sm:$0xff] %v4167
        %4231 = vst [vmem:[%s277 + $0x8] sm:$0xff] %v4168
        %4232 = vst [vmem:[%s277 + $0x10] sm:$0xff] %v4169
        %4233 = vst [vmem:[%s277 + $0x18] sm:$0xff] %v4170
        %4234 = vst [vmem:[%s277 + $0x20] sm:$0xff] %v4171
        %4235 = vst [vmem:[%s277 + $0x28] sm:$0xff] %v4172
        %4236 = vst [vmem:[%s277 + $0x30] sm:$0xff] %v4173
        %4237 = vst [vmem:[%s277 + $0x38] sm:$0xff] %v4174
        %4238 = vst [vmem:[%s277 + $0x40] sm:$0xff] %v4175
        %4239 = vst [vmem:[%s277 + $0x48] sm:$0xff] %v4176
        %4240 = vst [vmem:[%s277 + $0x50] sm:$0xff] %v4177
        %4241 = vst [vmem:[%s277 + $0x58] sm:$0xff] %v4178
        %4242 = vst [vmem:[%s277 + $0x60] sm:$0xff] %v4179
        %4243 = vst [vmem:[%s277 + $0x68] sm:$0xff] %v4180
        %4244 = vst [vmem:[%s277 + $0x70] sm:$0xff] %v4181
        %4245 = vst [vmem:[%s277 + $0x78] sm:$0xff] %v4182
        %4246 = vst [vmem:[%s277 + $0x80] sm:$0xff] %v4183
        %4247 = vst [vmem:[%s277 + $0x88] sm:$0xff] %v4184
        %4248 = vst [vmem:[%s277 + $0x90] sm:$0xff] %v4185
        %4249 = vst [vmem:[%s277 + $0x98] sm:$0xff] %v4186
        %4250 = vst [vmem:[%s277 + $0xa0] sm:$0xff] %v4187
        %4251 = vst [vmem:[%s277 + $0xa8] sm:$0xff] %v4188
        %4252 = vst [vmem:[%s277 + $0xb0] sm:$0xff] %v4189
        %4253 = vst [vmem:[%s277 + $0xb8] sm:$0xff] %v4190
        %4254 = vst [vmem:[%s277 + $0xc0] sm:$0xff] %v4191
        %4255 = vst [vmem:[%s277 + $0xc8] sm:$0xff] %v4192
        %4256 = vst [vmem:[%s277 + $0xd0] sm:$0xff] %v4193
        %4257 = vst [vmem:[%s277 + $0xd8] sm:$0xff] %v4194
        %4258 = vst [vmem:[%s277 + $0xe0] sm:$0xff] %v4195
        %4259 = vst [vmem:[%s277 + $0xe8] sm:$0xff] %v4196
        %4260 = vst [vmem:[%s277 + $0xf0] sm:$0xff] %v4197
        %4261 = vst [vmem:[%s277 + $0xf8] sm:$0xff] %v4198
        %4262 = vst [vmem:[%s277 + $0x100] sm:$0xff] %v4199
        %4263 = vst [vmem:[%s277 + $0x108] sm:$0xff] %v4200
        %4264 = vst [vmem:[%s277 + $0x110] sm:$0xff] %v4201
        %4265 = vst [vmem:[%s277 + $0x118] sm:$0xff] %v4202
        %4266 = vst [vmem:[%s277 + $0x120] sm:$0xff] %v4203
        %4267 = vst [vmem:[%s277 + $0x128] sm:$0xff] %v4204
        %4268 = vst [vmem:[%s277 + $0x130] sm:$0xff] %v4205
        %4269 = vst [vmem:[%s277 + $0x138] sm:$0xff] %v4206
        %4270 = vst [vmem:[%s277 + $0x140] sm:$0xff] %v4207
        %4271 = vst [vmem:[%s277 + $0x148] sm:$0xff] %v4208
        %4272 = vst [vmem:[%s277 + $0x150] sm:$0xff] %v4209
        %4273 = vst [vmem:[%s277 + $0x158] sm:$0xff] %v4210
        %4274 = vst [vmem:[%s277 + $0x160] sm:$0xff] %v4211
        %4275 = vst [vmem:[%s277 + $0x168] sm:$0xff] %v4212
        %4276 = vst [vmem:[%s277 + $0x170] sm:$0xff] %v4213
        %4277 = vst [vmem:[%s277 + $0x178] sm:$0xff] %v4214
        %4278 = vst [vmem:[%s277 + $0x180] sm:$0xff] %v4215
        %4279 = vst [vmem:[%s277 + $0x188] sm:$0xff] %v4216
        %4280 = vst [vmem:[%s277 + $0x190] sm:$0xff] %v4217
        %4281 = vst [vmem:[%s277 + $0x198] sm:$0xff] %v4218
        %4282 = vst [vmem:[%s277 + $0x1a0] sm:$0xff] %v4219
        %4283 = vst [vmem:[%s277 + $0x1a8] sm:$0xff] %v4220
        %4284 = vst [vmem:[%s277 + $0x1b0] sm:$0x1] %v4221
        %4285 = vst [vmem:[%s277 + $0x1b8] sm:$0x1] %v4222
        %4286 = vst [vmem:[%s277 + $0x1c0] sm:$0x1] %v4223
        %4287 = vst [vmem:[%s277 + $0x1c8] sm:$0x1] %v4224
        %4288 = vst [vmem:[%s277 + $0x1d0] sm:$0x1] %v4225
        %4289 = vst [vmem:[%s277 + $0x1d8] sm:$0x1] %v4226
        %4290 = vst [vmem:[%s277 + $0x1e0] sm:$0x1] %v4227
        %4291 = vst [vmem:[%s277 + $0x1e8] sm:$0x1] %v4228
        %4292 = vst [vmem:[%s277 + $0x1f0] sm:$0x1] %v4229
        %s4293 = sand.u32 %s122, 1
        %s4294 = scalar_lea.sflag [#allocation4], %s4293
        %s4295 = sand.u32 %s122, 1
        %s4296 = smul.addr %s4295, 504
        %s4297 = scalar_lea.vmem [#allocation9], %s4296
        // Predicated region
        $region53: #{tpu_custom_call.1} parent=35 // pred_check
          %p4298 = pneg %p132
        $region54: #{tpu_custom_call.1} parent=35 // pred_check_branch
          %4300 = sbr.rel (%p4298) target = $region56
        $region55: #{tpu_custom_call.1} parent=35 // pred_region
          %s4301 = smul.u32 9, %s20
          %s4303 = ssub.s32 8064, 8064
          %4304 = vsyncadd %s4294, %s4303
          %s4305 = smul.addr %s4301, 128
          %s4306 = scalar_lea.hbm %s4, %s4305
          %s4307 = sshll.u32 %s4297, 4
          %s4308 = int_to_ptr.vmem [resolvable:$true] %s4307
          %4313 = dma.vmem_to_hbm [thread:$0]  %s4308, 8064, %s4306, %s4294, 1152, 2304, 72
        $region56: #{tpu_custom_call.1} parent=35 // pred_fallthru
          _
      $region36: #{tpu_custom_call.1} parent=5 // pred_fallthru
        _
      %p4314 = scmp.le.s32.totalorder 2, %s15
      // Predicated region
      $region57: #{tpu_custom_call.1} parent=5 // pred_check
        %p4315 = pneg %p4314
      $region58: #{tpu_custom_call.1} parent=5 // pred_check_branch
        %4317 = sbr.rel (%p4315) target = $region60
      $region59: #{tpu_custom_call.1} parent=5 // pred_region
        %s4318 = ssub.s32 %s15, 2
        // Predicated region
        $region61: #{tpu_custom_call.1} parent=59 // pred_check
          %p4319 = pneg %p138
        $region62: #{tpu_custom_call.1} parent=59 // pred_check_branch
          %4321 = sbr.rel (%p4319) target = $region64
        $region63: #{tpu_custom_call.1} parent=59 // pred_region
          %s4322 = sand.u32 %s123, 1
          %s4323 = scalar_lea.sflag [#allocation4], %s4322
          %s4324 = sand.u32 %s123, 1
          %s4325 = smul.addr %s4324, 504
          %s4326 = scalar_lea.vmem [#allocation9], %s4325
          %4327 = dma.done %s4323, 8064
        $region64: #{tpu_custom_call.1} parent=59 // pred_fallthru
          _
      $region60: #{tpu_custom_call.1} parent=5 // pred_fallthru
        _
    $region6: #{tpu_custom_call.1} parent=1 // loop_footer
      %s19 = sadd.s32 1, %s15
    $region7: #{tpu_custom_call.1} parent=1 // loop_footer_branch
      %14 = sbr.rel target = $region3
    $region8: #{tpu_custom_call.1} parent=1 // loop_exit
      _
    %4328 = vsyncpa [#allocation3], 1
    %s4329 = scalar_lea.sflag [#allocation3], 1
    %4330 = vsyncpa %s4329, 1
    %4331 = vsyncpa [#allocation6], 1
    %4332 = vsyncpa [#allocation4], 1
    %s4333 = scalar_lea.sflag [#allocation4], 1
    %4334 = vsyncpa %s4333, 1

</llo_original>
